<compile_context>
chip_gen: v7x
topology: tpu7x:2x2x1
jax: 0.10.0
libtpu: 0.0.40
codegen_flags: <defaults>
</compile_context>

<pallas_src>
import jax
import jax.numpy as jnp
from jax.experimental import pallas as pl
from jax.experimental.pallas import tpu as pltpu

NC = 3          # parameters.nc  (RGB)
NDF = 8         # parameters.ndf (reduced from 64 to keep the test small)
IMG = 64        # DCGAN discriminator architecture requires 64x64 inputs
EPS = 1e-5
NEG_SLOPE = 0.2


# ----------------------------- Pallas kernels ------------------------------

def _conv_lrelu_kernel(p_ref, w_ref, o_ref):
    """Layer 1: im2col-matmul conv + LeakyReLU(0.2), fused."""
    y = jnp.dot(p_ref[...], w_ref[...], preferred_element_type=jnp.float32)
    o_ref[...] = jnp.where(y > 0, y, NEG_SLOPE * y)


def _conv_bn_lrelu_kernel(p_ref, w_ref, g_ref, b_ref, o_ref):
    """Layers 2-3: conv + training-mode BatchNorm + LeakyReLU, fully fused."""
    y = jnp.dot(p_ref[...], w_ref[...], preferred_element_type=jnp.float32)
    m = y.shape[0]                                   # static (N*OH*OW)
    mean = jnp.sum(y, axis=0, keepdims=True) * (1.0 / m)
    d = y - mean
    var = jnp.sum(d * d, axis=0, keepdims=True) * (1.0 / m)   # two-pass, biased
    scale = g_ref[...] * jax.lax.rsqrt(var + EPS)              # (1, C)
    z = d * scale + b_ref[...]
    o_ref[...] = jnp.where(z > 0, z, NEG_SLOPE * z)


def _conv_bn_lrelu_head_kernel(p_ref, w_ref, g_ref, b_ref, w5_ref, s_ref,
                               o_ref):
    """Layer 4 (conv + BN + LeakyReLU) fused with layer 5 (4x4 valid conv to
    1x1, done as VPU multiply-reduce) and a numerically stable sigmoid."""
    y = jnp.dot(p_ref[...], w_ref[...], preferred_element_type=jnp.float32)
    m = y.shape[0]                                   # N * 4 * 4
    mean = jnp.sum(y, axis=0, keepdims=True) * (1.0 / m)
    d = y - mean
    var = jnp.sum(d * d, axis=0, keepdims=True) * (1.0 / m)
    scale = g_ref[...] * jax.lax.rsqrt(var + EPS)
    z = d * scale + b_ref[...]
    a = jnp.where(z > 0, z, NEG_SLOPE * z)           # (N*16, ndf*8)

    # Layer 5: per-sample full contraction over spatial*channels.
    prod = a * w5_ref[...]                           # (N*16, ndf*8)
    per_n = jnp.dot(s_ref[...], prod,                # (N, ndf*8): sum over the
                    preferred_element_type=jnp.float32)   # 16 rows of each n
    logits = jnp.sum(per_n, axis=1, keepdims=True)   # (N, 1)

    # Stable sigmoid (no exp overflow for large |logit|).
    e = jnp.exp(-jnp.abs(logits))
    o_ref[...] = jnp.where(logits >= 0, 1.0 / (1.0 + e), e / (1.0 + e))


def _vmem_call(kernel, out_shape, *args):
    """Gridless pallas_call: every operand is a single VMEM-resident block."""
    return pl.pallas_call(
        kernel,
        out_shape=out_shape,
        in_specs=[pl.BlockSpec(memory_space=pltpu.MemorySpace.VMEM)] * len(args),
        out_specs=pl.BlockSpec(memory_space=pltpu.MemorySpace.VMEM),
    )(*args)


# ------------------------------- glue (JAX) --------------------------------

def im2col_nhwc(x, kh, kw, stride, pad):
    """NHWC -> patch matrix [N*OH*OW, kh*kw*C]; K ordered (kh, kw, c)."""
    n, h, w, c = x.shape
    xp = jnp.pad(x, ((0, 0), (pad, pad), (pad, pad), (0, 0)))
    oh = (h + 2 * pad - kh) // stride + 1
    ow = (w + 2 * pad - kw) // stride + 1
    cols = []
    for i in range(kh):
        for j in range(kw):
            cols.append(xp[:, i:i + stride * oh:stride,
                           j:j + stride * ow:stride, :])
    p = jnp.concatenate(cols, axis=-1)               # (N, OH, OW, kh*kw*C)
    return p.reshape(n * oh * ow, kh * kw * c), oh, ow


def conv_w_to_mat(w_oihw):
    """OIHW conv weight -> [K, OC] matmul weight, K ordered (kh, kw, ic)."""
    oc, ic, kh, kw = w_oihw.shape
    return jnp.transpose(w_oihw, (2, 3, 1, 0)).reshape(kh * kw * ic, oc)


def discriminator_forward(x, params):
    n = x.shape[0]
    ndf = NDF
    h = jnp.transpose(x, (0, 2, 3, 1))               # NCHW -> NHWC, exactly once

    # ---- layer 1: conv(nc -> ndf, k4 s2 p1) + LeakyReLU (fused kernel) ----
    p1, oh, ow = im2col_nhwc(h, 4, 4, 2, 1)
    a1 = _vmem_call(_conv_lrelu_kernel,
                    jax.ShapeDtypeStruct((p1.shape[0], ndf), jnp.float32),
                    p1, conv_w_to_mat(params["w1"]))
    h = a1.reshape(n, oh, ow, ndf)

    # ---- layers 2-3: conv + BatchNorm + LeakyReLU, one fused kernel each ----
    for li, c_out in ((2, ndf * 2), (3, ndf * 4)):
        p, oh, ow = im2col_nhwc(h, 4, 4, 2, 1)
        a = _vmem_call(_conv_bn_lrelu_kernel,
                       jax.ShapeDtypeStruct((p.shape[0], c_out), jnp.float32),
                       p, conv_w_to_mat(params[f"w{li}"]),
                       params[f"g{li}"].reshape(1, c_out),
                       params[f"b{li}"].reshape(1, c_out))
        h = a.reshape(n, oh, ow, c_out)

    # ---- layer 4 (conv + BN + LeakyReLU) + layer 5 (k4 valid conv + sigmoid),
    #      all fused in a single kernel ----
    p4, oh4, ow4 = im2col_nhwc(h, 4, 4, 2, 1)        # layer-4 output is 4x4
    assert (oh4, ow4) == (4, 4)
    c4 = ndf * 8
    # w5[0, c, y, x] laid out as [y*4+x, c], tiled per sample (row order n,y,x).
    w5_2d = jnp.transpose(params["w5"], (2, 3, 1, 0)).reshape(oh4 * ow4, c4)
    w5_tiled = jnp.tile(w5_2d, (n, 1))               # (n*16, c4)
    # Selection matrix summing the 16 spatial rows of each sample.
    sel = jnp.repeat(jnp.eye(n, dtype=jnp.float32), oh4 * ow4, axis=1)  # (n, n*16)
    probs = _vmem_call(
        _conv_bn_lrelu_head_kernel,
        jax.ShapeDtypeStruct((n, 1), jnp.float32),
        p4, conv_w_to_mat(params["w4"]),
        params["g4"].reshape(1, c4), params["b4"].reshape(1, c4),
        w5_tiled, sel)
    return probs.reshape(n, 1, 1, 1)                 # matches nn.Sequential output


# --------------------------- pure-JAX reference -----------------------------

def ref_forward(x, params):
    def conv(x, w, stride, pad):
        return jax.lax.conv_general_dilated(
            x, w, (stride, stride), [(pad, pad), (pad, pad)],
            dimension_numbers=("NCHW", "OIHW", "NCHW"))

    def bn(x, gamma, beta):
        mean = jnp.mean(x, axis=(0, 2, 3), keepdims=True)
        var = jnp.mean((x - mean) ** 2, axis=(0, 2, 3), keepdims=True)
        xn = (x - mean) / jnp.sqrt(var + EPS)
        return xn * gamma[None, :, None, None] + beta[None, :, None, None]

    def lrelu(x):
        return jnp.where(x > 0, x, NEG_SLOPE * x)

    h = lrelu(conv(x, params["w1"], 2, 1))
    for li in (2, 3, 4):
        h = lrelu(bn(conv(h, params[f"w{li}"], 2, 1),
                     params[f"g{li}"], params[f"b{li}"]))
    h = conv(h, params["w5"], 1, 0)
    return jax.nn.sigmoid(h)


# ---------------------------------- main ------------------------------------

def init_params(key):
    ks = jax.random.split(key, 12)
    ndf = NDF
    p = {
        # Conv2d weights (OIHW), DCGAN-style N(0, 0.02) init, deterministic.
        "w1": 0.02 * jax.random.normal(ks[0], (ndf, NC, 4, 4), jnp.float32),
        "w2": 0.02 * jax.random.normal(ks[1], (ndf * 2, ndf, 4, 4), jnp.float32),
        "w3": 0.02 * jax.random.normal(ks[2], (ndf * 4, ndf * 2, 4, 4), jnp.float32),
        "w4": 0.02 * jax.random.normal(ks[3], (ndf * 8, ndf * 4, 4, 4), jnp.float32),
        "w5": 0.02 * jax.random.normal(ks[4], (1, ndf * 8, 4, 4), jnp.float32),
        # BatchNorm affine params (gamma near 1, beta near 0).
        "g2": 1.0 + 0.1 * jax.random.normal(ks[5], (ndf * 2,), jnp.float32),
        "b2": 0.1 * jax.random.normal(ks[6], (ndf * 2,), jnp.float32),
        "g3": 1.0 + 0.1 * jax.random.normal(ks[7], (ndf * 4,), jnp.float32),
        "b3": 0.1 * jax.random.normal(ks[8], (ndf * 4,), jnp.float32),
        "g4": 1.0 + 0.1 * jax.random.normal(ks[9], (ndf * 8,), jnp.float32),
        "b4": 0.1 * jax.random.normal(ks[10], (ndf * 8,), jnp.float32),
    }
    return p


if __name__ == "__main__":
    key = jax.random.PRNGKey(0)
    k_x, k_p = jax.random.split(key)
    x = jax.random.normal(k_x, (2, NC, IMG, IMG), jnp.float32)  # batch=2, NCHW
    params = init_params(k_p)

    out = jax.block_until_ready(jax.jit(discriminator_forward)(x, params))
    assert out.shape == (2, 1, 1, 1), out.shape

    ref = jax.block_until_ready(jax.jit(ref_forward)(x, params))
    assert jnp.allclose(out, ref, rtol=1e-3, atol=1e-3), (out, ref)

    print("KERNEL_OK")
</pallas_src>

<mosaic_0001>
module attributes {stable_mosaic.version = 11 : i64} {
  func.func @_conv_lrelu_kernel(%arg0: memref<2048x48xf32, #tpu.memory_space<vmem>>, %arg1: memref<48x8xf32, #tpu.memory_space<vmem>>, %arg2: memref<2048x8xf32, #tpu.memory_space<vmem>>) attributes {dimension_semantics = [], scalar_prefetch = 0 : i64, scratch_operands = 0 : i64, tpu.core_type = #tpu.core_type<tc>} {
    %c0 = arith.constant 0 : index
    %c0_0 = arith.constant 0 : index
    %0 = vector.load %arg0[%c0, %c0_0] : memref<2048x48xf32, #tpu.memory_space<vmem>>, vector<2048x48xf32>
    %c0_1 = arith.constant 0 : index
    %c0_2 = arith.constant 0 : index
    %1 = vector.load %arg1[%c0_1, %c0_2] : memref<48x8xf32, #tpu.memory_space<vmem>>, vector<48x8xf32>
    %cst = arith.constant dense<0.000000e+00> : vector<2048x8xf32>
    %2 = tpu.matmul %0, %1, %cst {dimension_numbers = #tpu.dot_dimension_numbers<[1], [0], [0], [1], [0, 0, 1, 1], [], []>} : vector<2048x48xf32>, vector<48x8xf32>, vector<2048x8xf32> -> vector<2048x8xf32>
    %cst_3 = arith.constant 0.000000e+00 : f32
    %3 = vector.broadcast %cst_3 : f32 to vector<2048x8xf32>
    %4 = arith.cmpf ogt, %2, %3 : vector<2048x8xf32>
    %cst_4 = arith.constant 2.000000e-01 : f32
    %5 = vector.broadcast %cst_4 : f32 to vector<2048x8xf32>
    %6 = arith.mulf %5, %2 : vector<2048x8xf32>
    %7 = arith.select %4, %2, %6 : vector<2048x8xi1>, vector<2048x8xf32>
    %c0_5 = arith.constant 0 : index
    %c0_6 = arith.constant 0 : index
    %8 = vector.load %arg2[%c0_5, %c0_6] : memref<2048x8xf32, #tpu.memory_space<vmem>>, vector<2048x8xf32>
    tpu.vector_store %arg2[%c0_5, %c0_6], %7 {strides = array<i32>} : memref<2048x8xf32, #tpu.memory_space<vmem>>, vector<2048x8xf32>,
    return
  }
}

module attributes {stable_mosaic.version = 11 : i64} {
  func.func @_conv_bn_lrelu_kernel(%arg0: memref<512x128xf32, #tpu.memory_space<vmem>>, %arg1: memref<128x16xf32, #tpu.memory_space<vmem>>, %arg2: memref<1x16xf32, #tpu.memory_space<vmem>>, %arg3: memref<1x16xf32, #tpu.memory_space<vmem>>, %arg4: memref<512x16xf32, #tpu.memory_space<vmem>>) attributes {dimension_semantics = [], scalar_prefetch = 0 : i64, scratch_operands = 0 : i64, tpu.core_type = #tpu.core_type<tc>} {
    %c0 = arith.constant 0 : index
    %c0_0 = arith.constant 0 : index
    %0 = vector.load %arg0[%c0, %c0_0] : memref<512x128xf32, #tpu.memory_space<vmem>>, vector<512x128xf32>
    %c0_1 = arith.constant 0 : index
    %c0_2 = arith.constant 0 : index
    %1 = vector.load %arg1[%c0_1, %c0_2] : memref<128x16xf32, #tpu.memory_space<vmem>>, vector<128x16xf32>
    %cst = arith.constant dense<0.000000e+00> : vector<512x16xf32>
    %2 = tpu.matmul %0, %1, %cst {dimension_numbers = #tpu.dot_dimension_numbers<[1], [0], [0], [1], [0, 0, 1, 1], [], []>} : vector<512x128xf32>, vector<128x16xf32>, vector<512x16xf32> -> vector<512x16xf32>
    %cst_3 = arith.constant dense<0.000000e+00> : vector<16xf32>
    %3 = vector.multi_reduction <add>, %2, %cst_3 [0] : vector<512x16xf32> to vector<16xf32>
    %4 = vector.shape_cast %3 : vector<16xf32> to vector<1x16xf32>
    %cst_4 = arith.constant 0.001953125 : f32
    %5 = vector.broadcast %cst_4 : f32 to vector<1x16xf32>
    %6 = arith.mulf %4, %5 : vector<1x16xf32>
    %7 = vector.broadcast %6 : vector<1x16xf32> to vector<512x16xf32>
    %8 = arith.subf %2, %7 : vector<512x16xf32>
    %9 = arith.mulf %8, %8 : vector<512x16xf32>
    %cst_5 = arith.constant dense<0.000000e+00> : vector<16xf32>
    %10 = vector.multi_reduction <add>, %9, %cst_5 [0] : vector<512x16xf32> to vector<16xf32>
    %11 = vector.shape_cast %10 : vector<16xf32> to vector<1x16xf32>
    %cst_6 = arith.constant 0.001953125 : f32
    %12 = vector.broadcast %cst_6 : f32 to vector<1x16xf32>
    %13 = arith.mulf %11, %12 : vector<1x16xf32>
    %c0_7 = arith.constant 0 : index
    %c0_8 = arith.constant 0 : index
    %14 = vector.load %arg2[%c0_7, %c0_8] : memref<1x16xf32, #tpu.memory_space<vmem>>, vector<1x16xf32>
    %cst_9 = arith.constant 9.99999974E-6 : f32
    %15 = vector.broadcast %cst_9 : f32 to vector<1x16xf32>
    %16 = arith.addf %13, %15 : vector<1x16xf32>
    %17 = math.rsqrt %16 : vector<1x16xf32>
    %18 = arith.mulf %14, %17 : vector<1x16xf32>
    %19 = vector.broadcast %18 : vector<1x16xf32> to vector<512x16xf32>
    %20 = arith.mulf %8, %19 : vector<512x16xf32>
    %c0_10 = arith.constant 0 : index
    %c0_11 = arith.constant 0 : index
    %21 = vector.load %arg3[%c0_10, %c0_11] : memref<1x16xf32, #tpu.memory_space<vmem>>, vector<1x16xf32>
    %22 = vector.broadcast %21 : vector<1x16xf32> to vector<512x16xf32>
    %23 = arith.addf %20, %22 : vector<512x16xf32>
    %cst_12 = arith.constant 0.000000e+00 : f32
    %24 = vector.broadcast %cst_12 : f32 to vector<512x16xf32>
    %25 = arith.cmpf ogt, %23, %24 : vector<512x16xf32>
    %cst_13 = arith.constant 2.000000e-01 : f32
    %26 = vector.broadcast %cst_13 : f32 to vector<512x16xf32>
    %27 = arith.mulf %26, %23 : vector<512x16xf32>
    %28 = arith.select %25, %23, %27 : vector<512x16xi1>, vector<512x16xf32>
    %c0_14 = arith.constant 0 : index
    %c0_15 = arith.constant 0 : index
    %29 = vector.load %arg4[%c0_14, %c0_15] : memref<512x16xf32, #tpu.memory_space<vmem>>, vector<512x16xf32>
    tpu.vector_store %arg4[%c0_14, %c0_15], %28 {strides = array<i32>} : memref<512x16xf32, #tpu.memory_space<vmem>>, vector<512x16xf32>,
    return
  }
}

module attributes {stable_mosaic.version = 11 : i64} {
  func.func @_conv_bn_lrelu_kernel(%arg0: memref<128x256xf32, #tpu.memory_space<vmem>>, %arg1: memref<256x32xf32, #tpu.memory_space<vmem>>, %arg2: memref<1x32xf32, #tpu.memory_space<vmem>>, %arg3: memref<1x32xf32, #tpu.memory_space<vmem>>, %arg4: memref<128x32xf32, #tpu.memory_space<vmem>>) attributes {dimension_semantics = [], scalar_prefetch = 0 : i64, scratch_operands = 0 : i64, tpu.core_type = #tpu.core_type<tc>} {
    %c0 = arith.constant 0 : index
    %c0_0 = arith.constant 0 : index
    %0 = vector.load %arg0[%c0, %c0_0] : memref<128x256xf32, #tpu.memory_space<vmem>>, vector<128x256xf32>
    %c0_1 = arith.constant 0 : index
    %c0_2 = arith.constant 0 : index
    %1 = vector.load %arg1[%c0_1, %c0_2] : memref<256x32xf32, #tpu.memory_space<vmem>>, vector<256x32xf32>
    %cst = arith.constant dense<0.000000e+00> : vector<128x32xf32>
    %2 = tpu.matmul %0, %1, %cst {dimension_numbers = #tpu.dot_dimension_numbers<[1], [0], [0], [1], [0, 0, 1, 1], [], []>} : vector<128x256xf32>, vector<256x32xf32>, vector<128x32xf32> -> vector<128x32xf32>
    %cst_3 = arith.constant dense<0.000000e+00> : vector<32xf32>
    %3 = vector.multi_reduction <add>, %2, %cst_3 [0] : vector<128x32xf32> to vector<32xf32>
    %4 = vector.shape_cast %3 : vector<32xf32> to vector<1x32xf32>
    %cst_4 = arith.constant 7.812500e-03 : f32
    %5 = vector.broadcast %cst_4 : f32 to vector<1x32xf32>
    %6 = arith.mulf %4, %5 : vector<1x32xf32>
    %7 = vector.broadcast %6 : vector<1x32xf32> to vector<128x32xf32>
    %8 = arith.subf %2, %7 : vector<128x32xf32>
    %9 = arith.mulf %8, %8 : vector<128x32xf32>
    %cst_5 = arith.constant dense<0.000000e+00> : vector<32xf32>
    %10 = vector.multi_reduction <add>, %9, %cst_5 [0] : vector<128x32xf32> to vector<32xf32>
    %11 = vector.shape_cast %10 : vector<32xf32> to vector<1x32xf32>
    %cst_6 = arith.constant 7.812500e-03 : f32
    %12 = vector.broadcast %cst_6 : f32 to vector<1x32xf32>
    %13 = arith.mulf %11, %12 : vector<1x32xf32>
    %c0_7 = arith.constant 0 : index
    %c0_8 = arith.constant 0 : index
    %14 = vector.load %arg2[%c0_7, %c0_8] : memref<1x32xf32, #tpu.memory_space<vmem>>, vector<1x32xf32>
    %cst_9 = arith.constant 9.99999974E-6 : f32
    %15 = vector.broadcast %cst_9 : f32 to vector<1x32xf32>
    %16 = arith.addf %13, %15 : vector<1x32xf32>
    %17 = math.rsqrt %16 : vector<1x32xf32>
    %18 = arith.mulf %14, %17 : vector<1x32xf32>
    %19 = vector.broadcast %18 : vector<1x32xf32> to vector<128x32xf32>
    %20 = arith.mulf %8, %19 : vector<128x32xf32>
    %c0_10 = arith.constant 0 : index
    %c0_11 = arith.constant 0 : index
    %21 = vector.load %arg3[%c0_10, %c0_11] : memref<1x32xf32, #tpu.memory_space<vmem>>, vector<1x32xf32>
    %22 = vector.broadcast %21 : vector<1x32xf32> to vector<128x32xf32>
    %23 = arith.addf %20, %22 : vector<128x32xf32>
    %cst_12 = arith.constant 0.000000e+00 : f32
    %24 = vector.broadcast %cst_12 : f32 to vector<128x32xf32>
    %25 = arith.cmpf ogt, %23, %24 : vector<128x32xf32>
    %cst_13 = arith.constant 2.000000e-01 : f32
    %26 = vector.broadcast %cst_13 : f32 to vector<128x32xf32>
    %27 = arith.mulf %26, %23 : vector<128x32xf32>
    %28 = arith.select %25, %23, %27 : vector<128x32xi1>, vector<128x32xf32>
    %c0_14 = arith.constant 0 : index
    %c0_15 = arith.constant 0 : index
    %29 = vector.load %arg4[%c0_14, %c0_15] : memref<128x32xf32, #tpu.memory_space<vmem>>, vector<128x32xf32>
    tpu.vector_store %arg4[%c0_14, %c0_15], %28 {strides = array<i32>} : memref<128x32xf32, #tpu.memory_space<vmem>>, vector<128x32xf32>,
    return
  }
}

module attributes {stable_mosaic.version = 11 : i64} {
  func.func @_conv_bn_lrelu_head_kernel(%arg0: memref<32x512xf32, #tpu.memory_space<vmem>>, %arg1: memref<512x64xf32, #tpu.memory_space<vmem>>, %arg2: memref<1x64xf32, #tpu.memory_space<vmem>>, %arg3: memref<1x64xf32, #tpu.memory_space<vmem>>, %arg4: memref<32x64xf32, #tpu.memory_space<vmem>>, %arg5: memref<2x32xf32, #tpu.memory_space<vmem>>, %arg6: memref<2x1xf32, #tpu.memory_space<vmem>>) attributes {dimension_semantics = [], scalar_prefetch = 0 : i64, scratch_operands = 0 : i64, tpu.core_type = #tpu.core_type<tc>} {
    %c0 = arith.constant 0 : index
    %c0_0 = arith.constant 0 : index
    %0 = vector.load %arg0[%c0, %c0_0] : memref<32x512xf32, #tpu.memory_space<vmem>>, vector<32x512xf32>
    %c0_1 = arith.constant 0 : index
    %c0_2 = arith.constant 0 : index
    %1 = vector.load %arg1[%c0_1, %c0_2] : memref<512x64xf32, #tpu.memory_space<vmem>>, vector<512x64xf32>
    %cst = arith.constant dense<0.000000e+00> : vector<32x64xf32>
    %2 = tpu.matmul %0, %1, %cst {dimension_numbers = #tpu.dot_dimension_numbers<[1], [0], [0], [1], [0, 0, 1, 1], [], []>} : vector<32x512xf32>, vector<512x64xf32>, vector<32x64xf32> -> vector<32x64xf32>
    %cst_3 = arith.constant dense<0.000000e+00> : vector<64xf32>
    %3 = vector.multi_reduction <add>, %2, %cst_3 [0] : vector<32x64xf32> to vector<64xf32>
    %4 = vector.shape_cast %3 : vector<64xf32> to vector<1x64xf32>
    %cst_4 = arith.constant 3.125000e-02 : f32
    %5 = vector.broadcast %cst_4 : f32 to vector<1x64xf32>
    %6 = arith.mulf %4, %5 : vector<1x64xf32>
    %7 = vector.broadcast %6 : vector<1x64xf32> to vector<32x64xf32>
    %8 = arith.subf %2, %7 : vector<32x64xf32>
    %9 = arith.mulf %8, %8 : vector<32x64xf32>
    %cst_5 = arith.constant dense<0.000000e+00> : vector<64xf32>
    %10 = vector.multi_reduction <add>, %9, %cst_5 [0] : vector<32x64xf32> to vector<64xf32>
    %11 = vector.shape_cast %10 : vector<64xf32> to vector<1x64xf32>
    %cst_6 = arith.constant 3.125000e-02 : f32
    %12 = vector.broadcast %cst_6 : f32 to vector<1x64xf32>
    %13 = arith.mulf %11, %12 : vector<1x64xf32>
    %c0_7 = arith.constant 0 : index
    %c0_8 = arith.constant 0 : index
    %14 = vector.load %arg2[%c0_7, %c0_8] : memref<1x64xf32, #tpu.memory_space<vmem>>, vector<1x64xf32>
    %cst_9 = arith.constant 9.99999974E-6 : f32
    %15 = vector.broadcast %cst_9 : f32 to vector<1x64xf32>
    %16 = arith.addf %13, %15 : vector<1x64xf32>
    %17 = math.rsqrt %16 : vector<1x64xf32>
    %18 = arith.mulf %14, %17 : vector<1x64xf32>
    %19 = vector.broadcast %18 : vector<1x64xf32> to vector<32x64xf32>
    %20 = arith.mulf %8, %19 : vector<32x64xf32>
    %c0_10 = arith.constant 0 : index
    %c0_11 = arith.constant 0 : index
    %21 = vector.load %arg3[%c0_10, %c0_11] : memref<1x64xf32, #tpu.memory_space<vmem>>, vector<1x64xf32>
    %22 = vector.broadcast %21 : vector<1x64xf32> to vector<32x64xf32>
    %23 = arith.addf %20, %22 : vector<32x64xf32>
    %cst_12 = arith.constant 0.000000e+00 : f32
    %24 = vector.broadcast %cst_12 : f32 to vector<32x64xf32>
    %25 = arith.cmpf ogt, %23, %24 : vector<32x64xf32>
    %cst_13 = arith.constant 2.000000e-01 : f32
    %26 = vector.broadcast %cst_13 : f32 to vector<32x64xf32>
    %27 = arith.mulf %26, %23 : vector<32x64xf32>
    %28 = arith.select %25, %23, %27 : vector<32x64xi1>, vector<32x64xf32>
    %c0_14 = arith.constant 0 : index
    %c0_15 = arith.constant 0 : index
    %29 = vector.load %arg4[%c0_14, %c0_15] : memref<32x64xf32, #tpu.memory_space<vmem>>, vector<32x64xf32>
    %30 = arith.mulf %28, %29 : vector<32x64xf32>
    %c0_16 = arith.constant 0 : index
    %c0_17 = arith.constant 0 : index
    %31 = vector.load %arg5[%c0_16, %c0_17] : memref<2x32xf32, #tpu.memory_space<vmem>>, vector<2x32xf32>
    %cst_18 = arith.constant dense<0.000000e+00> : vector<2x64xf32>
    %32 = tpu.matmul %31, %30, %cst_18 {dimension_numbers = #tpu.dot_dimension_numbers<[1], [0], [0], [1], [0, 0, 1, 1], [], []>} : vector<2x32xf32>, vector<32x64xf32>, vector<2x64xf32> -> vector<2x64xf32>
    %cst_19 = arith.constant dense<0.000000e+00> : vector<2xf32>
    %33 = vector.multi_reduction <add>, %32, %cst_19 [1] : vector<2x64xf32> to vector<2xf32>
    %34 = vector.shape_cast %33 : vector<2xf32> to vector<2x1xf32>
    %35 = math.absf %34 : vector<2x1xf32>
    %cst_20 = arith.constant 0.000000e+00 : f32
    %36 = vector.broadcast %cst_20 : f32 to vector<2x1xf32>
    %37 = arith.subf %36, %35 : vector<2x1xf32>
    %38 = math.exp %37 : vector<2x1xf32>
    %cst_21 = arith.constant 0.000000e+00 : f32
    %39 = vector.broadcast %cst_21 : f32 to vector<2x1xf32>
    %40 = arith.cmpf oge, %34, %39 : vector<2x1xf32>
    %cst_22 = arith.constant 1.000000e+00 : f32
    %41 = vector.broadcast %cst_22 : f32 to vector<2x1xf32>
    %42 = arith.addf %41, %38 : vector<2x1xf32>
    %cst_23 = arith.constant 1.000000e+00 : f32
    %43 = vector.broadcast %cst_23 : f32 to vector<2x1xf32>
    %44 = arith.divf %43, %42 : vector<2x1xf32>
    %cst_24 = arith.constant 1.000000e+00 : f32
    %45 = vector.broadcast %cst_24 : f32 to vector<2x1xf32>
    %46 = arith.addf %45, %38 : vector<2x1xf32>
    %47 = arith.divf %38, %46 : vector<2x1xf32>
    %48 = arith.select %40, %44, %47 : vector<2x1xi1>, vector<2x1xf32>
    %c0_25 = arith.constant 0 : index
    %c0_26 = arith.constant 0 : index
    %49 = vector.load %arg6[%c0_25, %c0_26] : memref<2x1xf32, #tpu.memory_space<vmem>>, vector<2x1xf32>
    tpu.vector_store %arg6[%c0_25, %c0_26], %48 {strides = array<i32>} : memref<2x1xf32, #tpu.memory_space<vmem>>, vector<2x1xf32>,
    return
  }
}

</mosaic_0001>

<llo_original>
// kernel: discriminator_forward.4
$region0: #{discriminator_forward.4}
  #allocation0 [shape = 'u32[]', space=smem, size = 0x4, offset = 0x4, fixed_abs, tag = 'smem constant byte address 0x4 - core index']
  #allocation1 [shape = 'u32[144,128]{1,0:T(1,128)}', space=vmem, size = 0x12000, scoped, tag = 'internal scratch']
  %s0 = inlined_call_operand.vmem [shape: f32[2048,48], index: 0, kind: input, shape index: {}]
  %s1 = inlined_call_operand.vmem [shape: f32[48,8], index: 1, kind: input, shape index: {}]
  %s2 = inlined_call_operand.vmem [shape: f32[2048,8], index: 2, kind: output, shape index: {}]
  %s3 = sld [smem:[#allocation0]]
  $region18: #{discriminator_forward.4} parent=0
    _
  %s5 = ssub.s32 1, %s3
  %s6 = scalar_select 0, %s5, %s3
  // Predicated region
  $region2: #{discriminator_forward.4} parent=0 // pred_check
    _
  $region3: #{discriminator_forward.4} parent=0 // pred_check_branch
    %8 = sbr.rel (0) target = $region5
  $region4: #{discriminator_forward.4} parent=0 // pred_region
    _
  $region5: #{discriminator_forward.4} parent=0 // pred_fallthru
    _
  // Predicated region
  $region6: #{discriminator_forward.4} parent=0 // pred_check
    _
  $region7: #{discriminator_forward.4} parent=0 // pred_check_branch
    %10 = sbr.rel (0) target = $region9
  $region8: #{discriminator_forward.4} parent=0 // pred_region
    _
  $region9: #{discriminator_forward.4} parent=0 // pred_fallthru
    _
  %v11 = vld [vmem:[%s0] sm:$0xff]
  %v12 = vld [vmem:[%s0 + $0x8] sm:$0xff]
  %v13 = vld [vmem:[%s0 + $0x10] sm:$0xff]
  %v14 = vld [vmem:[%s0 + $0x18] sm:$0xff]
  %v15 = vld [vmem:[%s0 + $0x20] sm:$0xff]
  %v16 = vld [vmem:[%s0 + $0x28] sm:$0xff]
  %v17 = vld [vmem:[%s0 + $0x30] sm:$0xff]
  %v18 = vld [vmem:[%s0 + $0x38] sm:$0xff]
  %v19 = vld [vmem:[%s0 + $0x40] sm:$0xff]
  %v20 = vld [vmem:[%s0 + $0x48] sm:$0xff]
  %v21 = vld [vmem:[%s0 + $0x50] sm:$0xff]
  %v22 = vld [vmem:[%s0 + $0x58] sm:$0xff]
  %v23 = vld [vmem:[%s0 + $0x60] sm:$0xff]
  %v24 = vld [vmem:[%s0 + $0x68] sm:$0xff]
  %v25 = vld [vmem:[%s0 + $0x70] sm:$0xff]
  %v26 = vld [vmem:[%s0 + $0x78] sm:$0xff]
  %v27 = vld [vmem:[%s0 + $0x80] sm:$0xff]
  %v28 = vld [vmem:[%s0 + $0x88] sm:$0xff]
  %v29 = vld [vmem:[%s0 + $0x90] sm:$0xff]
  %v30 = vld [vmem:[%s0 + $0x98] sm:$0xff]
  %v31 = vld [vmem:[%s0 + $0xa0] sm:$0xff]
  %v32 = vld [vmem:[%s0 + $0xa8] sm:$0xff]
  %v33 = vld [vmem:[%s0 + $0xb0] sm:$0xff]
  %v34 = vld [vmem:[%s0 + $0xb8] sm:$0xff]
  %v35 = vld [vmem:[%s0 + $0xc0] sm:$0xff]
  %v36 = vld [vmem:[%s0 + $0xc8] sm:$0xff]
  %v37 = vld [vmem:[%s0 + $0xd0] sm:$0xff]
  %v38 = vld [vmem:[%s0 + $0xd8] sm:$0xff]
  %v39 = vld [vmem:[%s0 + $0xe0] sm:$0xff]
  %v40 = vld [vmem:[%s0 + $0xe8] sm:$0xff]
  %v41 = vld [vmem:[%s0 + $0xf0] sm:$0xff]
  %v42 = vld [vmem:[%s0 + $0xf8] sm:$0xff]
  %v43 = vld [vmem:[%s0 + $0x100] sm:$0xff]
  %v44 = vld [vmem:[%s0 + $0x108] sm:$0xff]
  %v45 = vld [vmem:[%s0 + $0x110] sm:$0xff]
  %v46 = vld [vmem:[%s0 + $0x118] sm:$0xff]
  %v47 = vld [vmem:[%s0 + $0x120] sm:$0xff]
  %v48 = vld [vmem:[%s0 + $0x128] sm:$0xff]
  %v49 = vld [vmem:[%s0 + $0x130] sm:$0xff]
  %v50 = vld [vmem:[%s0 + $0x138] sm:$0xff]
  %v51 = vld [vmem:[%s0 + $0x140] sm:$0xff]
  %v52 = vld [vmem:[%s0 + $0x148] sm:$0xff]
  %v53 = vld [vmem:[%s0 + $0x150] sm:$0xff]
  %v54 = vld [vmem:[%s0 + $0x158] sm:$0xff]
  %v55 = vld [vmem:[%s0 + $0x160] sm:$0xff]
  %v56 = vld [vmem:[%s0 + $0x168] sm:$0xff]
  %v57 = vld [vmem:[%s0 + $0x170] sm:$0xff]
  %v58 = vld [vmem:[%s0 + $0x178] sm:$0xff]
  %v59 = vld [vmem:[%s0 + $0x180] sm:$0xff]
  %v60 = vld [vmem:[%s0 + $0x188] sm:$0xff]
  %v61 = vld [vmem:[%s0 + $0x190] sm:$0xff]
  %v62 = vld [vmem:[%s0 + $0x198] sm:$0xff]
  %v63 = vld [vmem:[%s0 + $0x1a0] sm:$0xff]
  %v64 = vld [vmem:[%s0 + $0x1a8] sm:$0xff]
  %v65 = vld [vmem:[%s0 + $0x1b0] sm:$0xff]
  %v66 = vld [vmem:[%s0 + $0x1b8] sm:$0xff]
  %v67 = vld [vmem:[%s0 + $0x1c0] sm:$0xff]
  %v68 = vld [vmem:[%s0 + $0x1c8] sm:$0xff]
  %v69 = vld [vmem:[%s0 + $0x1d0] sm:$0xff]
  %v70 = vld [vmem:[%s0 + $0x1d8] sm:$0xff]
  %v71 = vld [vmem:[%s0 + $0x1e0] sm:$0xff]
  %v72 = vld [vmem:[%s0 + $0x1e8] sm:$0xff]
  %v73 = vld [vmem:[%s0 + $0x1f0] sm:$0xff]
  %v74 = vld [vmem:[%s0 + $0x1f8] sm:$0xff]
  %v75 = vld [vmem:[%s0 + $0x200] sm:$0xff]
  %v76 = vld [vmem:[%s0 + $0x208] sm:$0xff]
  %v77 = vld [vmem:[%s0 + $0x210] sm:$0xff]
  %v78 = vld [vmem:[%s0 + $0x218] sm:$0xff]
  %v79 = vld [vmem:[%s0 + $0x220] sm:$0xff]
  %v80 = vld [vmem:[%s0 + $0x228] sm:$0xff]
  %v81 = vld [vmem:[%s0 + $0x230] sm:$0xff]
  %v82 = vld [vmem:[%s0 + $0x238] sm:$0xff]
  %v83 = vld [vmem:[%s0 + $0x240] sm:$0xff]
  %v84 = vld [vmem:[%s0 + $0x248] sm:$0xff]
  %v85 = vld [vmem:[%s0 + $0x250] sm:$0xff]
  %v86 = vld [vmem:[%s0 + $0x258] sm:$0xff]
  %v87 = vld [vmem:[%s0 + $0x260] sm:$0xff]
  %v88 = vld [vmem:[%s0 + $0x268] sm:$0xff]
  %v89 = vld [vmem:[%s0 + $0x270] sm:$0xff]
  %v90 = vld [vmem:[%s0 + $0x278] sm:$0xff]
  %v91 = vld [vmem:[%s0 + $0x280] sm:$0xff]
  %v92 = vld [vmem:[%s0 + $0x288] sm:$0xff]
  %v93 = vld [vmem:[%s0 + $0x290] sm:$0xff]
  %v94 = vld [vmem:[%s0 + $0x298] sm:$0xff]
  %v95 = vld [vmem:[%s0 + $0x2a0] sm:$0xff]
  %v96 = vld [vmem:[%s0 + $0x2a8] sm:$0xff]
  %v97 = vld [vmem:[%s0 + $0x2b0] sm:$0xff]
  %v98 = vld [vmem:[%s0 + $0x2b8] sm:$0xff]
  %v99 = vld [vmem:[%s0 + $0x2c0] sm:$0xff]
  %v100 = vld [vmem:[%s0 + $0x2c8] sm:$0xff]
  %v101 = vld [vmem:[%s0 + $0x2d0] sm:$0xff]
  %v102 = vld [vmem:[%s0 + $0x2d8] sm:$0xff]
  %v103 = vld [vmem:[%s0 + $0x2e0] sm:$0xff]
  %v104 = vld [vmem:[%s0 + $0x2e8] sm:$0xff]
  %v105 = vld [vmem:[%s0 + $0x2f0] sm:$0xff]
  %v106 = vld [vmem:[%s0 + $0x2f8] sm:$0xff]
  %v107 = vld [vmem:[%s0 + $0x300] sm:$0xff]
  %v108 = vld [vmem:[%s0 + $0x308] sm:$0xff]
  %v109 = vld [vmem:[%s0 + $0x310] sm:$0xff]
  %v110 = vld [vmem:[%s0 + $0x318] sm:$0xff]
  %v111 = vld [vmem:[%s0 + $0x320] sm:$0xff]
  %v112 = vld [vmem:[%s0 + $0x328] sm:$0xff]
  %v113 = vld [vmem:[%s0 + $0x330] sm:$0xff]
  %v114 = vld [vmem:[%s0 + $0x338] sm:$0xff]
  %v115 = vld [vmem:[%s0 + $0x340] sm:$0xff]
  %v116 = vld [vmem:[%s0 + $0x348] sm:$0xff]
  %v117 = vld [vmem:[%s0 + $0x350] sm:$0xff]
  %v118 = vld [vmem:[%s0 + $0x358] sm:$0xff]
  %v119 = vld [vmem:[%s0 + $0x360] sm:$0xff]
  %v120 = vld [vmem:[%s0 + $0x368] sm:$0xff]
  %v121 = vld [vmem:[%s0 + $0x370] sm:$0xff]
  %v122 = vld [vmem:[%s0 + $0x378] sm:$0xff]
  %v123 = vld [vmem:[%s0 + $0x380] sm:$0xff]
  %v124 = vld [vmem:[%s0 + $0x388] sm:$0xff]
  %v125 = vld [vmem:[%s0 + $0x390] sm:$0xff]
  %v126 = vld [vmem:[%s0 + $0x398] sm:$0xff]
  %v127 = vld [vmem:[%s0 + $0x3a0] sm:$0xff]
  %v128 = vld [vmem:[%s0 + $0x3a8] sm:$0xff]
  %v129 = vld [vmem:[%s0 + $0x3b0] sm:$0xff]
  %v130 = vld [vmem:[%s0 + $0x3b8] sm:$0xff]
  %v131 = vld [vmem:[%s0 + $0x3c0] sm:$0xff]
  %v132 = vld [vmem:[%s0 + $0x3c8] sm:$0xff]
  %v133 = vld [vmem:[%s0 + $0x3d0] sm:$0xff]
  %v134 = vld [vmem:[%s0 + $0x3d8] sm:$0xff]
  %v135 = vld [vmem:[%s0 + $0x3e0] sm:$0xff]
  %v136 = vld [vmem:[%s0 + $0x3e8] sm:$0xff]
  %v137 = vld [vmem:[%s0 + $0x3f0] sm:$0xff]
  %v138 = vld [vmem:[%s0 + $0x3f8] sm:$0xff]
  %v139 = vld [vmem:[%s0 + $0x400] sm:$0xff]
  %v140 = vld [vmem:[%s0 + $0x408] sm:$0xff]
  %v141 = vld [vmem:[%s0 + $0x410] sm:$0xff]
  %v142 = vld [vmem:[%s0 + $0x418] sm:$0xff]
  %v143 = vld [vmem:[%s0 + $0x420] sm:$0xff]
  %v144 = vld [vmem:[%s0 + $0x428] sm:$0xff]
  %v145 = vld [vmem:[%s0 + $0x430] sm:$0xff]
  %v146 = vld [vmem:[%s0 + $0x438] sm:$0xff]
  %v147 = vld [vmem:[%s0 + $0x440] sm:$0xff]
  %v148 = vld [vmem:[%s0 + $0x448] sm:$0xff]
  %v149 = vld [vmem:[%s0 + $0x450] sm:$0xff]
  %v150 = vld [vmem:[%s0 + $0x458] sm:$0xff]
  %v151 = vld [vmem:[%s0 + $0x460] sm:$0xff]
  %v152 = vld [vmem:[%s0 + $0x468] sm:$0xff]
  %v153 = vld [vmem:[%s0 + $0x470] sm:$0xff]
  %v154 = vld [vmem:[%s0 + $0x478] sm:$0xff]
  %v155 = vld [vmem:[%s0 + $0x480] sm:$0xff]
  %v156 = vld [vmem:[%s0 + $0x488] sm:$0xff]
  %v157 = vld [vmem:[%s0 + $0x490] sm:$0xff]
  %v158 = vld [vmem:[%s0 + $0x498] sm:$0xff]
  %v159 = vld [vmem:[%s0 + $0x4a0] sm:$0xff]
  %v160 = vld [vmem:[%s0 + $0x4a8] sm:$0xff]
  %v161 = vld [vmem:[%s0 + $0x4b0] sm:$0xff]
  %v162 = vld [vmem:[%s0 + $0x4b8] sm:$0xff]
  %v163 = vld [vmem:[%s0 + $0x4c0] sm:$0xff]
  %v164 = vld [vmem:[%s0 + $0x4c8] sm:$0xff]
  %v165 = vld [vmem:[%s0 + $0x4d0] sm:$0xff]
  %v166 = vld [vmem:[%s0 + $0x4d8] sm:$0xff]
  %v167 = vld [vmem:[%s0 + $0x4e0] sm:$0xff]
  %v168 = vld [vmem:[%s0 + $0x4e8] sm:$0xff]
  %v169 = vld [vmem:[%s0 + $0x4f0] sm:$0xff]
  %v170 = vld [vmem:[%s0 + $0x4f8] sm:$0xff]
  %v171 = vld [vmem:[%s0 + $0x500] sm:$0xff]
  %v172 = vld [vmem:[%s0 + $0x508] sm:$0xff]
  %v173 = vld [vmem:[%s0 + $0x510] sm:$0xff]
  %v174 = vld [vmem:[%s0 + $0x518] sm:$0xff]
  %v175 = vld [vmem:[%s0 + $0x520] sm:$0xff]
  %v176 = vld [vmem:[%s0 + $0x528] sm:$0xff]
  %v177 = vld [vmem:[%s0 + $0x530] sm:$0xff]
  %v178 = vld [vmem:[%s0 + $0x538] sm:$0xff]
  %v179 = vld [vmem:[%s0 + $0x540] sm:$0xff]
  %v180 = vld [vmem:[%s0 + $0x548] sm:$0xff]
  %v181 = vld [vmem:[%s0 + $0x550] sm:$0xff]
  %v182 = vld [vmem:[%s0 + $0x558] sm:$0xff]
  %v183 = vld [vmem:[%s0 + $0x560] sm:$0xff]
  %v184 = vld [vmem:[%s0 + $0x568] sm:$0xff]
  %v185 = vld [vmem:[%s0 + $0x570] sm:$0xff]
  %v186 = vld [vmem:[%s0 + $0x578] sm:$0xff]
  %v187 = vld [vmem:[%s0 + $0x580] sm:$0xff]
  %v188 = vld [vmem:[%s0 + $0x588] sm:$0xff]
  %v189 = vld [vmem:[%s0 + $0x590] sm:$0xff]
  %v190 = vld [vmem:[%s0 + $0x598] sm:$0xff]
  %v191 = vld [vmem:[%s0 + $0x5a0] sm:$0xff]
  %v192 = vld [vmem:[%s0 + $0x5a8] sm:$0xff]
  %v193 = vld [vmem:[%s0 + $0x5b0] sm:$0xff]
  %v194 = vld [vmem:[%s0 + $0x5b8] sm:$0xff]
  %v195 = vld [vmem:[%s0 + $0x5c0] sm:$0xff]
  %v196 = vld [vmem:[%s0 + $0x5c8] sm:$0xff]
  %v197 = vld [vmem:[%s0 + $0x5d0] sm:$0xff]
  %v198 = vld [vmem:[%s0 + $0x5d8] sm:$0xff]
  %v199 = vld [vmem:[%s0 + $0x5e0] sm:$0xff]
  %v200 = vld [vmem:[%s0 + $0x5e8] sm:$0xff]
  %v201 = vld [vmem:[%s0 + $0x5f0] sm:$0xff]
  %v202 = vld [vmem:[%s0 + $0x5f8] sm:$0xff]
  %v203 = vld [vmem:[%s0 + $0x600] sm:$0xff]
  %v204 = vld [vmem:[%s0 + $0x608] sm:$0xff]
  %v205 = vld [vmem:[%s0 + $0x610] sm:$0xff]
  %v206 = vld [vmem:[%s0 + $0x618] sm:$0xff]
  %v207 = vld [vmem:[%s0 + $0x620] sm:$0xff]
  %v208 = vld [vmem:[%s0 + $0x628] sm:$0xff]
  %v209 = vld [vmem:[%s0 + $0x630] sm:$0xff]
  %v210 = vld [vmem:[%s0 + $0x638] sm:$0xff]
  %v211 = vld [vmem:[%s0 + $0x640] sm:$0xff]
  %v212 = vld [vmem:[%s0 + $0x648] sm:$0xff]
  %v213 = vld [vmem:[%s0 + $0x650] sm:$0xff]
  %v214 = vld [vmem:[%s0 + $0x658] sm:$0xff]
  %v215 = vld [vmem:[%s0 + $0x660] sm:$0xff]
  %v216 = vld [vmem:[%s0 + $0x668] sm:$0xff]
  %v217 = vld [vmem:[%s0 + $0x670] sm:$0xff]
  %v218 = vld [vmem:[%s0 + $0x678] sm:$0xff]
  %v219 = vld [vmem:[%s0 + $0x680] sm:$0xff]
  %v220 = vld [vmem:[%s0 + $0x688] sm:$0xff]
  %v221 = vld [vmem:[%s0 + $0x690] sm:$0xff]
  %v222 = vld [vmem:[%s0 + $0x698] sm:$0xff]
  %v223 = vld [vmem:[%s0 + $0x6a0] sm:$0xff]
  %v224 = vld [vmem:[%s0 + $0x6a8] sm:$0xff]
  %v225 = vld [vmem:[%s0 + $0x6b0] sm:$0xff]
  %v226 = vld [vmem:[%s0 + $0x6b8] sm:$0xff]
  %v227 = vld [vmem:[%s0 + $0x6c0] sm:$0xff]
  %v228 = vld [vmem:[%s0 + $0x6c8] sm:$0xff]
  %v229 = vld [vmem:[%s0 + $0x6d0] sm:$0xff]
  %v230 = vld [vmem:[%s0 + $0x6d8] sm:$0xff]
  %v231 = vld [vmem:[%s0 + $0x6e0] sm:$0xff]
  %v232 = vld [vmem:[%s0 + $0x6e8] sm:$0xff]
  %v233 = vld [vmem:[%s0 + $0x6f0] sm:$0xff]
  %v234 = vld [vmem:[%s0 + $0x6f8] sm:$0xff]
  %v235 = vld [vmem:[%s0 + $0x700] sm:$0xff]
  %v236 = vld [vmem:[%s0 + $0x708] sm:$0xff]
  %v237 = vld [vmem:[%s0 + $0x710] sm:$0xff]
  %v238 = vld [vmem:[%s0 + $0x718] sm:$0xff]
  %v239 = vld [vmem:[%s0 + $0x720] sm:$0xff]
  %v240 = vld [vmem:[%s0 + $0x728] sm:$0xff]
  %v241 = vld [vmem:[%s0 + $0x730] sm:$0xff]
  %v242 = vld [vmem:[%s0 + $0x738] sm:$0xff]
  %v243 = vld [vmem:[%s0 + $0x740] sm:$0xff]
  %v244 = vld [vmem:[%s0 + $0x748] sm:$0xff]
  %v245 = vld [vmem:[%s0 + $0x750] sm:$0xff]
  %v246 = vld [vmem:[%s0 + $0x758] sm:$0xff]
  %v247 = vld [vmem:[%s0 + $0x760] sm:$0xff]
  %v248 = vld [vmem:[%s0 + $0x768] sm:$0xff]
  %v249 = vld [vmem:[%s0 + $0x770] sm:$0xff]
  %v250 = vld [vmem:[%s0 + $0x778] sm:$0xff]
  %v251 = vld [vmem:[%s0 + $0x780] sm:$0xff]
  %v252 = vld [vmem:[%s0 + $0x788] sm:$0xff]
  %v253 = vld [vmem:[%s0 + $0x790] sm:$0xff]
  %v254 = vld [vmem:[%s0 + $0x798] sm:$0xff]
  %v255 = vld [vmem:[%s0 + $0x7a0] sm:$0xff]
  %v256 = vld [vmem:[%s0 + $0x7a8] sm:$0xff]
  %v257 = vld [vmem:[%s0 + $0x7b0] sm:$0xff]
  %v258 = vld [vmem:[%s0 + $0x7b8] sm:$0xff]
  %v259 = vld [vmem:[%s0 + $0x7c0] sm:$0xff]
  %v260 = vld [vmem:[%s0 + $0x7c8] sm:$0xff]
  %v261 = vld [vmem:[%s0 + $0x7d0] sm:$0xff]
  %v262 = vld [vmem:[%s0 + $0x7d8] sm:$0xff]
  %v263 = vld [vmem:[%s0 + $0x7e0] sm:$0xff]
  %v264 = vld [vmem:[%s0 + $0x7e8] sm:$0xff]
  %v265 = vld [vmem:[%s0 + $0x7f0] sm:$0xff]
  %v266 = vld [vmem:[%s0 + $0x7f8] sm:$0xff]
  %v267 = vld [vmem:[%s1] sm:$0xff]
  %v268 = vld [vmem:[%s1 + $0x8] sm:$0xff]
  %v269 = vld [vmem:[%s1 + $0x10] sm:$0xff]
  %v270 = vld [vmem:[%s1 + $0x18] sm:$0xff]
  %v271 = vld [vmem:[%s1 + $0x20] sm:$0xff]
  %v272 = vld [vmem:[%s1 + $0x28] sm:$0xff]
  %vm273 = vcmask 392192
  %v275 = vsel %vm273, %v11, 0
  %v278 = vsel %vm273, %v12, 0
  %v281 = vsel %vm273, %v13, 0
  %v284 = vsel %vm273, %v14, 0
  %v287 = vsel %vm273, %v15, 0
  %v290 = vsel %vm273, %v16, 0
  %v293 = vsel %vm273, %v17, 0
  %v296 = vsel %vm273, %v18, 0
  %v299 = vsel %vm273, %v19, 0
  %v302 = vsel %vm273, %v20, 0
  %v305 = vsel %vm273, %v21, 0
  %v308 = vsel %vm273, %v22, 0
  %v311 = vsel %vm273, %v23, 0
  %v314 = vsel %vm273, %v24, 0
  %v317 = vsel %vm273, %v25, 0
  %v320 = vsel %vm273, %v26, 0
  %v323 = vsel %vm273, %v27, 0
  %v326 = vsel %vm273, %v28, 0
  %v329 = vsel %vm273, %v29, 0
  %v332 = vsel %vm273, %v30, 0
  %v335 = vsel %vm273, %v31, 0
  %v338 = vsel %vm273, %v32, 0
  %v341 = vsel %vm273, %v33, 0
  %v344 = vsel %vm273, %v34, 0
  %v347 = vsel %vm273, %v35, 0
  %v350 = vsel %vm273, %v36, 0
  %v353 = vsel %vm273, %v37, 0
  %v356 = vsel %vm273, %v38, 0
  %v359 = vsel %vm273, %v39, 0
  %v362 = vsel %vm273, %v40, 0
  %v365 = vsel %vm273, %v41, 0
  %v368 = vsel %vm273, %v42, 0
  %v371 = vsel %vm273, %v43, 0
  %v374 = vsel %vm273, %v44, 0
  %v377 = vsel %vm273, %v45, 0
  %v380 = vsel %vm273, %v46, 0
  %v383 = vsel %vm273, %v47, 0
  %v386 = vsel %vm273, %v48, 0
  %v389 = vsel %vm273, %v49, 0
  %v392 = vsel %vm273, %v50, 0
  %v395 = vsel %vm273, %v51, 0
  %v398 = vsel %vm273, %v52, 0
  %v401 = vsel %vm273, %v53, 0
  %v404 = vsel %vm273, %v54, 0
  %v407 = vsel %vm273, %v55, 0
  %v410 = vsel %vm273, %v56, 0
  %v413 = vsel %vm273, %v57, 0
  %v416 = vsel %vm273, %v58, 0
  %v419 = vsel %vm273, %v59, 0
  %v422 = vsel %vm273, %v60, 0
  %v425 = vsel %vm273, %v61, 0
  %v428 = vsel %vm273, %v62, 0
  %v431 = vsel %vm273, %v63, 0
  %v434 = vsel %vm273, %v64, 0
  %v437 = vsel %vm273, %v65, 0
  %v440 = vsel %vm273, %v66, 0
  %v443 = vsel %vm273, %v67, 0
  %v446 = vsel %vm273, %v68, 0
  %v449 = vsel %vm273, %v69, 0
  %v452 = vsel %vm273, %v70, 0
  %v455 = vsel %vm273, %v71, 0
  %v458 = vsel %vm273, %v72, 0
  %v461 = vsel %vm273, %v73, 0
  %v464 = vsel %vm273, %v74, 0
  %v467 = vsel %vm273, %v75, 0
  %v470 = vsel %vm273, %v76, 0
  %v473 = vsel %vm273, %v77, 0
  %v476 = vsel %vm273, %v78, 0
  %v479 = vsel %vm273, %v79, 0
  %v482 = vsel %vm273, %v80, 0
  %v485 = vsel %vm273, %v81, 0
  %v488 = vsel %vm273, %v82, 0
  %v491 = vsel %vm273, %v83, 0
  %v494 = vsel %vm273, %v84, 0
  %v497 = vsel %vm273, %v85, 0
  %v500 = vsel %vm273, %v86, 0
  %v503 = vsel %vm273, %v87, 0
  %v506 = vsel %vm273, %v88, 0
  %v509 = vsel %vm273, %v89, 0
  %v512 = vsel %vm273, %v90, 0
  %v515 = vsel %vm273, %v91, 0
  %v518 = vsel %vm273, %v92, 0
  %v521 = vsel %vm273, %v93, 0
  %v524 = vsel %vm273, %v94, 0
  %v527 = vsel %vm273, %v95, 0
  %v530 = vsel %vm273, %v96, 0
  %v533 = vsel %vm273, %v97, 0
  %v536 = vsel %vm273, %v98, 0
  %v539 = vsel %vm273, %v99, 0
  %v542 = vsel %vm273, %v100, 0
  %v545 = vsel %vm273, %v101, 0
  %v548 = vsel %vm273, %v102, 0
  %v551 = vsel %vm273, %v103, 0
  %v554 = vsel %vm273, %v104, 0
  %v557 = vsel %vm273, %v105, 0
  %v560 = vsel %vm273, %v106, 0
  %v563 = vsel %vm273, %v107, 0
  %v566 = vsel %vm273, %v108, 0
  %v569 = vsel %vm273, %v109, 0
  %v572 = vsel %vm273, %v110, 0
  %v575 = vsel %vm273, %v111, 0
  %v578 = vsel %vm273, %v112, 0
  %v581 = vsel %vm273, %v113, 0
  %v584 = vsel %vm273, %v114, 0
  %v587 = vsel %vm273, %v115, 0
  %v590 = vsel %vm273, %v116, 0
  %v593 = vsel %vm273, %v117, 0
  %v596 = vsel %vm273, %v118, 0
  %v599 = vsel %vm273, %v119, 0
  %v602 = vsel %vm273, %v120, 0
  %v605 = vsel %vm273, %v121, 0
  %v608 = vsel %vm273, %v122, 0
  %v611 = vsel %vm273, %v123, 0
  %v614 = vsel %vm273, %v124, 0
  %v617 = vsel %vm273, %v125, 0
  %v620 = vsel %vm273, %v126, 0
  %v623 = vsel %vm273, %v127, 0
  %v626 = vsel %vm273, %v128, 0
  %v629 = vsel %vm273, %v129, 0
  %v632 = vsel %vm273, %v130, 0
  %v635 = vsel %vm273, %v131, 0
  %v638 = vsel %vm273, %v132, 0
  %v641 = vsel %vm273, %v133, 0
  %v644 = vsel %vm273, %v134, 0
  %v647 = vsel %vm273, %v135, 0
  %v650 = vsel %vm273, %v136, 0
  %v653 = vsel %vm273, %v137, 0
  %v656 = vsel %vm273, %v138, 0
  %v659 = vsel %vm273, %v139, 0
  %v662 = vsel %vm273, %v140, 0
  %v665 = vsel %vm273, %v141, 0
  %v668 = vsel %vm273, %v142, 0
  %v671 = vsel %vm273, %v143, 0
  %v674 = vsel %vm273, %v144, 0
  %v677 = vsel %vm273, %v145, 0
  %v680 = vsel %vm273, %v146, 0
  %v683 = vsel %vm273, %v147, 0
  %v686 = vsel %vm273, %v148, 0
  %v689 = vsel %vm273, %v149, 0
  %v692 = vsel %vm273, %v150, 0
  %v695 = vsel %vm273, %v151, 0
  %v698 = vsel %vm273, %v152, 0
  %v701 = vsel %vm273, %v153, 0
  %v704 = vsel %vm273, %v154, 0
  %v707 = vsel %vm273, %v155, 0
  %v710 = vsel %vm273, %v156, 0
  %v713 = vsel %vm273, %v157, 0
  %v716 = vsel %vm273, %v158, 0
  %v719 = vsel %vm273, %v159, 0
  %v722 = vsel %vm273, %v160, 0
  %v725 = vsel %vm273, %v161, 0
  %v728 = vsel %vm273, %v162, 0
  %v731 = vsel %vm273, %v163, 0
  %v734 = vsel %vm273, %v164, 0
  %v737 = vsel %vm273, %v165, 0
  %v740 = vsel %vm273, %v166, 0
  %v743 = vsel %vm273, %v167, 0
  %v746 = vsel %vm273, %v168, 0
  %v749 = vsel %vm273, %v169, 0
  %v752 = vsel %vm273, %v170, 0
  %v755 = vsel %vm273, %v171, 0
  %v758 = vsel %vm273, %v172, 0
  %v761 = vsel %vm273, %v173, 0
  %v764 = vsel %vm273, %v174, 0
  %v767 = vsel %vm273, %v175, 0
  %v770 = vsel %vm273, %v176, 0
  %v773 = vsel %vm273, %v177, 0
  %v776 = vsel %vm273, %v178, 0
  %v779 = vsel %vm273, %v179, 0
  %v782 = vsel %vm273, %v180, 0
  %v785 = vsel %vm273, %v181, 0
  %v788 = vsel %vm273, %v182, 0
  %v791 = vsel %vm273, %v183, 0
  %v794 = vsel %vm273, %v184, 0
  %v797 = vsel %vm273, %v185, 0
  %v800 = vsel %vm273, %v186, 0
  %v803 = vsel %vm273, %v187, 0
  %v806 = vsel %vm273, %v188, 0
  %v809 = vsel %vm273, %v189, 0
  %v812 = vsel %vm273, %v190, 0
  %v815 = vsel %vm273, %v191, 0
  %v818 = vsel %vm273, %v192, 0
  %v821 = vsel %vm273, %v193, 0
  %v824 = vsel %vm273, %v194, 0
  %v827 = vsel %vm273, %v195, 0
  %v830 = vsel %vm273, %v196, 0
  %v833 = vsel %vm273, %v197, 0
  %v836 = vsel %vm273, %v198, 0
  %v839 = vsel %vm273, %v199, 0
  %v842 = vsel %vm273, %v200, 0
  %v845 = vsel %vm273, %v201, 0
  %v848 = vsel %vm273, %v202, 0
  %v851 = vsel %vm273, %v203, 0
  %v854 = vsel %vm273, %v204, 0
  %v857 = vsel %vm273, %v205, 0
  %v860 = vsel %vm273, %v206, 0
  %v863 = vsel %vm273, %v207, 0
  %v866 = vsel %vm273, %v208, 0
  %v869 = vsel %vm273, %v209, 0
  %v872 = vsel %vm273, %v210, 0
  %v875 = vsel %vm273, %v211, 0
  %v878 = vsel %vm273, %v212, 0
  %v881 = vsel %vm273, %v213, 0
  %v884 = vsel %vm273, %v214, 0
  %v887 = vsel %vm273, %v215, 0
  %v890 = vsel %vm273, %v216, 0
  %v893 = vsel %vm273, %v217, 0
  %v896 = vsel %vm273, %v218, 0
  %v899 = vsel %vm273, %v219, 0
  %v902 = vsel %vm273, %v220, 0
  %v905 = vsel %vm273, %v221, 0
  %v908 = vsel %vm273, %v222, 0
  %v911 = vsel %vm273, %v223, 0
  %v914 = vsel %vm273, %v224, 0
  %v917 = vsel %vm273, %v225, 0
  %v920 = vsel %vm273, %v226, 0
  %v923 = vsel %vm273, %v227, 0
  %v926 = vsel %vm273, %v228, 0
  %v929 = vsel %vm273, %v229, 0
  %v932 = vsel %vm273, %v230, 0
  %v935 = vsel %vm273, %v231, 0
  %v938 = vsel %vm273, %v232, 0
  %v941 = vsel %vm273, %v233, 0
  %v944 = vsel %vm273, %v234, 0
  %v947 = vsel %vm273, %v235, 0
  %v950 = vsel %vm273, %v236, 0
  %v953 = vsel %vm273, %v237, 0
  %v956 = vsel %vm273, %v238, 0
  %v959 = vsel %vm273, %v239, 0
  %v962 = vsel %vm273, %v240, 0
  %v965 = vsel %vm273, %v241, 0
  %v968 = vsel %vm273, %v242, 0
  %v971 = vsel %vm273, %v243, 0
  %v974 = vsel %vm273, %v244, 0
  %v977 = vsel %vm273, %v245, 0
  %v980 = vsel %vm273, %v246, 0
  %v983 = vsel %vm273, %v247, 0
  %v986 = vsel %vm273, %v248, 0
  %v989 = vsel %vm273, %v249, 0
  %v992 = vsel %vm273, %v250, 0
  %v995 = vsel %vm273, %v251, 0
  %v998 = vsel %vm273, %v252, 0
  %v1001 = vsel %vm273, %v253, 0
  %v1004 = vsel %vm273, %v254, 0
  %v1007 = vsel %vm273, %v255, 0
  %v1010 = vsel %vm273, %v256, 0
  %v1013 = vsel %vm273, %v257, 0
  %v1016 = vsel %vm273, %v258, 0
  %v1019 = vsel %vm273, %v259, 0
  %v1022 = vsel %vm273, %v260, 0
  %v1025 = vsel %vm273, %v261, 0
  %v1028 = vsel %vm273, %v262, 0
  %v1031 = vsel %vm273, %v263, 0
  %v1034 = vsel %vm273, %v264, 0
  %v1037 = vsel %vm273, %v265, 0
  %v1040 = vsel %vm273, %v266, 0
  %1042 = vmatprep.subr.mxu0 0.0
  %1043 = vmatpush1.msra.mxu0 %v267
  %1044 = vmatprep.subr.mxu0 0.0
  %1045 = vmatpush1.msra.mxu0 %v268
  %1046 = vmatprep.subr.mxu0 0.0
  %1047 = vmatpush1.msra.mxu0 %v269
  %1048 = vmatprep.subr.mxu0 0.0
  %1049 = vmatpush1.msra.mxu0 %v270
  %1050 = vmatprep.subr.mxu0 0.0
  %1051 = vmatpush1.msra.mxu0 %v271
  %1052 = vmatprep.subr.mxu0 0.0
  %1053 = vmatpush1.msra.mxu0 %v272
  %1054 = vmatprep.subr.mxu0 0.0
  %1055 = vmatpush1.msra.mxu0 0.0
  %1056 = vmatprep.subr.mxu0 0.0
  %1057 = vmatpush1.msra.mxu0 0.0
  %1058 = vmatprep.subr.mxu0 0.0
  %1059 = vmatpush1.msra.mxu0 0.0
  %1060 = vmatprep.subr.mxu0 0.0
  %1061 = vmatpush1.msra.mxu0 0.0
  %1062 = vmatprep.subr.mxu0 0.0
  %1063 = vmatpush1.msra.mxu0 0.0
  %1064 = vmatprep.subr.mxu0 0.0
  %1065 = vmatpush1.msra.mxu0 0.0
  %1066 = vmatprep.subr.mxu0 0.0
  %1067 = vmatpush1.msra.mxu0 0.0
  %1068 = vmatprep.subr.mxu0 0.0
  %1069 = vmatpush1.msra.mxu0 0.0
  %1070 = vmatprep.subr.mxu0 0.0
  %1071 = vmatpush1.msra.mxu0 0.0
  %1072 = vmatprep.subr.mxu0 0.0
  %1073 = vmatpush1.msra.mxu0 0.0
  %1074 = vmatprep.subr.mxu0 0.0
  %1075 = vmatpush1.msra.mxu0 0.0
  %1076 = vmatprep.subr.mxu0 0.0
  %1077 = vmatpush1.msra.mxu0 0.0
  %1078 = vmatprep.subr.mxu0 0.0
  %1079 = vmatpush1.msra.mxu0 0.0
  %1080 = vmatprep.subr.mxu0 0.0
  %1081 = vmatpush1.msra.mxu0 0.0
  %1082 = vmatprep.subr.mxu0 0.0
  %1083 = vmatpush1.msra.mxu0 0.0
  %1084 = vmatprep.subr.mxu0 0.0
  %1085 = vmatpush1.msra.mxu0 0.0
  %1086 = vmatprep.subr.mxu0 0.0
  %1087 = vmatpush1.msra.mxu0 0.0
  %1088 = vmatprep.subr.mxu0 0.0
  %1089 = vmatpush1.msra.mxu0 0.0
  %1090 = vmatprep.subr.mxu0 0.0
  %1091 = vmatpush1.msra.mxu0 0.0
  %1092 = vmatprep.subr.mxu0 0.0
  %1093 = vmatpush1.msra.mxu0 0.0
  %1094 = vmatprep.subr.mxu0 0.0
  %1095 = vmatpush1.msra.mxu0 0.0
  %1096 = vmatprep.subr.mxu0 0.0
  %1097 = vmatpush1.msra.mxu0 0.0
  %1098 = vmatprep.subr.mxu0 0.0
  %1099 = vmatpush1.msra.mxu0 0.0
  %1100 = vmatprep.subr.mxu0 0.0
  %1101 = vmatpush1.msra.mxu0 0.0
  %1102 = vmatprep.subr.mxu0 0.0
  %1103 = vmatpush1.msra.mxu0 0.0
  %1104 = vmatprep.subr.mxu0 0.0
  %1105 = vmatpush1.msra.mxu0 0.0
  %1106 = vmatprep.mubr.f32.mxu0 0.0
  %1107 = vmatmul.mubr.f32.gmra.mrb[0].mxu0 %v275
  %v1108 = vpop.f32.mrb[0].mxu0
  %v1109 = vadd.f32 0.0, %v1108
  %v1110 = vpop.f32.mrb[0].mxu0
  %1111 = vmatprep.mubr.f32.mxu0 0.0
  %1112 = vmatmul.mubr.f32.gmra.mrb[0].mxu0 %v278
  %v1113 = vpop.f32.mrb[0].mxu0
  %v1114 = vadd.f32 0.0, %v1113
  %v1115 = vpop.f32.mrb[0].mxu0
  %1116 = vmatprep.mubr.f32.mxu0 0.0
  %1117 = vmatmul.mubr.f32.gmra.mrb[0].mxu0 %v281
  %v1118 = vpop.f32.mrb[0].mxu0
  %v1119 = vadd.f32 0.0, %v1118
  %v1120 = vpop.f32.mrb[0].mxu0
  %1121 = vmatprep.mubr.f32.mxu0 0.0
  %1122 = vmatmul.mubr.f32.gmra.mrb[0].mxu0 %v284
  %v1123 = vpop.f32.mrb[0].mxu0
  %v1124 = vadd.f32 0.0, %v1123
  %v1125 = vpop.f32.mrb[0].mxu0
  %1126 = vmatprep.mubr.f32.mxu0 0.0
  %1127 = vmatmul.mubr.f32.gmra.mrb[0].mxu0 %v287
  %v1128 = vpop.f32.mrb[0].mxu0
  %v1129 = vadd.f32 0.0, %v1128
  %v1130 = vpop.f32.mrb[0].mxu0
  %1131 = vmatprep.mubr.f32.mxu0 0.0
  %1132 = vmatmul.mubr.f32.gmra.mrb[0].mxu0 %v290
  %v1133 = vpop.f32.mrb[0].mxu0
  %v1134 = vadd.f32 0.0, %v1133
  %v1135 = vpop.f32.mrb[0].mxu0
  %1136 = vmatprep.mubr.f32.mxu0 0.0
  %1137 = vmatmul.mubr.f32.gmra.mrb[0].mxu0 %v293
  %v1138 = vpop.f32.mrb[0].mxu0
  %v1139 = vadd.f32 0.0, %v1138
  %v1140 = vpop.f32.mrb[0].mxu0
  %1141 = vmatprep.mubr.f32.mxu0 0.0
  %1142 = vmatmul.mubr.f32.gmra.mrb[0].mxu0 %v296
  %v1143 = vpop.f32.mrb[0].mxu0
  %v1144 = vadd.f32 0.0, %v1143
  %v1145 = vpop.f32.mrb[0].mxu0
  %1146 = vmatprep.mubr.f32.mxu0 0.0
  %1147 = vmatmul.mubr.f32.gmra.mrb[0].mxu0 %v299
  %v1148 = vpop.f32.mrb[0].mxu0
  %v1149 = vadd.f32 0.0, %v1148
  %v1150 = vpop.f32.mrb[0].mxu0
  %1151 = vmatprep.mubr.f32.mxu0 0.0
  %1152 = vmatmul.mubr.f32.gmra.mrb[0].mxu0 %v302
  %v1153 = vpop.f32.mrb[0].mxu0
  %v1154 = vadd.f32 0.0, %v1153
  %v1155 = vpop.f32.mrb[0].mxu0
  %1156 = vmatprep.mubr.f32.mxu0 0.0
  %1157 = vmatmul.mubr.f32.gmra.mrb[0].mxu0 %v305
  %v1158 = vpop.f32.mrb[0].mxu0
  %v1159 = vadd.f32 0.0, %v1158
  %v1160 = vpop.f32.mrb[0].mxu0
  %1161 = vmatprep.mubr.f32.mxu0 0.0
  %1162 = vmatmul.mubr.f32.gmra.mrb[0].mxu0 %v308
  %v1163 = vpop.f32.mrb[0].mxu0
  %v1164 = vadd.f32 0.0, %v1163
  %v1165 = vpop.f32.mrb[0].mxu0
  %1166 = vmatprep.mubr.f32.mxu0 0.0
  %1167 = vmatmul.mubr.f32.gmra.mrb[0].mxu0 %v311
  %v1168 = vpop.f32.mrb[0].mxu0
  %v1169 = vadd.f32 0.0, %v1168
  %v1170 = vpop.f32.mrb[0].mxu0
  %1171 = vmatprep.mubr.f32.mxu0 0.0
  %1172 = vmatmul.mubr.f32.gmra.mrb[0].mxu0 %v314
  %v1173 = vpop.f32.mrb[0].mxu0
  %v1174 = vadd.f32 0.0, %v1173
  %v1175 = vpop.f32.mrb[0].mxu0
  %1176 = vmatprep.mubr.f32.mxu0 0.0
  %1177 = vmatmul.mubr.f32.gmra.mrb[0].mxu0 %v317
  %v1178 = vpop.f32.mrb[0].mxu0
  %v1179 = vadd.f32 0.0, %v1178
  %v1180 = vpop.f32.mrb[0].mxu0
  %1181 = vmatprep.mubr.f32.mxu0 0.0
  %1182 = vmatmul.mubr.f32.gmra.mrb[0].mxu0 %v320
  %v1183 = vpop.f32.mrb[0].mxu0
  %v1184 = vadd.f32 0.0, %v1183
  %v1185 = vpop.f32.mrb[0].mxu0
  %1186 = vmatprep.mubr.f32.mxu0 0.0
  %1187 = vmatmul.mubr.f32.gmra.mrb[0].mxu0 %v323
  %v1188 = vpop.f32.mrb[0].mxu0
  %v1189 = vadd.f32 0.0, %v1188
  %v1190 = vpop.f32.mrb[0].mxu0
  %1191 = vmatprep.mubr.f32.mxu0 0.0
  %1192 = vmatmul.mubr.f32.gmra.mrb[0].mxu0 %v326
  %v1193 = vpop.f32.mrb[0].mxu0
  %v1194 = vadd.f32 0.0, %v1193
  %v1195 = vpop.f32.mrb[0].mxu0
  %1196 = vmatprep.mubr.f32.mxu0 0.0
  %1197 = vmatmul.mubr.f32.gmra.mrb[0].mxu0 %v329
  %v1198 = vpop.f32.mrb[0].mxu0
  %v1199 = vadd.f32 0.0, %v1198
  %v1200 = vpop.f32.mrb[0].mxu0
  %1201 = vmatprep.mubr.f32.mxu0 0.0
  %1202 = vmatmul.mubr.f32.gmra.mrb[0].mxu0 %v332
  %v1203 = vpop.f32.mrb[0].mxu0
  %v1204 = vadd.f32 0.0, %v1203
  %v1205 = vpop.f32.mrb[0].mxu0
  %1206 = vmatprep.mubr.f32.mxu0 0.0
  %1207 = vmatmul.mubr.f32.gmra.mrb[0].mxu0 %v335
  %v1208 = vpop.f32.mrb[0].mxu0
  %v1209 = vadd.f32 0.0, %v1208
  %v1210 = vpop.f32.mrb[0].mxu0
  %1211 = vmatprep.mubr.f32.mxu0 0.0
  %1212 = vmatmul.mubr.f32.gmra.mrb[0].mxu0 %v338
  %v1213 = vpop.f32.mrb[0].mxu0
  %v1214 = vadd.f32 0.0, %v1213
  %v1215 = vpop.f32.mrb[0].mxu0
  %1216 = vmatprep.mubr.f32.mxu0 0.0
  %1217 = vmatmul.mubr.f32.gmra.mrb[0].mxu0 %v341
  %v1218 = vpop.f32.mrb[0].mxu0
  %v1219 = vadd.f32 0.0, %v1218
  %v1220 = vpop.f32.mrb[0].mxu0
  %1221 = vmatprep.mubr.f32.mxu0 0.0
  %1222 = vmatmul.mubr.f32.gmra.mrb[0].mxu0 %v344
  %v1223 = vpop.f32.mrb[0].mxu0
  %v1224 = vadd.f32 0.0, %v1223
  %v1225 = vpop.f32.mrb[0].mxu0
  %1226 = vmatprep.mubr.f32.mxu0 0.0
  %1227 = vmatmul.mubr.f32.gmra.mrb[0].mxu0 %v347
  %v1228 = vpop.f32.mrb[0].mxu0
  %v1229 = vadd.f32 0.0, %v1228
  %v1230 = vpop.f32.mrb[0].mxu0
  %1231 = vmatprep.mubr.f32.mxu0 0.0
  %1232 = vmatmul.mubr.f32.gmra.mrb[0].mxu0 %v350
  %v1233 = vpop.f32.mrb[0].mxu0
  %v1234 = vadd.f32 0.0, %v1233
  %v1235 = vpop.f32.mrb[0].mxu0
  %1236 = vmatprep.mubr.f32.mxu0 0.0
  %1237 = vmatmul.mubr.f32.gmra.mrb[0].mxu0 %v353
  %v1238 = vpop.f32.mrb[0].mxu0
  %v1239 = vadd.f32 0.0, %v1238
  %v1240 = vpop.f32.mrb[0].mxu0
  %1241 = vmatprep.mubr.f32.mxu0 0.0
  %1242 = vmatmul.mubr.f32.gmra.mrb[0].mxu0 %v356
  %v1243 = vpop.f32.mrb[0].mxu0
  %v1244 = vadd.f32 0.0, %v1243
  %v1245 = vpop.f32.mrb[0].mxu0
  %1246 = vmatprep.mubr.f32.mxu0 0.0
  %1247 = vmatmul.mubr.f32.gmra.mrb[0].mxu0 %v359
  %v1248 = vpop.f32.mrb[0].mxu0
  %v1249 = vadd.f32 0.0, %v1248
  %v1250 = vpop.f32.mrb[0].mxu0
  %1251 = vmatprep.mubr.f32.mxu0 0.0
  %1252 = vmatmul.mubr.f32.gmra.mrb[0].mxu0 %v362
  %v1253 = vpop.f32.mrb[0].mxu0
  %v1254 = vadd.f32 0.0, %v1253
  %v1255 = vpop.f32.mrb[0].mxu0
  %1256 = vmatprep.mubr.f32.mxu0 0.0
  %1257 = vmatmul.mubr.f32.gmra.mrb[0].mxu0 %v365
  %v1258 = vpop.f32.mrb[0].mxu0
  %v1259 = vadd.f32 0.0, %v1258
  %v1260 = vpop.f32.mrb[0].mxu0
  %1261 = vmatprep.mubr.f32.mxu0 0.0
  %1262 = vmatmul.mubr.f32.gmra.mrb[0].mxu0 %v368
  %v1263 = vpop.f32.mrb[0].mxu0
  %v1264 = vadd.f32 0.0, %v1263
  %v1265 = vpop.f32.mrb[0].mxu0
  %1266 = vmatprep.mubr.f32.mxu0 0.0
  %1267 = vmatmul.mubr.f32.gmra.mrb[0].mxu0 %v371
  %v1268 = vpop.f32.mrb[0].mxu0
  %v1269 = vadd.f32 0.0, %v1268
  %v1270 = vpop.f32.mrb[0].mxu0
  %1271 = vmatprep.mubr.f32.mxu0 0.0
  %1272 = vmatmul.mubr.f32.gmra.mrb[0].mxu0 %v374
  %v1273 = vpop.f32.mrb[0].mxu0
  %v1274 = vadd.f32 0.0, %v1273
  %v1275 = vpop.f32.mrb[0].mxu0
  %1276 = vmatprep.mubr.f32.mxu0 0.0
  %1277 = vmatmul.mubr.f32.gmra.mrb[0].mxu0 %v377
  %v1278 = vpop.f32.mrb[0].mxu0
  %v1279 = vadd.f32 0.0, %v1278
  %v1280 = vpop.f32.mrb[0].mxu0
  %1281 = vmatprep.mubr.f32.mxu0 0.0
  %1282 = vmatmul.mubr.f32.gmra.mrb[0].mxu0 %v380
  %v1283 = vpop.f32.mrb[0].mxu0
  %v1284 = vadd.f32 0.0, %v1283
  %v1285 = vpop.f32.mrb[0].mxu0
  %1286 = vmatprep.mubr.f32.mxu0 0.0
  %1287 = vmatmul.mubr.f32.gmra.mrb[0].mxu0 %v383
  %v1288 = vpop.f32.mrb[0].mxu0
  %v1289 = vadd.f32 0.0, %v1288
  %v1290 = vpop.f32.mrb[0].mxu0
  %1291 = vmatprep.mubr.f32.mxu0 0.0
  %1292 = vmatmul.mubr.f32.gmra.mrb[0].mxu0 %v386
  %v1293 = vpop.f32.mrb[0].mxu0
  %v1294 = vadd.f32 0.0, %v1293
  %v1295 = vpop.f32.mrb[0].mxu0
  %1296 = vmatprep.mubr.f32.mxu0 0.0
  %1297 = vmatmul.mubr.f32.gmra.mrb[0].mxu0 %v389
  %v1298 = vpop.f32.mrb[0].mxu0
  %v1299 = vadd.f32 0.0, %v1298
  %v1300 = vpop.f32.mrb[0].mxu0
  %1301 = vmatprep.mubr.f32.mxu0 0.0
  %1302 = vmatmul.mubr.f32.gmra.mrb[0].mxu0 %v392
  %v1303 = vpop.f32.mrb[0].mxu0
  %v1304 = vadd.f32 0.0, %v1303
  %v1305 = vpop.f32.mrb[0].mxu0
  %1306 = vmatprep.mubr.f32.mxu0 0.0
  %1307 = vmatmul.mubr.f32.gmra.mrb[0].mxu0 %v395
  %v1308 = vpop.f32.mrb[0].mxu0
  %v1309 = vadd.f32 0.0, %v1308
  %v1310 = vpop.f32.mrb[0].mxu0
  %1311 = vmatprep.mubr.f32.mxu0 0.0
  %1312 = vmatmul.mubr.f32.gmra.mrb[0].mxu0 %v398
  %v1313 = vpop.f32.mrb[0].mxu0
  %v1314 = vadd.f32 0.0, %v1313
  %v1315 = vpop.f32.mrb[0].mxu0
  %1316 = vmatprep.mubr.f32.mxu0 0.0
  %1317 = vmatmul.mubr.f32.gmra.mrb[0].mxu0 %v401
  %v1318 = vpop.f32.mrb[0].mxu0
  %v1319 = vadd.f32 0.0, %v1318
  %v1320 = vpop.f32.mrb[0].mxu0
  %1321 = vmatprep.mubr.f32.mxu0 0.0
  %1322 = vmatmul.mubr.f32.gmra.mrb[0].mxu0 %v404
  %v1323 = vpop.f32.mrb[0].mxu0
  %v1324 = vadd.f32 0.0, %v1323
  %v1325 = vpop.f32.mrb[0].mxu0
  %1326 = vmatprep.mubr.f32.mxu0 0.0
  %1327 = vmatmul.mubr.f32.gmra.mrb[0].mxu0 %v407
  %v1328 = vpop.f32.mrb[0].mxu0
  %v1329 = vadd.f32 0.0, %v1328
  %v1330 = vpop.f32.mrb[0].mxu0
  %1331 = vmatprep.mubr.f32.mxu0 0.0
  %1332 = vmatmul.mubr.f32.gmra.mrb[0].mxu0 %v410
  %v1333 = vpop.f32.mrb[0].mxu0
  %v1334 = vadd.f32 0.0, %v1333
  %v1335 = vpop.f32.mrb[0].mxu0
  %1336 = vmatprep.mubr.f32.mxu0 0.0
  %1337 = vmatmul.mubr.f32.gmra.mrb[0].mxu0 %v413
  %v1338 = vpop.f32.mrb[0].mxu0
  %v1339 = vadd.f32 0.0, %v1338
  %v1340 = vpop.f32.mrb[0].mxu0
  %1341 = vmatprep.mubr.f32.mxu0 0.0
  %1342 = vmatmul.mubr.f32.gmra.mrb[0].mxu0 %v416
  %v1343 = vpop.f32.mrb[0].mxu0
  %v1344 = vadd.f32 0.0, %v1343
  %v1345 = vpop.f32.mrb[0].mxu0
  %1346 = vmatprep.mubr.f32.mxu0 0.0
  %1347 = vmatmul.mubr.f32.gmra.mrb[0].mxu0 %v419
  %v1348 = vpop.f32.mrb[0].mxu0
  %v1349 = vadd.f32 0.0, %v1348
  %v1350 = vpop.f32.mrb[0].mxu0
  %1351 = vmatprep.mubr.f32.mxu0 0.0
  %1352 = vmatmul.mubr.f32.gmra.mrb[0].mxu0 %v422
  %v1353 = vpop.f32.mrb[0].mxu0
  %v1354 = vadd.f32 0.0, %v1353
  %v1355 = vpop.f32.mrb[0].mxu0
  %1356 = vmatprep.mubr.f32.mxu0 0.0
  %1357 = vmatmul.mubr.f32.gmra.mrb[0].mxu0 %v425
  %v1358 = vpop.f32.mrb[0].mxu0
  %v1359 = vadd.f32 0.0, %v1358
  %v1360 = vpop.f32.mrb[0].mxu0
  %1361 = vmatprep.mubr.f32.mxu0 0.0
  %1362 = vmatmul.mubr.f32.gmra.mrb[0].mxu0 %v428
  %v1363 = vpop.f32.mrb[0].mxu0
  %v1364 = vadd.f32 0.0, %v1363
  %v1365 = vpop.f32.mrb[0].mxu0
  %1366 = vmatprep.mubr.f32.mxu0 0.0
  %1367 = vmatmul.mubr.f32.gmra.mrb[0].mxu0 %v431
  %v1368 = vpop.f32.mrb[0].mxu0
  %v1369 = vadd.f32 0.0, %v1368
  %v1370 = vpop.f32.mrb[0].mxu0
  %1371 = vmatprep.mubr.f32.mxu0 0.0
  %1372 = vmatmul.mubr.f32.gmra.mrb[0].mxu0 %v434
  %v1373 = vpop.f32.mrb[0].mxu0
  %v1374 = vadd.f32 0.0, %v1373
  %v1375 = vpop.f32.mrb[0].mxu0
  %1376 = vmatprep.mubr.f32.mxu0 0.0
  %1377 = vmatmul.mubr.f32.gmra.mrb[0].mxu0 %v437
  %v1378 = vpop.f32.mrb[0].mxu0
  %v1379 = vadd.f32 0.0, %v1378
  %v1380 = vpop.f32.mrb[0].mxu0
  %1381 = vmatprep.mubr.f32.mxu0 0.0
  %1382 = vmatmul.mubr.f32.gmra.mrb[0].mxu0 %v440
  %v1383 = vpop.f32.mrb[0].mxu0
  %v1384 = vadd.f32 0.0, %v1383
  %v1385 = vpop.f32.mrb[0].mxu0
  %1386 = vmatprep.mubr.f32.mxu0 0.0
  %1387 = vmatmul.mubr.f32.gmra.mrb[0].mxu0 %v443
  %v1388 = vpop.f32.mrb[0].mxu0
  %v1389 = vadd.f32 0.0, %v1388
  %v1390 = vpop.f32.mrb[0].mxu0
  %1391 = vmatprep.mubr.f32.mxu0 0.0
  %1392 = vmatmul.mubr.f32.gmra.mrb[0].mxu0 %v446
  %v1393 = vpop.f32.mrb[0].mxu0
  %v1394 = vadd.f32 0.0, %v1393
  %v1395 = vpop.f32.mrb[0].mxu0
  %1396 = vmatprep.mubr.f32.mxu0 0.0
  %1397 = vmatmul.mubr.f32.gmra.mrb[0].mxu0 %v449
  %v1398 = vpop.f32.mrb[0].mxu0
  %v1399 = vadd.f32 0.0, %v1398
  %v1400 = vpop.f32.mrb[0].mxu0
  %1401 = vmatprep.mubr.f32.mxu0 0.0
  %1402 = vmatmul.mubr.f32.gmra.mrb[0].mxu0 %v452
  %v1403 = vpop.f32.mrb[0].mxu0
  %v1404 = vadd.f32 0.0, %v1403
  %v1405 = vpop.f32.mrb[0].mxu0
  %1406 = vmatprep.mubr.f32.mxu0 0.0
  %1407 = vmatmul.mubr.f32.gmra.mrb[0].mxu0 %v455
  %v1408 = vpop.f32.mrb[0].mxu0
  %v1409 = vadd.f32 0.0, %v1408
  %v1410 = vpop.f32.mrb[0].mxu0
  %1411 = vmatprep.mubr.f32.mxu0 0.0
  %1412 = vmatmul.mubr.f32.gmra.mrb[0].mxu0 %v458
  %v1413 = vpop.f32.mrb[0].mxu0
  %v1414 = vadd.f32 0.0, %v1413
  %v1415 = vpop.f32.mrb[0].mxu0
  %1416 = vmatprep.mubr.f32.mxu0 0.0
  %1417 = vmatmul.mubr.f32.gmra.mrb[0].mxu0 %v461
  %v1418 = vpop.f32.mrb[0].mxu0
  %v1419 = vadd.f32 0.0, %v1418
  %v1420 = vpop.f32.mrb[0].mxu0
  %1421 = vmatprep.mubr.f32.mxu0 0.0
  %1422 = vmatmul.mubr.f32.gmra.mrb[0].mxu0 %v464
  %v1423 = vpop.f32.mrb[0].mxu0
  %v1424 = vadd.f32 0.0, %v1423
  %v1425 = vpop.f32.mrb[0].mxu0
  %1426 = vmatprep.mubr.f32.mxu0 0.0
  %1427 = vmatmul.mubr.f32.gmra.mrb[0].mxu0 %v467
  %v1428 = vpop.f32.mrb[0].mxu0
  %v1429 = vadd.f32 0.0, %v1428
  %v1430 = vpop.f32.mrb[0].mxu0
  %1431 = vmatprep.mubr.f32.mxu0 0.0
  %1432 = vmatmul.mubr.f32.gmra.mrb[0].mxu0 %v470
  %v1433 = vpop.f32.mrb[0].mxu0
  %v1434 = vadd.f32 0.0, %v1433
  %v1435 = vpop.f32.mrb[0].mxu0
  %1436 = vmatprep.mubr.f32.mxu0 0.0
  %1437 = vmatmul.mubr.f32.gmra.mrb[0].mxu0 %v473
  %v1438 = vpop.f32.mrb[0].mxu0
  %v1439 = vadd.f32 0.0, %v1438
  %v1440 = vpop.f32.mrb[0].mxu0
  %1441 = vmatprep.mubr.f32.mxu0 0.0
  %1442 = vmatmul.mubr.f32.gmra.mrb[0].mxu0 %v476
  %v1443 = vpop.f32.mrb[0].mxu0
  %v1444 = vadd.f32 0.0, %v1443
  %v1445 = vpop.f32.mrb[0].mxu0
  %1446 = vmatprep.mubr.f32.mxu0 0.0
  %1447 = vmatmul.mubr.f32.gmra.mrb[0].mxu0 %v479
  %v1448 = vpop.f32.mrb[0].mxu0
  %v1449 = vadd.f32 0.0, %v1448
  %v1450 = vpop.f32.mrb[0].mxu0
  %1451 = vmatprep.mubr.f32.mxu0 0.0
  %1452 = vmatmul.mubr.f32.gmra.mrb[0].mxu0 %v482
  %v1453 = vpop.f32.mrb[0].mxu0
  %v1454 = vadd.f32 0.0, %v1453
  %v1455 = vpop.f32.mrb[0].mxu0
  %1456 = vmatprep.mubr.f32.mxu0 0.0
  %1457 = vmatmul.mubr.f32.gmra.mrb[0].mxu0 %v485
  %v1458 = vpop.f32.mrb[0].mxu0
  %v1459 = vadd.f32 0.0, %v1458
  %v1460 = vpop.f32.mrb[0].mxu0
  %1461 = vmatprep.mubr.f32.mxu0 0.0
  %1462 = vmatmul.mubr.f32.gmra.mrb[0].mxu0 %v488
  %v1463 = vpop.f32.mrb[0].mxu0
  %v1464 = vadd.f32 0.0, %v1463
  %v1465 = vpop.f32.mrb[0].mxu0
  %1466 = vmatprep.mubr.f32.mxu0 0.0
  %1467 = vmatmul.mubr.f32.gmra.mrb[0].mxu0 %v491
  %v1468 = vpop.f32.mrb[0].mxu0
  %v1469 = vadd.f32 0.0, %v1468
  %v1470 = vpop.f32.mrb[0].mxu0
  %1471 = vmatprep.mubr.f32.mxu0 0.0
  %1472 = vmatmul.mubr.f32.gmra.mrb[0].mxu0 %v494
  %v1473 = vpop.f32.mrb[0].mxu0
  %v1474 = vadd.f32 0.0, %v1473
  %v1475 = vpop.f32.mrb[0].mxu0
  %1476 = vmatprep.mubr.f32.mxu0 0.0
  %1477 = vmatmul.mubr.f32.gmra.mrb[0].mxu0 %v497
  %v1478 = vpop.f32.mrb[0].mxu0
  %v1479 = vadd.f32 0.0, %v1478
  %v1480 = vpop.f32.mrb[0].mxu0
  %1481 = vmatprep.mubr.f32.mxu0 0.0
  %1482 = vmatmul.mubr.f32.gmra.mrb[0].mxu0 %v500
  %v1483 = vpop.f32.mrb[0].mxu0
  %v1484 = vadd.f32 0.0, %v1483
  %v1485 = vpop.f32.mrb[0].mxu0
  %1486 = vmatprep.mubr.f32.mxu0 0.0
  %1487 = vmatmul.mubr.f32.gmra.mrb[0].mxu0 %v503
  %v1488 = vpop.f32.mrb[0].mxu0
  %v1489 = vadd.f32 0.0, %v1488
  %v1490 = vpop.f32.mrb[0].mxu0
  %1491 = vmatprep.mubr.f32.mxu0 0.0
  %1492 = vmatmul.mubr.f32.gmra.mrb[0].mxu0 %v506
  %v1493 = vpop.f32.mrb[0].mxu0
  %v1494 = vadd.f32 0.0, %v1493
  %v1495 = vpop.f32.mrb[0].mxu0
  %1496 = vmatprep.mubr.f32.mxu0 0.0
  %1497 = vmatmul.mubr.f32.gmra.mrb[0].mxu0 %v509
  %v1498 = vpop.f32.mrb[0].mxu0
  %v1499 = vadd.f32 0.0, %v1498
  %v1500 = vpop.f32.mrb[0].mxu0
  %1501 = vmatprep.mubr.f32.mxu0 0.0
  %1502 = vmatmul.mubr.f32.gmra.mrb[0].mxu0 %v512
  %v1503 = vpop.f32.mrb[0].mxu0
  %v1504 = vadd.f32 0.0, %v1503
  %v1505 = vpop.f32.mrb[0].mxu0
  %1506 = vmatprep.mubr.f32.mxu0 0.0
  %1507 = vmatmul.mubr.f32.gmra.mrb[0].mxu0 %v515
  %v1508 = vpop.f32.mrb[0].mxu0
  %v1509 = vadd.f32 0.0, %v1508
  %v1510 = vpop.f32.mrb[0].mxu0
  %1511 = vmatprep.mubr.f32.mxu0 0.0
  %1512 = vmatmul.mubr.f32.gmra.mrb[0].mxu0 %v518
  %v1513 = vpop.f32.mrb[0].mxu0
  %v1514 = vadd.f32 0.0, %v1513
  %v1515 = vpop.f32.mrb[0].mxu0
  %1516 = vmatprep.mubr.f32.mxu0 0.0
  %1517 = vmatmul.mubr.f32.gmra.mrb[0].mxu0 %v521
  %v1518 = vpop.f32.mrb[0].mxu0
  %v1519 = vadd.f32 0.0, %v1518
  %v1520 = vpop.f32.mrb[0].mxu0
  %1521 = vmatprep.mubr.f32.mxu0 0.0
  %1522 = vmatmul.mubr.f32.gmra.mrb[0].mxu0 %v524
  %v1523 = vpop.f32.mrb[0].mxu0
  %v1524 = vadd.f32 0.0, %v1523
  %v1525 = vpop.f32.mrb[0].mxu0
  %1526 = vmatprep.mubr.f32.mxu0 0.0
  %1527 = vmatmul.mubr.f32.gmra.mrb[0].mxu0 %v527
  %v1528 = vpop.f32.mrb[0].mxu0
  %v1529 = vadd.f32 0.0, %v1528
  %v1530 = vpop.f32.mrb[0].mxu0
  %1531 = vmatprep.mubr.f32.mxu0 0.0
  %1532 = vmatmul.mubr.f32.gmra.mrb[0].mxu0 %v530
  %v1533 = vpop.f32.mrb[0].mxu0
  %v1534 = vadd.f32 0.0, %v1533
  %v1535 = vpop.f32.mrb[0].mxu0
  %1536 = vmatprep.mubr.f32.mxu0 0.0
  %1537 = vmatmul.mubr.f32.gmra.mrb[0].mxu0 %v533
  %v1538 = vpop.f32.mrb[0].mxu0
  %v1539 = vadd.f32 0.0, %v1538
  %v1540 = vpop.f32.mrb[0].mxu0
  %1541 = vmatprep.mubr.f32.mxu0 0.0
  %1542 = vmatmul.mubr.f32.gmra.mrb[0].mxu0 %v536
  %v1543 = vpop.f32.mrb[0].mxu0
  %v1544 = vadd.f32 0.0, %v1543
  %v1545 = vpop.f32.mrb[0].mxu0
  %1546 = vmatprep.mubr.f32.mxu0 0.0
  %1547 = vmatmul.mubr.f32.gmra.mrb[0].mxu0 %v539
  %v1548 = vpop.f32.mrb[0].mxu0
  %v1549 = vadd.f32 0.0, %v1548
  %v1550 = vpop.f32.mrb[0].mxu0
  %1551 = vmatprep.mubr.f32.mxu0 0.0
  %1552 = vmatmul.mubr.f32.gmra.mrb[0].mxu0 %v542
  %v1553 = vpop.f32.mrb[0].mxu0
  %v1554 = vadd.f32 0.0, %v1553
  %v1555 = vpop.f32.mrb[0].mxu0
  %1556 = vmatprep.mubr.f32.mxu0 0.0
  %1557 = vmatmul.mubr.f32.gmra.mrb[0].mxu0 %v545
  %v1558 = vpop.f32.mrb[0].mxu0
  %v1559 = vadd.f32 0.0, %v1558
  %v1560 = vpop.f32.mrb[0].mxu0
  %1561 = vmatprep.mubr.f32.mxu0 0.0
  %1562 = vmatmul.mubr.f32.gmra.mrb[0].mxu0 %v548
  %v1563 = vpop.f32.mrb[0].mxu0
  %v1564 = vadd.f32 0.0, %v1563
  %v1565 = vpop.f32.mrb[0].mxu0
  %1566 = vmatprep.mubr.f32.mxu0 0.0
  %1567 = vmatmul.mubr.f32.gmra.mrb[0].mxu0 %v551
  %v1568 = vpop.f32.mrb[0].mxu0
  %v1569 = vadd.f32 0.0, %v1568
  %v1570 = vpop.f32.mrb[0].mxu0
  %1571 = vmatprep.mubr.f32.mxu0 0.0
  %1572 = vmatmul.mubr.f32.gmra.mrb[0].mxu0 %v554
  %v1573 = vpop.f32.mrb[0].mxu0
  %v1574 = vadd.f32 0.0, %v1573
  %v1575 = vpop.f32.mrb[0].mxu0
  %1576 = vmatprep.mubr.f32.mxu0 0.0
  %1577 = vmatmul.mubr.f32.gmra.mrb[0].mxu0 %v557
  %v1578 = vpop.f32.mrb[0].mxu0
  %v1579 = vadd.f32 0.0, %v1578
  %v1580 = vpop.f32.mrb[0].mxu0
  %1581 = vmatprep.mubr.f32.mxu0 0.0
  %1582 = vmatmul.mubr.f32.gmra.mrb[0].mxu0 %v560
  %v1583 = vpop.f32.mrb[0].mxu0
  %v1584 = vadd.f32 0.0, %v1583
  %v1585 = vpop.f32.mrb[0].mxu0
  %1586 = vmatprep.mubr.f32.mxu0 0.0
  %1587 = vmatmul.mubr.f32.gmra.mrb[0].mxu0 %v563
  %v1588 = vpop.f32.mrb[0].mxu0
  %v1589 = vadd.f32 0.0, %v1588
  %v1590 = vpop.f32.mrb[0].mxu0
  %1591 = vmatprep.mubr.f32.mxu0 0.0
  %1592 = vmatmul.mubr.f32.gmra.mrb[0].mxu0 %v566
  %v1593 = vpop.f32.mrb[0].mxu0
  %v1594 = vadd.f32 0.0, %v1593
  %v1595 = vpop.f32.mrb[0].mxu0
  %1596 = vmatprep.mubr.f32.mxu0 0.0
  %1597 = vmatmul.mubr.f32.gmra.mrb[0].mxu0 %v569
  %v1598 = vpop.f32.mrb[0].mxu0
  %v1599 = vadd.f32 0.0, %v1598
  %v1600 = vpop.f32.mrb[0].mxu0
  %1601 = vmatprep.mubr.f32.mxu0 0.0
  %1602 = vmatmul.mubr.f32.gmra.mrb[0].mxu0 %v572
  %v1603 = vpop.f32.mrb[0].mxu0
  %v1604 = vadd.f32 0.0, %v1603
  %v1605 = vpop.f32.mrb[0].mxu0
  %1606 = vmatprep.mubr.f32.mxu0 0.0
  %1607 = vmatmul.mubr.f32.gmra.mrb[0].mxu0 %v575
  %v1608 = vpop.f32.mrb[0].mxu0
  %v1609 = vadd.f32 0.0, %v1608
  %v1610 = vpop.f32.mrb[0].mxu0
  %1611 = vmatprep.mubr.f32.mxu0 0.0
  %1612 = vmatmul.mubr.f32.gmra.mrb[0].mxu0 %v578
  %v1613 = vpop.f32.mrb[0].mxu0
  %v1614 = vadd.f32 0.0, %v1613
  %v1615 = vpop.f32.mrb[0].mxu0
  %1616 = vmatprep.mubr.f32.mxu0 0.0
  %1617 = vmatmul.mubr.f32.gmra.mrb[0].mxu0 %v581
  %v1618 = vpop.f32.mrb[0].mxu0
  %v1619 = vadd.f32 0.0, %v1618
  %v1620 = vpop.f32.mrb[0].mxu0
  %1621 = vmatprep.mubr.f32.mxu0 0.0
  %1622 = vmatmul.mubr.f32.gmra.mrb[0].mxu0 %v584
  %v1623 = vpop.f32.mrb[0].mxu0
  %v1624 = vadd.f32 0.0, %v1623
  %v1625 = vpop.f32.mrb[0].mxu0
  %1626 = vmatprep.mubr.f32.mxu0 0.0
  %1627 = vmatmul.mubr.f32.gmra.mrb[0].mxu0 %v587
  %v1628 = vpop.f32.mrb[0].mxu0
  %v1629 = vadd.f32 0.0, %v1628
  %v1630 = vpop.f32.mrb[0].mxu0
  %1631 = vmatprep.mubr.f32.mxu0 0.0
  %1632 = vmatmul.mubr.f32.gmra.mrb[0].mxu0 %v590
  %v1633 = vpop.f32.mrb[0].mxu0
  %v1634 = vadd.f32 0.0, %v1633
  %v1635 = vpop.f32.mrb[0].mxu0
  %1636 = vmatprep.mubr.f32.mxu0 0.0
  %1637 = vmatmul.mubr.f32.gmra.mrb[0].mxu0 %v593
  %v1638 = vpop.f32.mrb[0].mxu0
  %v1639 = vadd.f32 0.0, %v1638
  %v1640 = vpop.f32.mrb[0].mxu0
  %1641 = vmatprep.mubr.f32.mxu0 0.0
  %1642 = vmatmul.mubr.f32.gmra.mrb[0].mxu0 %v596
  %v1643 = vpop.f32.mrb[0].mxu0
  %v1644 = vadd.f32 0.0, %v1643
  %v1645 = vpop.f32.mrb[0].mxu0
  %1646 = vmatprep.mubr.f32.mxu0 0.0
  %1647 = vmatmul.mubr.f32.gmra.mrb[0].mxu0 %v599
  %v1648 = vpop.f32.mrb[0].mxu0
  %v1649 = vadd.f32 0.0, %v1648
  %v1650 = vpop.f32.mrb[0].mxu0
  %1651 = vmatprep.mubr.f32.mxu0 0.0
  %1652 = vmatmul.mubr.f32.gmra.mrb[0].mxu0 %v602
  %v1653 = vpop.f32.mrb[0].mxu0
  %v1654 = vadd.f32 0.0, %v1653
  %v1655 = vpop.f32.mrb[0].mxu0
  %1656 = vmatprep.mubr.f32.mxu0 0.0
  %1657 = vmatmul.mubr.f32.gmra.mrb[0].mxu0 %v605
  %v1658 = vpop.f32.mrb[0].mxu0
  %v1659 = vadd.f32 0.0, %v1658
  %v1660 = vpop.f32.mrb[0].mxu0
  %1661 = vmatprep.mubr.f32.mxu0 0.0
  %1662 = vmatmul.mubr.f32.gmra.mrb[0].mxu0 %v608
  %v1663 = vpop.f32.mrb[0].mxu0
  %v1664 = vadd.f32 0.0, %v1663
  %v1665 = vpop.f32.mrb[0].mxu0
  %1666 = vmatprep.mubr.f32.mxu0 0.0
  %1667 = vmatmul.mubr.f32.gmra.mrb[0].mxu0 %v611
  %v1668 = vpop.f32.mrb[0].mxu0
  %v1669 = vadd.f32 0.0, %v1668
  %v1670 = vpop.f32.mrb[0].mxu0
  %1671 = vmatprep.mubr.f32.mxu0 0.0
  %1672 = vmatmul.mubr.f32.gmra.mrb[0].mxu0 %v614
  %v1673 = vpop.f32.mrb[0].mxu0
  %v1674 = vadd.f32 0.0, %v1673
  %v1675 = vpop.f32.mrb[0].mxu0
  %1676 = vmatprep.mubr.f32.mxu0 0.0
  %1677 = vmatmul.mubr.f32.gmra.mrb[0].mxu0 %v617
  %v1678 = vpop.f32.mrb[0].mxu0
  %v1679 = vadd.f32 0.0, %v1678
  %v1680 = vpop.f32.mrb[0].mxu0
  %1681 = vmatprep.mubr.f32.mxu0 0.0
  %1682 = vmatmul.mubr.f32.gmra.mrb[0].mxu0 %v620
  %v1683 = vpop.f32.mrb[0].mxu0
  %v1684 = vadd.f32 0.0, %v1683
  %v1685 = vpop.f32.mrb[0].mxu0
  %1686 = vmatprep.mubr.f32.mxu0 0.0
  %1687 = vmatmul.mubr.f32.gmra.mrb[0].mxu0 %v623
  %v1688 = vpop.f32.mrb[0].mxu0
  %v1689 = vadd.f32 0.0, %v1688
  %v1690 = vpop.f32.mrb[0].mxu0
  %1691 = vmatprep.mubr.f32.mxu0 0.0
  %1692 = vmatmul.mubr.f32.gmra.mrb[0].mxu0 %v626
  %v1693 = vpop.f32.mrb[0].mxu0
  %v1694 = vadd.f32 0.0, %v1693
  %v1695 = vpop.f32.mrb[0].mxu0
  %1696 = vmatprep.mubr.f32.mxu0 0.0
  %1697 = vmatmul.mubr.f32.gmra.mrb[0].mxu0 %v629
  %v1698 = vpop.f32.mrb[0].mxu0
  %v1699 = vadd.f32 0.0, %v1698
  %v1700 = vpop.f32.mrb[0].mxu0
  %1701 = vmatprep.mubr.f32.mxu0 0.0
  %1702 = vmatmul.mubr.f32.gmra.mrb[0].mxu0 %v632
  %v1703 = vpop.f32.mrb[0].mxu0
  %v1704 = vadd.f32 0.0, %v1703
  %v1705 = vpop.f32.mrb[0].mxu0
  %1706 = vmatprep.mubr.f32.mxu0 0.0
  %1707 = vmatmul.mubr.f32.gmra.mrb[0].mxu0 %v635
  %v1708 = vpop.f32.mrb[0].mxu0
  %v1709 = vadd.f32 0.0, %v1708
  %v1710 = vpop.f32.mrb[0].mxu0
  %1711 = vmatprep.mubr.f32.mxu0 0.0
  %1712 = vmatmul.mubr.f32.gmra.mrb[0].mxu0 %v638
  %v1713 = vpop.f32.mrb[0].mxu0
  %v1714 = vadd.f32 0.0, %v1713
  %v1715 = vpop.f32.mrb[0].mxu0
  %1716 = vmatprep.mubr.f32.mxu0 0.0
  %1717 = vmatmul.mubr.f32.gmra.mrb[0].mxu0 %v641
  %v1718 = vpop.f32.mrb[0].mxu0
  %v1719 = vadd.f32 0.0, %v1718
  %v1720 = vpop.f32.mrb[0].mxu0
  %1721 = vmatprep.mubr.f32.mxu0 0.0
  %1722 = vmatmul.mubr.f32.gmra.mrb[0].mxu0 %v644
  %v1723 = vpop.f32.mrb[0].mxu0
  %v1724 = vadd.f32 0.0, %v1723
  %v1725 = vpop.f32.mrb[0].mxu0
  %1726 = vmatprep.mubr.f32.mxu0 0.0
  %1727 = vmatmul.mubr.f32.gmra.mrb[0].mxu0 %v647
  %v1728 = vpop.f32.mrb[0].mxu0
  %v1729 = vadd.f32 0.0, %v1728
  %v1730 = vpop.f32.mrb[0].mxu0
  %1731 = vmatprep.mubr.f32.mxu0 0.0
  %1732 = vmatmul.mubr.f32.gmra.mrb[0].mxu0 %v650
  %v1733 = vpop.f32.mrb[0].mxu0
  %v1734 = vadd.f32 0.0, %v1733
  %v1735 = vpop.f32.mrb[0].mxu0
  %1736 = vmatprep.mubr.f32.mxu0 0.0
  %1737 = vmatmul.mubr.f32.gmra.mrb[0].mxu0 %v653
  %v1738 = vpop.f32.mrb[0].mxu0
  %v1739 = vadd.f32 0.0, %v1738
  %v1740 = vpop.f32.mrb[0].mxu0
  %1741 = vmatprep.mubr.f32.mxu0 0.0
  %1742 = vmatmul.mubr.f32.gmra.mrb[0].mxu0 %v656
  %v1743 = vpop.f32.mrb[0].mxu0
  %v1744 = vadd.f32 0.0, %v1743
  %v1745 = vpop.f32.mrb[0].mxu0
  %1746 = vmatprep.mubr.f32.mxu0 0.0
  %1747 = vmatmul.mubr.f32.gmra.mrb[0].mxu0 %v659
  %v1748 = vpop.f32.mrb[0].mxu0
  %v1749 = vadd.f32 0.0, %v1748
  %v1750 = vpop.f32.mrb[0].mxu0
  %1751 = vmatprep.mubr.f32.mxu0 0.0
  %1752 = vmatmul.mubr.f32.gmra.mrb[0].mxu0 %v662
  %v1753 = vpop.f32.mrb[0].mxu0
  %v1754 = vadd.f32 0.0, %v1753
  %v1755 = vpop.f32.mrb[0].mxu0
  %1756 = vmatprep.mubr.f32.mxu0 0.0
  %1757 = vmatmul.mubr.f32.gmra.mrb[0].mxu0 %v665
  %v1758 = vpop.f32.mrb[0].mxu0
  %v1759 = vadd.f32 0.0, %v1758
  %v1760 = vpop.f32.mrb[0].mxu0
  %1761 = vmatprep.mubr.f32.mxu0 0.0
  %1762 = vmatmul.mubr.f32.gmra.mrb[0].mxu0 %v668
  %v1763 = vpop.f32.mrb[0].mxu0
  %v1764 = vadd.f32 0.0, %v1763
  %v1765 = vpop.f32.mrb[0].mxu0
  %1766 = vmatprep.mubr.f32.mxu0 0.0
  %1767 = vmatmul.mubr.f32.gmra.mrb[0].mxu0 %v671
  %v1768 = vpop.f32.mrb[0].mxu0
  %v1769 = vadd.f32 0.0, %v1768
  %v1770 = vpop.f32.mrb[0].mxu0
  %1771 = vmatprep.mubr.f32.mxu0 0.0
  %1772 = vmatmul.mubr.f32.gmra.mrb[0].mxu0 %v674
  %v1773 = vpop.f32.mrb[0].mxu0
  %v1774 = vadd.f32 0.0, %v1773
  %v1775 = vpop.f32.mrb[0].mxu0
  %1776 = vmatprep.mubr.f32.mxu0 0.0
  %1777 = vmatmul.mubr.f32.gmra.mrb[0].mxu0 %v677
  %v1778 = vpop.f32.mrb[0].mxu0
  %v1779 = vadd.f32 0.0, %v1778
  %v1780 = vpop.f32.mrb[0].mxu0
  %1781 = vmatprep.mubr.f32.mxu0 0.0
  %1782 = vmatmul.mubr.f32.gmra.mrb[0].mxu0 %v680
  %v1783 = vpop.f32.mrb[0].mxu0
  %v1784 = vadd.f32 0.0, %v1783
  %v1785 = vpop.f32.mrb[0].mxu0
  %1786 = vmatprep.mubr.f32.mxu0 0.0
  %1787 = vmatmul.mubr.f32.gmra.mrb[0].mxu0 %v683
  %v1788 = vpop.f32.mrb[0].mxu0
  %v1789 = vadd.f32 0.0, %v1788
  %v1790 = vpop.f32.mrb[0].mxu0
  %1791 = vmatprep.mubr.f32.mxu0 0.0
  %1792 = vmatmul.mubr.f32.gmra.mrb[0].mxu0 %v686
  %v1793 = vpop.f32.mrb[0].mxu0
  %v1794 = vadd.f32 0.0, %v1793
  %v1795 = vpop.f32.mrb[0].mxu0
  %1796 = vmatprep.mubr.f32.mxu0 0.0
  %1797 = vmatmul.mubr.f32.gmra.mrb[0].mxu0 %v689
  %v1798 = vpop.f32.mrb[0].mxu0
  %v1799 = vadd.f32 0.0, %v1798
  %v1800 = vpop.f32.mrb[0].mxu0
  %1801 = vmatprep.mubr.f32.mxu0 0.0
  %1802 = vmatmul.mubr.f32.gmra.mrb[0].mxu0 %v692
  %v1803 = vpop.f32.mrb[0].mxu0
  %v1804 = vadd.f32 0.0, %v1803
  %v1805 = vpop.f32.mrb[0].mxu0
  %1806 = vmatprep.mubr.f32.mxu0 0.0
  %1807 = vmatmul.mubr.f32.gmra.mrb[0].mxu0 %v695
  %v1808 = vpop.f32.mrb[0].mxu0
  %v1809 = vadd.f32 0.0, %v1808
  %v1810 = vpop.f32.mrb[0].mxu0
  %1811 = vmatprep.mubr.f32.mxu0 0.0
  %1812 = vmatmul.mubr.f32.gmra.mrb[0].mxu0 %v698
  %v1813 = vpop.f32.mrb[0].mxu0
  %v1814 = vadd.f32 0.0, %v1813
  %v1815 = vpop.f32.mrb[0].mxu0
  %1816 = vmatprep.mubr.f32.mxu0 0.0
  %1817 = vmatmul.mubr.f32.gmra.mrb[0].mxu0 %v701
  %v1818 = vpop.f32.mrb[0].mxu0
  %v1819 = vadd.f32 0.0, %v1818
  %v1820 = vpop.f32.mrb[0].mxu0
  %1821 = vmatprep.mubr.f32.mxu0 0.0
  %1822 = vmatmul.mubr.f32.gmra.mrb[0].mxu0 %v704
  %v1823 = vpop.f32.mrb[0].mxu0
  %v1824 = vadd.f32 0.0, %v1823
  %v1825 = vpop.f32.mrb[0].mxu0
  %1826 = vmatprep.mubr.f32.mxu0 0.0
  %1827 = vmatmul.mubr.f32.gmra.mrb[0].mxu0 %v707
  %v1828 = vpop.f32.mrb[0].mxu0
  %v1829 = vadd.f32 0.0, %v1828
  %v1830 = vpop.f32.mrb[0].mxu0
  %1831 = vmatprep.mubr.f32.mxu0 0.0
  %1832 = vmatmul.mubr.f32.gmra.mrb[0].mxu0 %v710
  %v1833 = vpop.f32.mrb[0].mxu0
  %v1834 = vadd.f32 0.0, %v1833
  %v1835 = vpop.f32.mrb[0].mxu0
  %1836 = vmatprep.mubr.f32.mxu0 0.0
  %1837 = vmatmul.mubr.f32.gmra.mrb[0].mxu0 %v713
  %v1838 = vpop.f32.mrb[0].mxu0
  %v1839 = vadd.f32 0.0, %v1838
  %v1840 = vpop.f32.mrb[0].mxu0
  %1841 = vmatprep.mubr.f32.mxu0 0.0
  %1842 = vmatmul.mubr.f32.gmra.mrb[0].mxu0 %v716
  %v1843 = vpop.f32.mrb[0].mxu0
  %v1844 = vadd.f32 0.0, %v1843
  %v1845 = vpop.f32.mrb[0].mxu0
  %1846 = vmatprep.mubr.f32.mxu0 0.0
  %1847 = vmatmul.mubr.f32.gmra.mrb[0].mxu0 %v719
  %v1848 = vpop.f32.mrb[0].mxu0
  %v1849 = vadd.f32 0.0, %v1848
  %v1850 = vpop.f32.mrb[0].mxu0
  %1851 = vmatprep.mubr.f32.mxu0 0.0
  %1852 = vmatmul.mubr.f32.gmra.mrb[0].mxu0 %v722
  %v1853 = vpop.f32.mrb[0].mxu0
  %v1854 = vadd.f32 0.0, %v1853
  %v1855 = vpop.f32.mrb[0].mxu0
  %1856 = vmatprep.mubr.f32.mxu0 0.0
  %1857 = vmatmul.mubr.f32.gmra.mrb[0].mxu0 %v725
  %v1858 = vpop.f32.mrb[0].mxu0
  %v1859 = vadd.f32 0.0, %v1858
  %v1860 = vpop.f32.mrb[0].mxu0
  %1861 = vmatprep.mubr.f32.mxu0 0.0
  %1862 = vmatmul.mubr.f32.gmra.mrb[0].mxu0 %v728
  %v1863 = vpop.f32.mrb[0].mxu0
  %v1864 = vadd.f32 0.0, %v1863
  %v1865 = vpop.f32.mrb[0].mxu0
  %1866 = vmatprep.mubr.f32.mxu0 0.0
  %1867 = vmatmul.mubr.f32.gmra.mrb[0].mxu0 %v731
  %v1868 = vpop.f32.mrb[0].mxu0
  %v1869 = vadd.f32 0.0, %v1868
  %v1870 = vpop.f32.mrb[0].mxu0
  %1871 = vmatprep.mubr.f32.mxu0 0.0
  %1872 = vmatmul.mubr.f32.gmra.mrb[0].mxu0 %v734
  %v1873 = vpop.f32.mrb[0].mxu0
  %v1874 = vadd.f32 0.0, %v1873
  %v1875 = vpop.f32.mrb[0].mxu0
  %1876 = vmatprep.mubr.f32.mxu0 0.0
  %1877 = vmatmul.mubr.f32.gmra.mrb[0].mxu0 %v737
  %v1878 = vpop.f32.mrb[0].mxu0
  %v1879 = vadd.f32 0.0, %v1878
  %v1880 = vpop.f32.mrb[0].mxu0
  %1881 = vmatprep.mubr.f32.mxu0 0.0
  %1882 = vmatmul.mubr.f32.gmra.mrb[0].mxu0 %v740
  %v1883 = vpop.f32.mrb[0].mxu0
  %v1884 = vadd.f32 0.0, %v1883
  %v1885 = vpop.f32.mrb[0].mxu0
  %1886 = vmatprep.mubr.f32.mxu0 0.0
  %1887 = vmatmul.mubr.f32.gmra.mrb[0].mxu0 %v743
  %v1888 = vpop.f32.mrb[0].mxu0
  %v1889 = vadd.f32 0.0, %v1888
  %v1890 = vpop.f32.mrb[0].mxu0
  %1891 = vmatprep.mubr.f32.mxu0 0.0
  %1892 = vmatmul.mubr.f32.gmra.mrb[0].mxu0 %v746
  %v1893 = vpop.f32.mrb[0].mxu0
  %v1894 = vadd.f32 0.0, %v1893
  %v1895 = vpop.f32.mrb[0].mxu0
  %1896 = vmatprep.mubr.f32.mxu0 0.0
  %1897 = vmatmul.mubr.f32.gmra.mrb[0].mxu0 %v749
  %v1898 = vpop.f32.mrb[0].mxu0
  %v1899 = vadd.f32 0.0, %v1898
  %v1900 = vpop.f32.mrb[0].mxu0
  %1901 = vmatprep.mubr.f32.mxu0 0.0
  %1902 = vmatmul.mubr.f32.gmra.mrb[0].mxu0 %v752
  %v1903 = vpop.f32.mrb[0].mxu0
  %v1904 = vadd.f32 0.0, %v1903
  %v1905 = vpop.f32.mrb[0].mxu0
  %1906 = vmatprep.mubr.f32.mxu0 0.0
  %1907 = vmatmul.mubr.f32.gmra.mrb[0].mxu0 %v755
  %v1908 = vpop.f32.mrb[0].mxu0
  %v1909 = vadd.f32 0.0, %v1908
  %v1910 = vpop.f32.mrb[0].mxu0
  %1911 = vmatprep.mubr.f32.mxu0 0.0
  %1912 = vmatmul.mubr.f32.gmra.mrb[0].mxu0 %v758
  %v1913 = vpop.f32.mrb[0].mxu0
  %v1914 = vadd.f32 0.0, %v1913
  %v1915 = vpop.f32.mrb[0].mxu0
  %1916 = vmatprep.mubr.f32.mxu0 0.0
  %1917 = vmatmul.mubr.f32.gmra.mrb[0].mxu0 %v761
  %v1918 = vpop.f32.mrb[0].mxu0
  %v1919 = vadd.f32 0.0, %v1918
  %v1920 = vpop.f32.mrb[0].mxu0
  %1921 = vmatprep.mubr.f32.mxu0 0.0
  %1922 = vmatmul.mubr.f32.gmra.mrb[0].mxu0 %v764
  %v1923 = vpop.f32.mrb[0].mxu0
  %v1924 = vadd.f32 0.0, %v1923
  %v1925 = vpop.f32.mrb[0].mxu0
  %1926 = vmatprep.mubr.f32.mxu0 0.0
  %1927 = vmatmul.mubr.f32.gmra.mrb[0].mxu0 %v767
  %v1928 = vpop.f32.mrb[0].mxu0
  %v1929 = vadd.f32 0.0, %v1928
  %v1930 = vpop.f32.mrb[0].mxu0
  %1931 = vmatprep.mubr.f32.mxu0 0.0
  %1932 = vmatmul.mubr.f32.gmra.mrb[0].mxu0 %v770
  %v1933 = vpop.f32.mrb[0].mxu0
  %v1934 = vadd.f32 0.0, %v1933
  %v1935 = vpop.f32.mrb[0].mxu0
  %1936 = vmatprep.mubr.f32.mxu0 0.0
  %1937 = vmatmul.mubr.f32.gmra.mrb[0].mxu0 %v773
  %v1938 = vpop.f32.mrb[0].mxu0
  %v1939 = vadd.f32 0.0, %v1938
  %v1940 = vpop.f32.mrb[0].mxu0
  %1941 = vmatprep.mubr.f32.mxu0 0.0
  %1942 = vmatmul.mubr.f32.gmra.mrb[0].mxu0 %v776
  %v1943 = vpop.f32.mrb[0].mxu0
  %v1944 = vadd.f32 0.0, %v1943
  %v1945 = vpop.f32.mrb[0].mxu0
  %1946 = vmatprep.mubr.f32.mxu0 0.0
  %1947 = vmatmul.mubr.f32.gmra.mrb[0].mxu0 %v779
  %v1948 = vpop.f32.mrb[0].mxu0
  %v1949 = vadd.f32 0.0, %v1948
  %v1950 = vpop.f32.mrb[0].mxu0
  %1951 = vmatprep.mubr.f32.mxu0 0.0
  %1952 = vmatmul.mubr.f32.gmra.mrb[0].mxu0 %v782
  %v1953 = vpop.f32.mrb[0].mxu0
  %v1954 = vadd.f32 0.0, %v1953
  %v1955 = vpop.f32.mrb[0].mxu0
  %1956 = vmatprep.mubr.f32.mxu0 0.0
  %1957 = vmatmul.mubr.f32.gmra.mrb[0].mxu0 %v785
  %v1958 = vpop.f32.mrb[0].mxu0
  %v1959 = vadd.f32 0.0, %v1958
  %v1960 = vpop.f32.mrb[0].mxu0
  %1961 = vmatprep.mubr.f32.mxu0 0.0
  %1962 = vmatmul.mubr.f32.gmra.mrb[0].mxu0 %v788
  %v1963 = vpop.f32.mrb[0].mxu0
  %v1964 = vadd.f32 0.0, %v1963
  %v1965 = vpop.f32.mrb[0].mxu0
  %1966 = vmatprep.mubr.f32.mxu0 0.0
  %1967 = vmatmul.mubr.f32.gmra.mrb[0].mxu0 %v791
  %v1968 = vpop.f32.mrb[0].mxu0
  %v1969 = vadd.f32 0.0, %v1968
  %v1970 = vpop.f32.mrb[0].mxu0
  %1971 = vmatprep.mubr.f32.mxu0 0.0
  %1972 = vmatmul.mubr.f32.gmra.mrb[0].mxu0 %v794
  %v1973 = vpop.f32.mrb[0].mxu0
  %v1974 = vadd.f32 0.0, %v1973
  %v1975 = vpop.f32.mrb[0].mxu0
  %1976 = vmatprep.mubr.f32.mxu0 0.0
  %1977 = vmatmul.mubr.f32.gmra.mrb[0].mxu0 %v797
  %v1978 = vpop.f32.mrb[0].mxu0
  %v1979 = vadd.f32 0.0, %v1978
  %v1980 = vpop.f32.mrb[0].mxu0
  %1981 = vmatprep.mubr.f32.mxu0 0.0
  %1982 = vmatmul.mubr.f32.gmra.mrb[0].mxu0 %v800
  %v1983 = vpop.f32.mrb[0].mxu0
  %v1984 = vadd.f32 0.0, %v1983
  %v1985 = vpop.f32.mrb[0].mxu0
  %1986 = vmatprep.mubr.f32.mxu0 0.0
  %1987 = vmatmul.mubr.f32.gmra.mrb[0].mxu0 %v803
  %v1988 = vpop.f32.mrb[0].mxu0
  %v1989 = vadd.f32 0.0, %v1988
  %v1990 = vpop.f32.mrb[0].mxu0
  %1991 = vmatprep.mubr.f32.mxu0 0.0
  %1992 = vmatmul.mubr.f32.gmra.mrb[0].mxu0 %v806
  %v1993 = vpop.f32.mrb[0].mxu0
  %v1994 = vadd.f32 0.0, %v1993
  %v1995 = vpop.f32.mrb[0].mxu0
  %1996 = vmatprep.mubr.f32.mxu0 0.0
  %1997 = vmatmul.mubr.f32.gmra.mrb[0].mxu0 %v809
  %v1998 = vpop.f32.mrb[0].mxu0
  %v1999 = vadd.f32 0.0, %v1998
  %v2000 = vpop.f32.mrb[0].mxu0
  %2001 = vmatprep.mubr.f32.mxu0 0.0
  %2002 = vmatmul.mubr.f32.gmra.mrb[0].mxu0 %v812
  %v2003 = vpop.f32.mrb[0].mxu0
  %v2004 = vadd.f32 0.0, %v2003
  %v2005 = vpop.f32.mrb[0].mxu0
  %2006 = vmatprep.mubr.f32.mxu0 0.0
  %2007 = vmatmul.mubr.f32.gmra.mrb[0].mxu0 %v815
  %v2008 = vpop.f32.mrb[0].mxu0
  %v2009 = vadd.f32 0.0, %v2008
  %v2010 = vpop.f32.mrb[0].mxu0
  %2011 = vmatprep.mubr.f32.mxu0 0.0
  %2012 = vmatmul.mubr.f32.gmra.mrb[0].mxu0 %v818
  %v2013 = vpop.f32.mrb[0].mxu0
  %v2014 = vadd.f32 0.0, %v2013
  %v2015 = vpop.f32.mrb[0].mxu0
  %2016 = vmatprep.mubr.f32.mxu0 0.0
  %2017 = vmatmul.mubr.f32.gmra.mrb[0].mxu0 %v821
  %v2018 = vpop.f32.mrb[0].mxu0
  %v2019 = vadd.f32 0.0, %v2018
  %v2020 = vpop.f32.mrb[0].mxu0
  %2021 = vmatprep.mubr.f32.mxu0 0.0
  %2022 = vmatmul.mubr.f32.gmra.mrb[0].mxu0 %v824
  %v2023 = vpop.f32.mrb[0].mxu0
  %v2024 = vadd.f32 0.0, %v2023
  %v2025 = vpop.f32.mrb[0].mxu0
  %2026 = vmatprep.mubr.f32.mxu0 0.0
  %2027 = vmatmul.mubr.f32.gmra.mrb[0].mxu0 %v827
  %v2028 = vpop.f32.mrb[0].mxu0
  %v2029 = vadd.f32 0.0, %v2028
  %v2030 = vpop.f32.mrb[0].mxu0
  %2031 = vmatprep.mubr.f32.mxu0 0.0
  %2032 = vmatmul.mubr.f32.gmra.mrb[0].mxu0 %v830
  %v2033 = vpop.f32.mrb[0].mxu0
  %v2034 = vadd.f32 0.0, %v2033
  %v2035 = vpop.f32.mrb[0].mxu0
  %2036 = vmatprep.mubr.f32.mxu0 0.0
  %2037 = vmatmul.mubr.f32.gmra.mrb[0].mxu0 %v833
  %v2038 = vpop.f32.mrb[0].mxu0
  %v2039 = vadd.f32 0.0, %v2038
  %v2040 = vpop.f32.mrb[0].mxu0
  %2041 = vmatprep.mubr.f32.mxu0 0.0
  %2042 = vmatmul.mubr.f32.gmra.mrb[0].mxu0 %v836
  %v2043 = vpop.f32.mrb[0].mxu0
  %v2044 = vadd.f32 0.0, %v2043
  %v2045 = vpop.f32.mrb[0].mxu0
  %2046 = vmatprep.mubr.f32.mxu0 0.0
  %2047 = vmatmul.mubr.f32.gmra.mrb[0].mxu0 %v839
  %v2048 = vpop.f32.mrb[0].mxu0
  %v2049 = vadd.f32 0.0, %v2048
  %v2050 = vpop.f32.mrb[0].mxu0
  %2051 = vmatprep.mubr.f32.mxu0 0.0
  %2052 = vmatmul.mubr.f32.gmra.mrb[0].mxu0 %v842
  %v2053 = vpop.f32.mrb[0].mxu0
  %v2054 = vadd.f32 0.0, %v2053
  %v2055 = vpop.f32.mrb[0].mxu0
  %2056 = vmatprep.mubr.f32.mxu0 0.0
  %2057 = vmatmul.mubr.f32.gmra.mrb[0].mxu0 %v845
  %v2058 = vpop.f32.mrb[0].mxu0
  %v2059 = vadd.f32 0.0, %v2058
  %v2060 = vpop.f32.mrb[0].mxu0
  %2061 = vmatprep.mubr.f32.mxu0 0.0
  %2062 = vmatmul.mubr.f32.gmra.mrb[0].mxu0 %v848
  %v2063 = vpop.f32.mrb[0].mxu0
  %v2064 = vadd.f32 0.0, %v2063
  %v2065 = vpop.f32.mrb[0].mxu0
  %2066 = vmatprep.mubr.f32.mxu0 0.0
  %2067 = vmatmul.mubr.f32.gmra.mrb[0].mxu0 %v851
  %v2068 = vpop.f32.mrb[0].mxu0
  %v2069 = vadd.f32 0.0, %v2068
  %v2070 = vpop.f32.mrb[0].mxu0
  %2071 = vmatprep.mubr.f32.mxu0 0.0
  %2072 = vmatmul.mubr.f32.gmra.mrb[0].mxu0 %v854
  %v2073 = vpop.f32.mrb[0].mxu0
  %v2074 = vadd.f32 0.0, %v2073
  %v2075 = vpop.f32.mrb[0].mxu0
  %2076 = vmatprep.mubr.f32.mxu0 0.0
  %2077 = vmatmul.mubr.f32.gmra.mrb[0].mxu0 %v857
  %v2078 = vpop.f32.mrb[0].mxu0
  %v2079 = vadd.f32 0.0, %v2078
  %v2080 = vpop.f32.mrb[0].mxu0
  %2081 = vmatprep.mubr.f32.mxu0 0.0
  %2082 = vmatmul.mubr.f32.gmra.mrb[0].mxu0 %v860
  %v2083 = vpop.f32.mrb[0].mxu0
  %v2084 = vadd.f32 0.0, %v2083
  %v2085 = vpop.f32.mrb[0].mxu0
  %2086 = vmatprep.mubr.f32.mxu0 0.0
  %2087 = vmatmul.mubr.f32.gmra.mrb[0].mxu0 %v863
  %v2088 = vpop.f32.mrb[0].mxu0
  %v2089 = vadd.f32 0.0, %v2088
  %v2090 = vpop.f32.mrb[0].mxu0
  %2091 = vmatprep.mubr.f32.mxu0 0.0
  %2092 = vmatmul.mubr.f32.gmra.mrb[0].mxu0 %v866
  %v2093 = vpop.f32.mrb[0].mxu0
  %v2094 = vadd.f32 0.0, %v2093
  %v2095 = vpop.f32.mrb[0].mxu0
  %2096 = vmatprep.mubr.f32.mxu0 0.0
  %2097 = vmatmul.mubr.f32.gmra.mrb[0].mxu0 %v869
  %v2098 = vpop.f32.mrb[0].mxu0
  %v2099 = vadd.f32 0.0, %v2098
  %v2100 = vpop.f32.mrb[0].mxu0
  %2101 = vmatprep.mubr.f32.mxu0 0.0
  %2102 = vmatmul.mubr.f32.gmra.mrb[0].mxu0 %v872
  %v2103 = vpop.f32.mrb[0].mxu0
  %v2104 = vadd.f32 0.0, %v2103
  %v2105 = vpop.f32.mrb[0].mxu0
  %2106 = vmatprep.mubr.f32.mxu0 0.0
  %2107 = vmatmul.mubr.f32.gmra.mrb[0].mxu0 %v875
  %v2108 = vpop.f32.mrb[0].mxu0
  %v2109 = vadd.f32 0.0, %v2108
  %v2110 = vpop.f32.mrb[0].mxu0
  %2111 = vmatprep.mubr.f32.mxu0 0.0
  %2112 = vmatmul.mubr.f32.gmra.mrb[0].mxu0 %v878
  %v2113 = vpop.f32.mrb[0].mxu0
  %v2114 = vadd.f32 0.0, %v2113
  %v2115 = vpop.f32.mrb[0].mxu0
  %2116 = vmatprep.mubr.f32.mxu0 0.0
  %2117 = vmatmul.mubr.f32.gmra.mrb[0].mxu0 %v881
  %v2118 = vpop.f32.mrb[0].mxu0
  %v2119 = vadd.f32 0.0, %v2118
  %v2120 = vpop.f32.mrb[0].mxu0
  %2121 = vmatprep.mubr.f32.mxu0 0.0
  %2122 = vmatmul.mubr.f32.gmra.mrb[0].mxu0 %v884
  %v2123 = vpop.f32.mrb[0].mxu0
  %v2124 = vadd.f32 0.0, %v2123
  %v2125 = vpop.f32.mrb[0].mxu0
  %2126 = vmatprep.mubr.f32.mxu0 0.0
  %2127 = vmatmul.mubr.f32.gmra.mrb[0].mxu0 %v887
  %v2128 = vpop.f32.mrb[0].mxu0
  %v2129 = vadd.f32 0.0, %v2128
  %v2130 = vpop.f32.mrb[0].mxu0
  %2131 = vmatprep.mubr.f32.mxu0 0.0
  %2132 = vmatmul.mubr.f32.gmra.mrb[0].mxu0 %v890
  %v2133 = vpop.f32.mrb[0].mxu0
  %v2134 = vadd.f32 0.0, %v2133
  %v2135 = vpop.f32.mrb[0].mxu0
  %2136 = vmatprep.mubr.f32.mxu0 0.0
  %2137 = vmatmul.mubr.f32.gmra.mrb[0].mxu0 %v893
  %v2138 = vpop.f32.mrb[0].mxu0
  %v2139 = vadd.f32 0.0, %v2138
  %v2140 = vpop.f32.mrb[0].mxu0
  %2141 = vmatprep.mubr.f32.mxu0 0.0
  %2142 = vmatmul.mubr.f32.gmra.mrb[0].mxu0 %v896
  %v2143 = vpop.f32.mrb[0].mxu0
  %v2144 = vadd.f32 0.0, %v2143
  %v2145 = vpop.f32.mrb[0].mxu0
  %2146 = vmatprep.mubr.f32.mxu0 0.0
  %2147 = vmatmul.mubr.f32.gmra.mrb[0].mxu0 %v899
  %v2148 = vpop.f32.mrb[0].mxu0
  %v2149 = vadd.f32 0.0, %v2148
  %v2150 = vpop.f32.mrb[0].mxu0
  %2151 = vmatprep.mubr.f32.mxu0 0.0
  %2152 = vmatmul.mubr.f32.gmra.mrb[0].mxu0 %v902
  %v2153 = vpop.f32.mrb[0].mxu0
  %v2154 = vadd.f32 0.0, %v2153
  %v2155 = vpop.f32.mrb[0].mxu0
  %2156 = vmatprep.mubr.f32.mxu0 0.0
  %2157 = vmatmul.mubr.f32.gmra.mrb[0].mxu0 %v905
  %v2158 = vpop.f32.mrb[0].mxu0
  %v2159 = vadd.f32 0.0, %v2158
  %v2160 = vpop.f32.mrb[0].mxu0
  %2161 = vmatprep.mubr.f32.mxu0 0.0
  %2162 = vmatmul.mubr.f32.gmra.mrb[0].mxu0 %v908
  %v2163 = vpop.f32.mrb[0].mxu0
  %v2164 = vadd.f32 0.0, %v2163
  %v2165 = vpop.f32.mrb[0].mxu0
  %2166 = vmatprep.mubr.f32.mxu0 0.0
  %2167 = vmatmul.mubr.f32.gmra.mrb[0].mxu0 %v911
  %v2168 = vpop.f32.mrb[0].mxu0
  %v2169 = vadd.f32 0.0, %v2168
  %v2170 = vpop.f32.mrb[0].mxu0
  %2171 = vmatprep.mubr.f32.mxu0 0.0
  %2172 = vmatmul.mubr.f32.gmra.mrb[0].mxu0 %v914
  %v2173 = vpop.f32.mrb[0].mxu0
  %v2174 = vadd.f32 0.0, %v2173
  %v2175 = vpop.f32.mrb[0].mxu0
  %2176 = vmatprep.mubr.f32.mxu0 0.0
  %2177 = vmatmul.mubr.f32.gmra.mrb[0].mxu0 %v917
  %v2178 = vpop.f32.mrb[0].mxu0
  %v2179 = vadd.f32 0.0, %v2178
  %v2180 = vpop.f32.mrb[0].mxu0
  %2181 = vmatprep.mubr.f32.mxu0 0.0
  %2182 = vmatmul.mubr.f32.gmra.mrb[0].mxu0 %v920
  %v2183 = vpop.f32.mrb[0].mxu0
  %v2184 = vadd.f32 0.0, %v2183
  %v2185 = vpop.f32.mrb[0].mxu0
  %2186 = vmatprep.mubr.f32.mxu0 0.0
  %2187 = vmatmul.mubr.f32.gmra.mrb[0].mxu0 %v923
  %v2188 = vpop.f32.mrb[0].mxu0
  %v2189 = vadd.f32 0.0, %v2188
  %v2190 = vpop.f32.mrb[0].mxu0
  %2191 = vmatprep.mubr.f32.mxu0 0.0
  %2192 = vmatmul.mubr.f32.gmra.mrb[0].mxu0 %v926
  %v2193 = vpop.f32.mrb[0].mxu0
  %v2194 = vadd.f32 0.0, %v2193
  %v2195 = vpop.f32.mrb[0].mxu0
  %2196 = vmatprep.mubr.f32.mxu0 0.0
  %2197 = vmatmul.mubr.f32.gmra.mrb[0].mxu0 %v929
  %v2198 = vpop.f32.mrb[0].mxu0
  %v2199 = vadd.f32 0.0, %v2198
  %v2200 = vpop.f32.mrb[0].mxu0
  %2201 = vmatprep.mubr.f32.mxu0 0.0
  %2202 = vmatmul.mubr.f32.gmra.mrb[0].mxu0 %v932
  %v2203 = vpop.f32.mrb[0].mxu0
  %v2204 = vadd.f32 0.0, %v2203
  %v2205 = vpop.f32.mrb[0].mxu0
  %2206 = vmatprep.mubr.f32.mxu0 0.0
  %2207 = vmatmul.mubr.f32.gmra.mrb[0].mxu0 %v935
  %v2208 = vpop.f32.mrb[0].mxu0
  %v2209 = vadd.f32 0.0, %v2208
  %v2210 = vpop.f32.mrb[0].mxu0
  %2211 = vmatprep.mubr.f32.mxu0 0.0
  %2212 = vmatmul.mubr.f32.gmra.mrb[0].mxu0 %v938
  %v2213 = vpop.f32.mrb[0].mxu0
  %v2214 = vadd.f32 0.0, %v2213
  %v2215 = vpop.f32.mrb[0].mxu0
  %2216 = vmatprep.mubr.f32.mxu0 0.0
  %2217 = vmatmul.mubr.f32.gmra.mrb[0].mxu0 %v941
  %v2218 = vpop.f32.mrb[0].mxu0
  %v2219 = vadd.f32 0.0, %v2218
  %v2220 = vpop.f32.mrb[0].mxu0
  %2221 = vmatprep.mubr.f32.mxu0 0.0
  %2222 = vmatmul.mubr.f32.gmra.mrb[0].mxu0 %v944
  %v2223 = vpop.f32.mrb[0].mxu0
  %v2224 = vadd.f32 0.0, %v2223
  %v2225 = vpop.f32.mrb[0].mxu0
  %2226 = vmatprep.mubr.f32.mxu0 0.0
  %2227 = vmatmul.mubr.f32.gmra.mrb[0].mxu0 %v947
  %v2228 = vpop.f32.mrb[0].mxu0
  %v2229 = vadd.f32 0.0, %v2228
  %v2230 = vpop.f32.mrb[0].mxu0
  %2231 = vmatprep.mubr.f32.mxu0 0.0
  %2232 = vmatmul.mubr.f32.gmra.mrb[0].mxu0 %v950
  %v2233 = vpop.f32.mrb[0].mxu0
  %v2234 = vadd.f32 0.0, %v2233
  %v2235 = vpop.f32.mrb[0].mxu0
  %2236 = vmatprep.mubr.f32.mxu0 0.0
  %2237 = vmatmul.mubr.f32.gmra.mrb[0].mxu0 %v953
  %v2238 = vpop.f32.mrb[0].mxu0
  %v2239 = vadd.f32 0.0, %v2238
  %v2240 = vpop.f32.mrb[0].mxu0
  %2241 = vmatprep.mubr.f32.mxu0 0.0
  %2242 = vmatmul.mubr.f32.gmra.mrb[0].mxu0 %v956
  %v2243 = vpop.f32.mrb[0].mxu0
  %v2244 = vadd.f32 0.0, %v2243
  %v2245 = vpop.f32.mrb[0].mxu0
  %2246 = vmatprep.mubr.f32.mxu0 0.0
  %2247 = vmatmul.mubr.f32.gmra.mrb[0].mxu0 %v959
  %v2248 = vpop.f32.mrb[0].mxu0
  %v2249 = vadd.f32 0.0, %v2248
  %v2250 = vpop.f32.mrb[0].mxu0
  %2251 = vmatprep.mubr.f32.mxu0 0.0
  %2252 = vmatmul.mubr.f32.gmra.mrb[0].mxu0 %v962
  %v2253 = vpop.f32.mrb[0].mxu0
  %v2254 = vadd.f32 0.0, %v2253
  %v2255 = vpop.f32.mrb[0].mxu0
  %2256 = vmatprep.mubr.f32.mxu0 0.0
  %2257 = vmatmul.mubr.f32.gmra.mrb[0].mxu0 %v965
  %v2258 = vpop.f32.mrb[0].mxu0
  %v2259 = vadd.f32 0.0, %v2258
  %v2260 = vpop.f32.mrb[0].mxu0
  %2261 = vmatprep.mubr.f32.mxu0 0.0
  %2262 = vmatmul.mubr.f32.gmra.mrb[0].mxu0 %v968
  %v2263 = vpop.f32.mrb[0].mxu0
  %v2264 = vadd.f32 0.0, %v2263
  %v2265 = vpop.f32.mrb[0].mxu0
  %2266 = vmatprep.mubr.f32.mxu0 0.0
  %2267 = vmatmul.mubr.f32.gmra.mrb[0].mxu0 %v971
  %v2268 = vpop.f32.mrb[0].mxu0
  %v2269 = vadd.f32 0.0, %v2268
  %v2270 = vpop.f32.mrb[0].mxu0
  %2271 = vmatprep.mubr.f32.mxu0 0.0
  %2272 = vmatmul.mubr.f32.gmra.mrb[0].mxu0 %v974
  %v2273 = vpop.f32.mrb[0].mxu0
  %v2274 = vadd.f32 0.0, %v2273
  %v2275 = vpop.f32.mrb[0].mxu0
  %2276 = vmatprep.mubr.f32.mxu0 0.0
  %2277 = vmatmul.mubr.f32.gmra.mrb[0].mxu0 %v977
  %v2278 = vpop.f32.mrb[0].mxu0
  %v2279 = vadd.f32 0.0, %v2278
  %v2280 = vpop.f32.mrb[0].mxu0
  %2281 = vmatprep.mubr.f32.mxu0 0.0
  %2282 = vmatmul.mubr.f32.gmra.mrb[0].mxu0 %v980
  %v2283 = vpop.f32.mrb[0].mxu0
  %v2284 = vadd.f32 0.0, %v2283
  %v2285 = vpop.f32.mrb[0].mxu0
  %2286 = vmatprep.mubr.f32.mxu0 0.0
  %2287 = vmatmul.mubr.f32.gmra.mrb[0].mxu0 %v983
  %v2288 = vpop.f32.mrb[0].mxu0
  %v2289 = vadd.f32 0.0, %v2288
  %v2290 = vpop.f32.mrb[0].mxu0
  %2291 = vmatprep.mubr.f32.mxu0 0.0
  %2292 = vmatmul.mubr.f32.gmra.mrb[0].mxu0 %v986
  %v2293 = vpop.f32.mrb[0].mxu0
  %v2294 = vadd.f32 0.0, %v2293
  %v2295 = vpop.f32.mrb[0].mxu0
  %2296 = vmatprep.mubr.f32.mxu0 0.0
  %2297 = vmatmul.mubr.f32.gmra.mrb[0].mxu0 %v989
  %v2298 = vpop.f32.mrb[0].mxu0
  %v2299 = vadd.f32 0.0, %v2298
  %v2300 = vpop.f32.mrb[0].mxu0
  %2301 = vmatprep.mubr.f32.mxu0 0.0
  %2302 = vmatmul.mubr.f32.gmra.mrb[0].mxu0 %v992
  %v2303 = vpop.f32.mrb[0].mxu0
  %v2304 = vadd.f32 0.0, %v2303
  %v2305 = vpop.f32.mrb[0].mxu0
  %2306 = vmatprep.mubr.f32.mxu0 0.0
  %2307 = vmatmul.mubr.f32.gmra.mrb[0].mxu0 %v995
  %v2308 = vpop.f32.mrb[0].mxu0
  %v2309 = vadd.f32 0.0, %v2308
  %v2310 = vpop.f32.mrb[0].mxu0
  %2311 = vmatprep.mubr.f32.mxu0 0.0
  %2312 = vmatmul.mubr.f32.gmra.mrb[0].mxu0 %v998
  %v2313 = vpop.f32.mrb[0].mxu0
  %v2314 = vadd.f32 0.0, %v2313
  %v2315 = vpop.f32.mrb[0].mxu0
  %2316 = vmatprep.mubr.f32.mxu0 0.0
  %2317 = vmatmul.mubr.f32.gmra.mrb[0].mxu0 %v1001
  %v2318 = vpop.f32.mrb[0].mxu0
  %v2319 = vadd.f32 0.0, %v2318
  %v2320 = vpop.f32.mrb[0].mxu0
  %2321 = vmatprep.mubr.f32.mxu0 0.0
  %2322 = vmatmul.mubr.f32.gmra.mrb[0].mxu0 %v1004
  %v2323 = vpop.f32.mrb[0].mxu0
  %v2324 = vadd.f32 0.0, %v2323
  %v2325 = vpop.f32.mrb[0].mxu0
  %2326 = vmatprep.mubr.f32.mxu0 0.0
  %2327 = vmatmul.mubr.f32.gmra.mrb[0].mxu0 %v1007
  %v2328 = vpop.f32.mrb[0].mxu0
  %v2329 = vadd.f32 0.0, %v2328
  %v2330 = vpop.f32.mrb[0].mxu0
  %2331 = vmatprep.mubr.f32.mxu0 0.0
  %2332 = vmatmul.mubr.f32.gmra.mrb[0].mxu0 %v1010
  %v2333 = vpop.f32.mrb[0].mxu0
  %v2334 = vadd.f32 0.0, %v2333
  %v2335 = vpop.f32.mrb[0].mxu0
  %2336 = vmatprep.mubr.f32.mxu0 0.0
  %2337 = vmatmul.mubr.f32.gmra.mrb[0].mxu0 %v1013
  %v2338 = vpop.f32.mrb[0].mxu0
  %v2339 = vadd.f32 0.0, %v2338
  %v2340 = vpop.f32.mrb[0].mxu0
  %2341 = vmatprep.mubr.f32.mxu0 0.0
  %2342 = vmatmul.mubr.f32.gmra.mrb[0].mxu0 %v1016
  %v2343 = vpop.f32.mrb[0].mxu0
  %v2344 = vadd.f32 0.0, %v2343
  %v2345 = vpop.f32.mrb[0].mxu0
  %2346 = vmatprep.mubr.f32.mxu0 0.0
  %2347 = vmatmul.mubr.f32.gmra.mrb[0].mxu0 %v1019
  %v2348 = vpop.f32.mrb[0].mxu0
  %v2349 = vadd.f32 0.0, %v2348
  %v2350 = vpop.f32.mrb[0].mxu0
  %2351 = vmatprep.mubr.f32.mxu0 0.0
  %2352 = vmatmul.mubr.f32.gmra.mrb[0].mxu0 %v1022
  %v2353 = vpop.f32.mrb[0].mxu0
  %v2354 = vadd.f32 0.0, %v2353
  %v2355 = vpop.f32.mrb[0].mxu0
  %2356 = vmatprep.mubr.f32.mxu0 0.0
  %2357 = vmatmul.mubr.f32.gmra.mrb[0].mxu0 %v1025
  %v2358 = vpop.f32.mrb[0].mxu0
  %v2359 = vadd.f32 0.0, %v2358
  %v2360 = vpop.f32.mrb[0].mxu0
  %2361 = vmatprep.mubr.f32.mxu0 0.0
  %2362 = vmatmul.mubr.f32.gmra.mrb[0].mxu0 %v1028
  %v2363 = vpop.f32.mrb[0].mxu0
  %v2364 = vadd.f32 0.0, %v2363
  %v2365 = vpop.f32.mrb[0].mxu0
  %2366 = vmatprep.mubr.f32.mxu0 0.0
  %2367 = vmatmul.mubr.f32.gmra.mrb[0].mxu0 %v1031
  %v2368 = vpop.f32.mrb[0].mxu0
  %v2369 = vadd.f32 0.0, %v2368
  %v2370 = vpop.f32.mrb[0].mxu0
  %2371 = vmatprep.mubr.f32.mxu0 0.0
  %2372 = vmatmul.mubr.f32.gmra.mrb[0].mxu0 %v1034
  %v2373 = vpop.f32.mrb[0].mxu0
  %v2374 = vadd.f32 0.0, %v2373
  %v2375 = vpop.f32.mrb[0].mxu0
  %2376 = vmatprep.mubr.f32.mxu0 0.0
  %2377 = vmatmul.mubr.f32.gmra.mrb[0].mxu0 %v1037
  %v2378 = vpop.f32.mrb[0].mxu0
  %v2379 = vadd.f32 0.0, %v2378
  %v2380 = vpop.f32.mrb[0].mxu0
  %2381 = vmatprep.mubr.f32.mxu0 0.0
  %2382 = vmatmul.mubr.f32.gmra.mrb[0].mxu0 %v1040
  %v2383 = vpop.f32.mrb[0].mxu0
  %v2384 = vadd.f32 0.0, %v2383
  %v2385 = vpop.f32.mrb[0].mxu0
  %2386 = vdwg.mxu0
  %vm2387 = vcmp.gt.f32.partialorder %v1109, 0.0
  %vm2388 = vcmp.gt.f32.partialorder %v1114, 0.0
  %vm2389 = vcmp.gt.f32.partialorder %v1119, 0.0
  %vm2390 = vcmp.gt.f32.partialorder %v1124, 0.0
  %vm2391 = vcmp.gt.f32.partialorder %v1129, 0.0
  %vm2392 = vcmp.gt.f32.partialorder %v1134, 0.0
  %vm2393 = vcmp.gt.f32.partialorder %v1139, 0.0
  %vm2394 = vcmp.gt.f32.partialorder %v1144, 0.0
  %vm2395 = vcmp.gt.f32.partialorder %v1149, 0.0
  %vm2396 = vcmp.gt.f32.partialorder %v1154, 0.0
  %vm2397 = vcmp.gt.f32.partialorder %v1159, 0.0
  %vm2398 = vcmp.gt.f32.partialorder %v1164, 0.0
  %vm2399 = vcmp.gt.f32.partialorder %v1169, 0.0
  %vm2400 = vcmp.gt.f32.partialorder %v1174, 0.0
  %vm2401 = vcmp.gt.f32.partialorder %v1179, 0.0
  %vm2402 = vcmp.gt.f32.partialorder %v1184, 0.0
  %vm2403 = vcmp.gt.f32.partialorder %v1189, 0.0
  %vm2404 = vcmp.gt.f32.partialorder %v1194, 0.0
  %vm2405 = vcmp.gt.f32.partialorder %v1199, 0.0
  %vm2406 = vcmp.gt.f32.partialorder %v1204, 0.0
  %vm2407 = vcmp.gt.f32.partialorder %v1209, 0.0
  %vm2408 = vcmp.gt.f32.partialorder %v1214, 0.0
  %vm2409 = vcmp.gt.f32.partialorder %v1219, 0.0
  %vm2410 = vcmp.gt.f32.partialorder %v1224, 0.0
  %vm2411 = vcmp.gt.f32.partialorder %v1229, 0.0
  %vm2412 = vcmp.gt.f32.partialorder %v1234, 0.0
  %vm2413 = vcmp.gt.f32.partialorder %v1239, 0.0
  %vm2414 = vcmp.gt.f32.partialorder %v1244, 0.0
  %vm2415 = vcmp.gt.f32.partialorder %v1249, 0.0
  %vm2416 = vcmp.gt.f32.partialorder %v1254, 0.0
  %vm2417 = vcmp.gt.f32.partialorder %v1259, 0.0
  %vm2418 = vcmp.gt.f32.partialorder %v1264, 0.0
  %vm2419 = vcmp.gt.f32.partialorder %v1269, 0.0
  %vm2420 = vcmp.gt.f32.partialorder %v1274, 0.0
  %vm2421 = vcmp.gt.f32.partialorder %v1279, 0.0
  %vm2422 = vcmp.gt.f32.partialorder %v1284, 0.0
  %vm2423 = vcmp.gt.f32.partialorder %v1289, 0.0
  %vm2424 = vcmp.gt.f32.partialorder %v1294, 0.0
  %vm2425 = vcmp.gt.f32.partialorder %v1299, 0.0
  %vm2426 = vcmp.gt.f32.partialorder %v1304, 0.0
  %vm2427 = vcmp.gt.f32.partialorder %v1309, 0.0
  %vm2428 = vcmp.gt.f32.partialorder %v1314, 0.0
  %vm2429 = vcmp.gt.f32.partialorder %v1319, 0.0
  %vm2430 = vcmp.gt.f32.partialorder %v1324, 0.0
  %vm2431 = vcmp.gt.f32.partialorder %v1329, 0.0
  %vm2432 = vcmp.gt.f32.partialorder %v1334, 0.0
  %vm2433 = vcmp.gt.f32.partialorder %v1339, 0.0
  %vm2434 = vcmp.gt.f32.partialorder %v1344, 0.0
  %vm2435 = vcmp.gt.f32.partialorder %v1349, 0.0
  %vm2436 = vcmp.gt.f32.partialorder %v1354, 0.0
  %vm2437 = vcmp.gt.f32.partialorder %v1359, 0.0
  %vm2438 = vcmp.gt.f32.partialorder %v1364, 0.0
  %vm2439 = vcmp.gt.f32.partialorder %v1369, 0.0
  %vm2440 = vcmp.gt.f32.partialorder %v1374, 0.0
  %vm2441 = vcmp.gt.f32.partialorder %v1379, 0.0
  %vm2442 = vcmp.gt.f32.partialorder %v1384, 0.0
  %vm2443 = vcmp.gt.f32.partialorder %v1389, 0.0
  %vm2444 = vcmp.gt.f32.partialorder %v1394, 0.0
  %vm2445 = vcmp.gt.f32.partialorder %v1399, 0.0
  %vm2446 = vcmp.gt.f32.partialorder %v1404, 0.0
  %vm2447 = vcmp.gt.f32.partialorder %v1409, 0.0
  %vm2448 = vcmp.gt.f32.partialorder %v1414, 0.0
  %vm2449 = vcmp.gt.f32.partialorder %v1419, 0.0
  %vm2450 = vcmp.gt.f32.partialorder %v1424, 0.0
  %vm2451 = vcmp.gt.f32.partialorder %v1429, 0.0
  %vm2452 = vcmp.gt.f32.partialorder %v1434, 0.0
  %vm2453 = vcmp.gt.f32.partialorder %v1439, 0.0
  %vm2454 = vcmp.gt.f32.partialorder %v1444, 0.0
  %vm2455 = vcmp.gt.f32.partialorder %v1449, 0.0
  %vm2456 = vcmp.gt.f32.partialorder %v1454, 0.0
  %vm2457 = vcmp.gt.f32.partialorder %v1459, 0.0
  %vm2458 = vcmp.gt.f32.partialorder %v1464, 0.0
  %vm2459 = vcmp.gt.f32.partialorder %v1469, 0.0
  %vm2460 = vcmp.gt.f32.partialorder %v1474, 0.0
  %vm2461 = vcmp.gt.f32.partialorder %v1479, 0.0
  %vm2462 = vcmp.gt.f32.partialorder %v1484, 0.0
  %vm2463 = vcmp.gt.f32.partialorder %v1489, 0.0
  %vm2464 = vcmp.gt.f32.partialorder %v1494, 0.0
  %vm2465 = vcmp.gt.f32.partialorder %v1499, 0.0
  %vm2466 = vcmp.gt.f32.partialorder %v1504, 0.0
  %vm2467 = vcmp.gt.f32.partialorder %v1509, 0.0
  %vm2468 = vcmp.gt.f32.partialorder %v1514, 0.0
  %vm2469 = vcmp.gt.f32.partialorder %v1519, 0.0
  %vm2470 = vcmp.gt.f32.partialorder %v1524, 0.0
  %vm2471 = vcmp.gt.f32.partialorder %v1529, 0.0
  %vm2472 = vcmp.gt.f32.partialorder %v1534, 0.0
  %vm2473 = vcmp.gt.f32.partialorder %v1539, 0.0
  %vm2474 = vcmp.gt.f32.partialorder %v1544, 0.0
  %vm2475 = vcmp.gt.f32.partialorder %v1549, 0.0
  %vm2476 = vcmp.gt.f32.partialorder %v1554, 0.0
  %vm2477 = vcmp.gt.f32.partialorder %v1559, 0.0
  %vm2478 = vcmp.gt.f32.partialorder %v1564, 0.0
  %vm2479 = vcmp.gt.f32.partialorder %v1569, 0.0
  %vm2480 = vcmp.gt.f32.partialorder %v1574, 0.0
  %vm2481 = vcmp.gt.f32.partialorder %v1579, 0.0
  %vm2482 = vcmp.gt.f32.partialorder %v1584, 0.0
  %vm2483 = vcmp.gt.f32.partialorder %v1589, 0.0
  %vm2484 = vcmp.gt.f32.partialorder %v1594, 0.0
  %vm2485 = vcmp.gt.f32.partialorder %v1599, 0.0
  %vm2486 = vcmp.gt.f32.partialorder %v1604, 0.0
  %vm2487 = vcmp.gt.f32.partialorder %v1609, 0.0
  %vm2488 = vcmp.gt.f32.partialorder %v1614, 0.0
  %vm2489 = vcmp.gt.f32.partialorder %v1619, 0.0
  %vm2490 = vcmp.gt.f32.partialorder %v1624, 0.0
  %vm2491 = vcmp.gt.f32.partialorder %v1629, 0.0
  %vm2492 = vcmp.gt.f32.partialorder %v1634, 0.0
  %vm2493 = vcmp.gt.f32.partialorder %v1639, 0.0
  %vm2494 = vcmp.gt.f32.partialorder %v1644, 0.0
  %vm2495 = vcmp.gt.f32.partialorder %v1649, 0.0
  %vm2496 = vcmp.gt.f32.partialorder %v1654, 0.0
  %vm2497 = vcmp.gt.f32.partialorder %v1659, 0.0
  %vm2498 = vcmp.gt.f32.partialorder %v1664, 0.0
  %vm2499 = vcmp.gt.f32.partialorder %v1669, 0.0
  %vm2500 = vcmp.gt.f32.partialorder %v1674, 0.0
  %vm2501 = vcmp.gt.f32.partialorder %v1679, 0.0
  %vm2502 = vcmp.gt.f32.partialorder %v1684, 0.0
  %vm2503 = vcmp.gt.f32.partialorder %v1689, 0.0
  %vm2504 = vcmp.gt.f32.partialorder %v1694, 0.0
  %vm2505 = vcmp.gt.f32.partialorder %v1699, 0.0
  %vm2506 = vcmp.gt.f32.partialorder %v1704, 0.0
  %vm2507 = vcmp.gt.f32.partialorder %v1709, 0.0
  %vm2508 = vcmp.gt.f32.partialorder %v1714, 0.0
  %vm2509 = vcmp.gt.f32.partialorder %v1719, 0.0
  %vm2510 = vcmp.gt.f32.partialorder %v1724, 0.0
  %vm2511 = vcmp.gt.f32.partialorder %v1729, 0.0
  %vm2512 = vcmp.gt.f32.partialorder %v1734, 0.0
  %vm2513 = vcmp.gt.f32.partialorder %v1739, 0.0
  %vm2514 = vcmp.gt.f32.partialorder %v1744, 0.0
  %vm2515 = vcmp.gt.f32.partialorder %v1749, 0.0
  %vm2516 = vcmp.gt.f32.partialorder %v1754, 0.0
  %vm2517 = vcmp.gt.f32.partialorder %v1759, 0.0
  %vm2518 = vcmp.gt.f32.partialorder %v1764, 0.0
  %vm2519 = vcmp.gt.f32.partialorder %v1769, 0.0
  %vm2520 = vcmp.gt.f32.partialorder %v1774, 0.0
  %vm2521 = vcmp.gt.f32.partialorder %v1779, 0.0
  %vm2522 = vcmp.gt.f32.partialorder %v1784, 0.0
  %vm2523 = vcmp.gt.f32.partialorder %v1789, 0.0
  %vm2524 = vcmp.gt.f32.partialorder %v1794, 0.0
  %vm2525 = vcmp.gt.f32.partialorder %v1799, 0.0
  %vm2526 = vcmp.gt.f32.partialorder %v1804, 0.0
  %vm2527 = vcmp.gt.f32.partialorder %v1809, 0.0
  %vm2528 = vcmp.gt.f32.partialorder %v1814, 0.0
  %vm2529 = vcmp.gt.f32.partialorder %v1819, 0.0
  %vm2530 = vcmp.gt.f32.partialorder %v1824, 0.0
  %vm2531 = vcmp.gt.f32.partialorder %v1829, 0.0
  %vm2532 = vcmp.gt.f32.partialorder %v1834, 0.0
  %vm2533 = vcmp.gt.f32.partialorder %v1839, 0.0
  %vm2534 = vcmp.gt.f32.partialorder %v1844, 0.0
  %vm2535 = vcmp.gt.f32.partialorder %v1849, 0.0
  %vm2536 = vcmp.gt.f32.partialorder %v1854, 0.0
  %vm2537 = vcmp.gt.f32.partialorder %v1859, 0.0
  %vm2538 = vcmp.gt.f32.partialorder %v1864, 0.0
  %vm2539 = vcmp.gt.f32.partialorder %v1869, 0.0
  %vm2540 = vcmp.gt.f32.partialorder %v1874, 0.0
  %vm2541 = vcmp.gt.f32.partialorder %v1879, 0.0
  %vm2542 = vcmp.gt.f32.partialorder %v1884, 0.0
  %vm2543 = vcmp.gt.f32.partialorder %v1889, 0.0
  %vm2544 = vcmp.gt.f32.partialorder %v1894, 0.0
  %vm2545 = vcmp.gt.f32.partialorder %v1899, 0.0
  %vm2546 = vcmp.gt.f32.partialorder %v1904, 0.0
  %vm2547 = vcmp.gt.f32.partialorder %v1909, 0.0
  %vm2548 = vcmp.gt.f32.partialorder %v1914, 0.0
  %vm2549 = vcmp.gt.f32.partialorder %v1919, 0.0
  %vm2550 = vcmp.gt.f32.partialorder %v1924, 0.0
  %vm2551 = vcmp.gt.f32.partialorder %v1929, 0.0
  %vm2552 = vcmp.gt.f32.partialorder %v1934, 0.0
  %vm2553 = vcmp.gt.f32.partialorder %v1939, 0.0
  %vm2554 = vcmp.gt.f32.partialorder %v1944, 0.0
  %vm2555 = vcmp.gt.f32.partialorder %v1949, 0.0
  %vm2556 = vcmp.gt.f32.partialorder %v1954, 0.0
  %vm2557 = vcmp.gt.f32.partialorder %v1959, 0.0
  %vm2558 = vcmp.gt.f32.partialorder %v1964, 0.0
  %vm2559 = vcmp.gt.f32.partialorder %v1969, 0.0
  %vm2560 = vcmp.gt.f32.partialorder %v1974, 0.0
  %vm2561 = vcmp.gt.f32.partialorder %v1979, 0.0
  %vm2562 = vcmp.gt.f32.partialorder %v1984, 0.0
  %vm2563 = vcmp.gt.f32.partialorder %v1989, 0.0
  %vm2564 = vcmp.gt.f32.partialorder %v1994, 0.0
  %vm2565 = vcmp.gt.f32.partialorder %v1999, 0.0
  %vm2566 = vcmp.gt.f32.partialorder %v2004, 0.0
  %vm2567 = vcmp.gt.f32.partialorder %v2009, 0.0
  %vm2568 = vcmp.gt.f32.partialorder %v2014, 0.0
  %vm2569 = vcmp.gt.f32.partialorder %v2019, 0.0
  %vm2570 = vcmp.gt.f32.partialorder %v2024, 0.0
  %vm2571 = vcmp.gt.f32.partialorder %v2029, 0.0
  %vm2572 = vcmp.gt.f32.partialorder %v2034, 0.0
  %vm2573 = vcmp.gt.f32.partialorder %v2039, 0.0
  %vm2574 = vcmp.gt.f32.partialorder %v2044, 0.0
  %vm2575 = vcmp.gt.f32.partialorder %v2049, 0.0
  %vm2576 = vcmp.gt.f32.partialorder %v2054, 0.0
  %vm2577 = vcmp.gt.f32.partialorder %v2059, 0.0
  %vm2578 = vcmp.gt.f32.partialorder %v2064, 0.0
  %vm2579 = vcmp.gt.f32.partialorder %v2069, 0.0
  %vm2580 = vcmp.gt.f32.partialorder %v2074, 0.0
  %vm2581 = vcmp.gt.f32.partialorder %v2079, 0.0
  %vm2582 = vcmp.gt.f32.partialorder %v2084, 0.0
  %vm2583 = vcmp.gt.f32.partialorder %v2089, 0.0
  %vm2584 = vcmp.gt.f32.partialorder %v2094, 0.0
  %vm2585 = vcmp.gt.f32.partialorder %v2099, 0.0
  %vm2586 = vcmp.gt.f32.partialorder %v2104, 0.0
  %vm2587 = vcmp.gt.f32.partialorder %v2109, 0.0
  %vm2588 = vcmp.gt.f32.partialorder %v2114, 0.0
  %vm2589 = vcmp.gt.f32.partialorder %v2119, 0.0
  %vm2590 = vcmp.gt.f32.partialorder %v2124, 0.0
  %vm2591 = vcmp.gt.f32.partialorder %v2129, 0.0
  %vm2592 = vcmp.gt.f32.partialorder %v2134, 0.0
  %vm2593 = vcmp.gt.f32.partialorder %v2139, 0.0
  %vm2594 = vcmp.gt.f32.partialorder %v2144, 0.0
  %vm2595 = vcmp.gt.f32.partialorder %v2149, 0.0
  %vm2596 = vcmp.gt.f32.partialorder %v2154, 0.0
  %vm2597 = vcmp.gt.f32.partialorder %v2159, 0.0
  %vm2598 = vcmp.gt.f32.partialorder %v2164, 0.0
  %vm2599 = vcmp.gt.f32.partialorder %v2169, 0.0
  %vm2600 = vcmp.gt.f32.partialorder %v2174, 0.0
  %vm2601 = vcmp.gt.f32.partialorder %v2179, 0.0
  %vm2602 = vcmp.gt.f32.partialorder %v2184, 0.0
  %vm2603 = vcmp.gt.f32.partialorder %v2189, 0.0
  %vm2604 = vcmp.gt.f32.partialorder %v2194, 0.0
  %vm2605 = vcmp.gt.f32.partialorder %v2199, 0.0
  %vm2606 = vcmp.gt.f32.partialorder %v2204, 0.0
  %vm2607 = vcmp.gt.f32.partialorder %v2209, 0.0
  %vm2608 = vcmp.gt.f32.partialorder %v2214, 0.0
  %vm2609 = vcmp.gt.f32.partialorder %v2219, 0.0
  %vm2610 = vcmp.gt.f32.partialorder %v2224, 0.0
  %vm2611 = vcmp.gt.f32.partialorder %v2229, 0.0
  %vm2612 = vcmp.gt.f32.partialorder %v2234, 0.0
  %vm2613 = vcmp.gt.f32.partialorder %v2239, 0.0
  %vm2614 = vcmp.gt.f32.partialorder %v2244, 0.0
  %vm2615 = vcmp.gt.f32.partialorder %v2249, 0.0
  %vm2616 = vcmp.gt.f32.partialorder %v2254, 0.0
  %vm2617 = vcmp.gt.f32.partialorder %v2259, 0.0
  %vm2618 = vcmp.gt.f32.partialorder %v2264, 0.0
  %vm2619 = vcmp.gt.f32.partialorder %v2269, 0.0
  %vm2620 = vcmp.gt.f32.partialorder %v2274, 0.0
  %vm2621 = vcmp.gt.f32.partialorder %v2279, 0.0
  %vm2622 = vcmp.gt.f32.partialorder %v2284, 0.0
  %vm2623 = vcmp.gt.f32.partialorder %v2289, 0.0
  %vm2624 = vcmp.gt.f32.partialorder %v2294, 0.0
  %vm2625 = vcmp.gt.f32.partialorder %v2299, 0.0
  %vm2626 = vcmp.gt.f32.partialorder %v2304, 0.0
  %vm2627 = vcmp.gt.f32.partialorder %v2309, 0.0
  %vm2628 = vcmp.gt.f32.partialorder %v2314, 0.0
  %vm2629 = vcmp.gt.f32.partialorder %v2319, 0.0
  %vm2630 = vcmp.gt.f32.partialorder %v2324, 0.0
  %vm2631 = vcmp.gt.f32.partialorder %v2329, 0.0
  %vm2632 = vcmp.gt.f32.partialorder %v2334, 0.0
  %vm2633 = vcmp.gt.f32.partialorder %v2339, 0.0
  %vm2634 = vcmp.gt.f32.partialorder %v2344, 0.0
  %vm2635 = vcmp.gt.f32.partialorder %v2349, 0.0
  %vm2636 = vcmp.gt.f32.partialorder %v2354, 0.0
  %vm2637 = vcmp.gt.f32.partialorder %v2359, 0.0
  %vm2638 = vcmp.gt.f32.partialorder %v2364, 0.0
  %vm2639 = vcmp.gt.f32.partialorder %v2369, 0.0
  %vm2640 = vcmp.gt.f32.partialorder %v2374, 0.0
  %vm2641 = vcmp.gt.f32.partialorder %v2379, 0.0
  %vm2642 = vcmp.gt.f32.partialorder %v2384, 0.0
  %v2643 = vmul.f32 %v1109, 0.2
  %v2644 = vmul.f32 %v1114, 0.2
  %v2645 = vmul.f32 %v1119, 0.2
  %v2646 = vmul.f32 %v1124, 0.2
  %v2647 = vmul.f32 %v1129, 0.2
  %v2648 = vmul.f32 %v1134, 0.2
  %v2649 = vmul.f32 %v1139, 0.2
  %v2650 = vmul.f32 %v1144, 0.2
  %v2651 = vmul.f32 %v1149, 0.2
  %v2652 = vmul.f32 %v1154, 0.2
  %v2653 = vmul.f32 %v1159, 0.2
  %v2654 = vmul.f32 %v1164, 0.2
  %v2655 = vmul.f32 %v1169, 0.2
  %v2656 = vmul.f32 %v1174, 0.2
  %v2657 = vmul.f32 %v1179, 0.2
  %v2658 = vmul.f32 %v1184, 0.2
  %v2659 = vmul.f32 %v1189, 0.2
  %v2660 = vmul.f32 %v1194, 0.2
  %v2661 = vmul.f32 %v1199, 0.2
  %v2662 = vmul.f32 %v1204, 0.2
  %v2663 = vmul.f32 %v1209, 0.2
  %v2664 = vmul.f32 %v1214, 0.2
  %v2665 = vmul.f32 %v1219, 0.2
  %v2666 = vmul.f32 %v1224, 0.2
  %v2667 = vmul.f32 %v1229, 0.2
  %v2668 = vmul.f32 %v1234, 0.2
  %v2669 = vmul.f32 %v1239, 0.2
  %v2670 = vmul.f32 %v1244, 0.2
  %v2671 = vmul.f32 %v1249, 0.2
  %v2672 = vmul.f32 %v1254, 0.2
  %v2673 = vmul.f32 %v1259, 0.2
  %v2674 = vmul.f32 %v1264, 0.2
  %v2675 = vmul.f32 %v1269, 0.2
  %v2676 = vmul.f32 %v1274, 0.2
  %v2677 = vmul.f32 %v1279, 0.2
  %v2678 = vmul.f32 %v1284, 0.2
  %v2679 = vmul.f32 %v1289, 0.2
  %v2680 = vmul.f32 %v1294, 0.2
  %v2681 = vmul.f32 %v1299, 0.2
  %v2682 = vmul.f32 %v1304, 0.2
  %v2683 = vmul.f32 %v1309, 0.2
  %v2684 = vmul.f32 %v1314, 0.2
  %v2685 = vmul.f32 %v1319, 0.2
  %v2686 = vmul.f32 %v1324, 0.2
  %v2687 = vmul.f32 %v1329, 0.2
  %v2688 = vmul.f32 %v1334, 0.2
  %v2689 = vmul.f32 %v1339, 0.2
  %v2690 = vmul.f32 %v1344, 0.2
  %v2691 = vmul.f32 %v1349, 0.2
  %v2692 = vmul.f32 %v1354, 0.2
  %v2693 = vmul.f32 %v1359, 0.2
  %v2694 = vmul.f32 %v1364, 0.2
  %v2695 = vmul.f32 %v1369, 0.2
  %v2696 = vmul.f32 %v1374, 0.2
  %v2697 = vmul.f32 %v1379, 0.2
  %v2698 = vmul.f32 %v1384, 0.2
  %v2699 = vmul.f32 %v1389, 0.2
  %v2700 = vmul.f32 %v1394, 0.2
  %v2701 = vmul.f32 %v1399, 0.2
  %v2702 = vmul.f32 %v1404, 0.2
  %v2703 = vmul.f32 %v1409, 0.2
  %v2704 = vmul.f32 %v1414, 0.2
  %v2705 = vmul.f32 %v1419, 0.2
  %v2706 = vmul.f32 %v1424, 0.2
  %v2707 = vmul.f32 %v1429, 0.2
  %v2708 = vmul.f32 %v1434, 0.2
  %v2709 = vmul.f32 %v1439, 0.2
  %v2710 = vmul.f32 %v1444, 0.2
  %v2711 = vmul.f32 %v1449, 0.2
  %v2712 = vmul.f32 %v1454, 0.2
  %v2713 = vmul.f32 %v1459, 0.2
  %v2714 = vmul.f32 %v1464, 0.2
  %v2715 = vmul.f32 %v1469, 0.2
  %v2716 = vmul.f32 %v1474, 0.2
  %v2717 = vmul.f32 %v1479, 0.2
  %v2718 = vmul.f32 %v1484, 0.2
  %v2719 = vmul.f32 %v1489, 0.2
  %v2720 = vmul.f32 %v1494, 0.2
  %v2721 = vmul.f32 %v1499, 0.2
  %v2722 = vmul.f32 %v1504, 0.2
  %v2723 = vmul.f32 %v1509, 0.2
  %v2724 = vmul.f32 %v1514, 0.2
  %v2725 = vmul.f32 %v1519, 0.2
  %v2726 = vmul.f32 %v1524, 0.2
  %v2727 = vmul.f32 %v1529, 0.2
  %v2728 = vmul.f32 %v1534, 0.2
  %v2729 = vmul.f32 %v1539, 0.2
  %v2730 = vmul.f32 %v1544, 0.2
  %v2731 = vmul.f32 %v1549, 0.2
  %v2732 = vmul.f32 %v1554, 0.2
  %v2733 = vmul.f32 %v1559, 0.2
  %v2734 = vmul.f32 %v1564, 0.2
  %v2735 = vmul.f32 %v1569, 0.2
  %v2736 = vmul.f32 %v1574, 0.2
  %v2737 = vmul.f32 %v1579, 0.2
  %v2738 = vmul.f32 %v1584, 0.2
  %v2739 = vmul.f32 %v1589, 0.2
  %v2740 = vmul.f32 %v1594, 0.2
  %v2741 = vmul.f32 %v1599, 0.2
  %v2742 = vmul.f32 %v1604, 0.2
  %v2743 = vmul.f32 %v1609, 0.2
  %v2744 = vmul.f32 %v1614, 0.2
  %v2745 = vmul.f32 %v1619, 0.2
  %v2746 = vmul.f32 %v1624, 0.2
  %v2747 = vmul.f32 %v1629, 0.2
  %v2748 = vmul.f32 %v1634, 0.2
  %v2749 = vmul.f32 %v1639, 0.2
  %v2750 = vmul.f32 %v1644, 0.2
  %v2751 = vmul.f32 %v1649, 0.2
  %v2752 = vmul.f32 %v1654, 0.2
  %v2753 = vmul.f32 %v1659, 0.2
  %v2754 = vmul.f32 %v1664, 0.2
  %v2755 = vmul.f32 %v1669, 0.2
  %v2756 = vmul.f32 %v1674, 0.2
  %v2757 = vmul.f32 %v1679, 0.2
  %v2758 = vmul.f32 %v1684, 0.2
  %v2759 = vmul.f32 %v1689, 0.2
  %v2760 = vmul.f32 %v1694, 0.2
  %v2761 = vmul.f32 %v1699, 0.2
  %v2762 = vmul.f32 %v1704, 0.2
  %v2763 = vmul.f32 %v1709, 0.2
  %v2764 = vmul.f32 %v1714, 0.2
  %v2765 = vmul.f32 %v1719, 0.2
  %v2766 = vmul.f32 %v1724, 0.2
  %v2767 = vmul.f32 %v1729, 0.2
  %v2768 = vmul.f32 %v1734, 0.2
  %v2769 = vmul.f32 %v1739, 0.2
  %v2770 = vmul.f32 %v1744, 0.2
  %v2771 = vmul.f32 %v1749, 0.2
  %v2772 = vmul.f32 %v1754, 0.2
  %v2773 = vmul.f32 %v1759, 0.2
  %v2774 = vmul.f32 %v1764, 0.2
  %v2775 = vmul.f32 %v1769, 0.2
  %v2776 = vmul.f32 %v1774, 0.2
  %v2777 = vmul.f32 %v1779, 0.2
  %v2778 = vmul.f32 %v1784, 0.2
  %v2779 = vmul.f32 %v1789, 0.2
  %v2780 = vmul.f32 %v1794, 0.2
  %v2781 = vmul.f32 %v1799, 0.2
  %v2782 = vmul.f32 %v1804, 0.2
  %v2783 = vmul.f32 %v1809, 0.2
  %v2784 = vmul.f32 %v1814, 0.2
  %v2785 = vmul.f32 %v1819, 0.2
  %v2786 = vmul.f32 %v1824, 0.2
  %v2787 = vmul.f32 %v1829, 0.2
  %v2788 = vmul.f32 %v1834, 0.2
  %v2789 = vmul.f32 %v1839, 0.2
  %v2790 = vmul.f32 %v1844, 0.2
  %v2791 = vmul.f32 %v1849, 0.2
  %v2792 = vmul.f32 %v1854, 0.2
  %v2793 = vmul.f32 %v1859, 0.2
  %v2794 = vmul.f32 %v1864, 0.2
  %v2795 = vmul.f32 %v1869, 0.2
  %v2796 = vmul.f32 %v1874, 0.2
  %v2797 = vmul.f32 %v1879, 0.2
  %v2798 = vmul.f32 %v1884, 0.2
  %v2799 = vmul.f32 %v1889, 0.2
  %v2800 = vmul.f32 %v1894, 0.2
  %v2801 = vmul.f32 %v1899, 0.2
  %v2802 = vmul.f32 %v1904, 0.2
  %v2803 = vmul.f32 %v1909, 0.2
  %v2804 = vmul.f32 %v1914, 0.2
  %v2805 = vmul.f32 %v1919, 0.2
  %v2806 = vmul.f32 %v1924, 0.2
  %v2807 = vmul.f32 %v1929, 0.2
  %v2808 = vmul.f32 %v1934, 0.2
  %v2809 = vmul.f32 %v1939, 0.2
  %v2810 = vmul.f32 %v1944, 0.2
  %v2811 = vmul.f32 %v1949, 0.2
  %v2812 = vmul.f32 %v1954, 0.2
  %v2813 = vmul.f32 %v1959, 0.2
  %v2814 = vmul.f32 %v1964, 0.2
  %v2815 = vmul.f32 %v1969, 0.2
  %v2816 = vmul.f32 %v1974, 0.2
  %v2817 = vmul.f32 %v1979, 0.2
  %v2818 = vmul.f32 %v1984, 0.2
  %v2819 = vmul.f32 %v1989, 0.2
  %v2820 = vmul.f32 %v1994, 0.2
  %v2821 = vmul.f32 %v1999, 0.2
  %v2822 = vmul.f32 %v2004, 0.2
  %v2823 = vmul.f32 %v2009, 0.2
  %v2824 = vmul.f32 %v2014, 0.2
  %v2825 = vmul.f32 %v2019, 0.2
  %v2826 = vmul.f32 %v2024, 0.2
  %v2827 = vmul.f32 %v2029, 0.2
  %v2828 = vmul.f32 %v2034, 0.2
  %v2829 = vmul.f32 %v2039, 0.2
  %v2830 = vmul.f32 %v2044, 0.2
  %v2831 = vmul.f32 %v2049, 0.2
  %v2832 = vmul.f32 %v2054, 0.2
  %v2833 = vmul.f32 %v2059, 0.2
  %v2834 = vmul.f32 %v2064, 0.2
  %v2835 = vmul.f32 %v2069, 0.2
  %v2836 = vmul.f32 %v2074, 0.2
  %v2837 = vmul.f32 %v2079, 0.2
  %v2838 = vmul.f32 %v2084, 0.2
  %v2839 = vmul.f32 %v2089, 0.2
  %v2840 = vmul.f32 %v2094, 0.2
  %v2841 = vmul.f32 %v2099, 0.2
  %v2842 = vmul.f32 %v2104, 0.2
  %v2843 = vmul.f32 %v2109, 0.2
  %v2844 = vmul.f32 %v2114, 0.2
  %v2845 = vmul.f32 %v2119, 0.2
  %v2846 = vmul.f32 %v2124, 0.2
  %v2847 = vmul.f32 %v2129, 0.2
  %v2848 = vmul.f32 %v2134, 0.2
  %v2849 = vmul.f32 %v2139, 0.2
  %v2850 = vmul.f32 %v2144, 0.2
  %v2851 = vmul.f32 %v2149, 0.2
  %v2852 = vmul.f32 %v2154, 0.2
  %v2853 = vmul.f32 %v2159, 0.2
  %v2854 = vmul.f32 %v2164, 0.2
  %v2855 = vmul.f32 %v2169, 0.2
  %v2856 = vmul.f32 %v2174, 0.2
  %v2857 = vmul.f32 %v2179, 0.2
  %v2858 = vmul.f32 %v2184, 0.2
  %v2859 = vmul.f32 %v2189, 0.2
  %v2860 = vmul.f32 %v2194, 0.2
  %v2861 = vmul.f32 %v2199, 0.2
  %v2862 = vmul.f32 %v2204, 0.2
  %v2863 = vmul.f32 %v2209, 0.2
  %v2864 = vmul.f32 %v2214, 0.2
  %v2865 = vmul.f32 %v2219, 0.2
  %v2866 = vmul.f32 %v2224, 0.2
  %v2867 = vmul.f32 %v2229, 0.2
  %v2868 = vmul.f32 %v2234, 0.2
  %v2869 = vmul.f32 %v2239, 0.2
  %v2870 = vmul.f32 %v2244, 0.2
  %v2871 = vmul.f32 %v2249, 0.2
  %v2872 = vmul.f32 %v2254, 0.2
  %v2873 = vmul.f32 %v2259, 0.2
  %v2874 = vmul.f32 %v2264, 0.2
  %v2875 = vmul.f32 %v2269, 0.2
  %v2876 = vmul.f32 %v2274, 0.2
  %v2877 = vmul.f32 %v2279, 0.2
  %v2878 = vmul.f32 %v2284, 0.2
  %v2879 = vmul.f32 %v2289, 0.2
  %v2880 = vmul.f32 %v2294, 0.2
  %v2881 = vmul.f32 %v2299, 0.2
  %v2882 = vmul.f32 %v2304, 0.2
  %v2883 = vmul.f32 %v2309, 0.2
  %v2884 = vmul.f32 %v2314, 0.2
  %v2885 = vmul.f32 %v2319, 0.2
  %v2886 = vmul.f32 %v2324, 0.2
  %v2887 = vmul.f32 %v2329, 0.2
  %v2888 = vmul.f32 %v2334, 0.2
  %v2889 = vmul.f32 %v2339, 0.2
  %v2890 = vmul.f32 %v2344, 0.2
  %v2891 = vmul.f32 %v2349, 0.2
  %v2892 = vmul.f32 %v2354, 0.2
  %v2893 = vmul.f32 %v2359, 0.2
  %v2894 = vmul.f32 %v2364, 0.2
  %v2895 = vmul.f32 %v2369, 0.2
  %v2896 = vmul.f32 %v2374, 0.2
  %v2897 = vmul.f32 %v2379, 0.2
  %v2898 = vmul.f32 %v2384, 0.2
  %v2899 = vsel %vm2387, %v1109, %v2643
  %v2900 = vsel %vm2388, %v1114, %v2644
  %v2901 = vsel %vm2389, %v1119, %v2645
  %v2902 = vsel %vm2390, %v1124, %v2646
  %v2903 = vsel %vm2391, %v1129, %v2647
  %v2904 = vsel %vm2392, %v1134, %v2648
  %v2905 = vsel %vm2393, %v1139, %v2649
  %v2906 = vsel %vm2394, %v1144, %v2650
  %v2907 = vsel %vm2395, %v1149, %v2651
  %v2908 = vsel %vm2396, %v1154, %v2652
  %v2909 = vsel %vm2397, %v1159, %v2653
  %v2910 = vsel %vm2398, %v1164, %v2654
  %v2911 = vsel %vm2399, %v1169, %v2655
  %v2912 = vsel %vm2400, %v1174, %v2656
  %v2913 = vsel %vm2401, %v1179, %v2657
  %v2914 = vsel %vm2402, %v1184, %v2658
  %v2915 = vsel %vm2403, %v1189, %v2659
  %v2916 = vsel %vm2404, %v1194, %v2660
  %v2917 = vsel %vm2405, %v1199, %v2661
  %v2918 = vsel %vm2406, %v1204, %v2662
  %v2919 = vsel %vm2407, %v1209, %v2663
  %v2920 = vsel %vm2408, %v1214, %v2664
  %v2921 = vsel %vm2409, %v1219, %v2665
  %v2922 = vsel %vm2410, %v1224, %v2666
  %v2923 = vsel %vm2411, %v1229, %v2667
  %v2924 = vsel %vm2412, %v1234, %v2668
  %v2925 = vsel %vm2413, %v1239, %v2669
  %v2926 = vsel %vm2414, %v1244, %v2670
  %v2927 = vsel %vm2415, %v1249, %v2671
  %v2928 = vsel %vm2416, %v1254, %v2672
  %v2929 = vsel %vm2417, %v1259, %v2673
  %v2930 = vsel %vm2418, %v1264, %v2674
  %v2931 = vsel %vm2419, %v1269, %v2675
  %v2932 = vsel %vm2420, %v1274, %v2676
  %v2933 = vsel %vm2421, %v1279, %v2677
  %v2934 = vsel %vm2422, %v1284, %v2678
  %v2935 = vsel %vm2423, %v1289, %v2679
  %v2936 = vsel %vm2424, %v1294, %v2680
  %v2937 = vsel %vm2425, %v1299, %v2681
  %v2938 = vsel %vm2426, %v1304, %v2682
  %v2939 = vsel %vm2427, %v1309, %v2683
  %v2940 = vsel %vm2428, %v1314, %v2684
  %v2941 = vsel %vm2429, %v1319, %v2685
  %v2942 = vsel %vm2430, %v1324, %v2686
  %v2943 = vsel %vm2431, %v1329, %v2687
  %v2944 = vsel %vm2432, %v1334, %v2688
  %v2945 = vsel %vm2433, %v1339, %v2689
  %v2946 = vsel %vm2434, %v1344, %v2690
  %v2947 = vsel %vm2435, %v1349, %v2691
  %v2948 = vsel %vm2436, %v1354, %v2692
  %v2949 = vsel %vm2437, %v1359, %v2693
  %v2950 = vsel %vm2438, %v1364, %v2694
  %v2951 = vsel %vm2439, %v1369, %v2695
  %v2952 = vsel %vm2440, %v1374, %v2696
  %v2953 = vsel %vm2441, %v1379, %v2697
  %v2954 = vsel %vm2442, %v1384, %v2698
  %v2955 = vsel %vm2443, %v1389, %v2699
  %v2956 = vsel %vm2444, %v1394, %v2700
  %v2957 = vsel %vm2445, %v1399, %v2701
  %v2958 = vsel %vm2446, %v1404, %v2702
  %v2959 = vsel %vm2447, %v1409, %v2703
  %v2960 = vsel %vm2448, %v1414, %v2704
  %v2961 = vsel %vm2449, %v1419, %v2705
  %v2962 = vsel %vm2450, %v1424, %v2706
  %v2963 = vsel %vm2451, %v1429, %v2707
  %v2964 = vsel %vm2452, %v1434, %v2708
  %v2965 = vsel %vm2453, %v1439, %v2709
  %v2966 = vsel %vm2454, %v1444, %v2710
  %v2967 = vsel %vm2455, %v1449, %v2711
  %v2968 = vsel %vm2456, %v1454, %v2712
  %v2969 = vsel %vm2457, %v1459, %v2713
  %v2970 = vsel %vm2458, %v1464, %v2714
  %v2971 = vsel %vm2459, %v1469, %v2715
  %v2972 = vsel %vm2460, %v1474, %v2716
  %v2973 = vsel %vm2461, %v1479, %v2717
  %v2974 = vsel %vm2462, %v1484, %v2718
  %v2975 = vsel %vm2463, %v1489, %v2719
  %v2976 = vsel %vm2464, %v1494, %v2720
  %v2977 = vsel %vm2465, %v1499, %v2721
  %v2978 = vsel %vm2466, %v1504, %v2722
  %v2979 = vsel %vm2467, %v1509, %v2723
  %v2980 = vsel %vm2468, %v1514, %v2724
  %v2981 = vsel %vm2469, %v1519, %v2725
  %v2982 = vsel %vm2470, %v1524, %v2726
  %v2983 = vsel %vm2471, %v1529, %v2727
  %v2984 = vsel %vm2472, %v1534, %v2728
  %v2985 = vsel %vm2473, %v1539, %v2729
  %v2986 = vsel %vm2474, %v1544, %v2730
  %v2987 = vsel %vm2475, %v1549, %v2731
  %v2988 = vsel %vm2476, %v1554, %v2732
  %v2989 = vsel %vm2477, %v1559, %v2733
  %v2990 = vsel %vm2478, %v1564, %v2734
  %v2991 = vsel %vm2479, %v1569, %v2735
  %v2992 = vsel %vm2480, %v1574, %v2736
  %v2993 = vsel %vm2481, %v1579, %v2737
  %v2994 = vsel %vm2482, %v1584, %v2738
  %v2995 = vsel %vm2483, %v1589, %v2739
  %v2996 = vsel %vm2484, %v1594, %v2740
  %v2997 = vsel %vm2485, %v1599, %v2741
  %v2998 = vsel %vm2486, %v1604, %v2742
  %v2999 = vsel %vm2487, %v1609, %v2743
  %v3000 = vsel %vm2488, %v1614, %v2744
  %v3001 = vsel %vm2489, %v1619, %v2745
  %v3002 = vsel %vm2490, %v1624, %v2746
  %v3003 = vsel %vm2491, %v1629, %v2747
  %v3004 = vsel %vm2492, %v1634, %v2748
  %v3005 = vsel %vm2493, %v1639, %v2749
  %v3006 = vsel %vm2494, %v1644, %v2750
  %v3007 = vsel %vm2495, %v1649, %v2751
  %v3008 = vsel %vm2496, %v1654, %v2752
  %v3009 = vsel %vm2497, %v1659, %v2753
  %v3010 = vsel %vm2498, %v1664, %v2754
  %v3011 = vsel %vm2499, %v1669, %v2755
  %v3012 = vsel %vm2500, %v1674, %v2756
  %v3013 = vsel %vm2501, %v1679, %v2757
  %v3014 = vsel %vm2502, %v1684, %v2758
  %v3015 = vsel %vm2503, %v1689, %v2759
  %v3016 = vsel %vm2504, %v1694, %v2760
  %v3017 = vsel %vm2505, %v1699, %v2761
  %v3018 = vsel %vm2506, %v1704, %v2762
  %v3019 = vsel %vm2507, %v1709, %v2763
  %v3020 = vsel %vm2508, %v1714, %v2764
  %v3021 = vsel %vm2509, %v1719, %v2765
  %v3022 = vsel %vm2510, %v1724, %v2766
  %v3023 = vsel %vm2511, %v1729, %v2767
  %v3024 = vsel %vm2512, %v1734, %v2768
  %v3025 = vsel %vm2513, %v1739, %v2769
  %v3026 = vsel %vm2514, %v1744, %v2770
  %v3027 = vsel %vm2515, %v1749, %v2771
  %v3028 = vsel %vm2516, %v1754, %v2772
  %v3029 = vsel %vm2517, %v1759, %v2773
  %v3030 = vsel %vm2518, %v1764, %v2774
  %v3031 = vsel %vm2519, %v1769, %v2775
  %v3032 = vsel %vm2520, %v1774, %v2776
  %v3033 = vsel %vm2521, %v1779, %v2777
  %v3034 = vsel %vm2522, %v1784, %v2778
  %v3035 = vsel %vm2523, %v1789, %v2779
  %v3036 = vsel %vm2524, %v1794, %v2780
  %v3037 = vsel %vm2525, %v1799, %v2781
  %v3038 = vsel %vm2526, %v1804, %v2782
  %v3039 = vsel %vm2527, %v1809, %v2783
  %v3040 = vsel %vm2528, %v1814, %v2784
  %v3041 = vsel %vm2529, %v1819, %v2785
  %v3042 = vsel %vm2530, %v1824, %v2786
  %v3043 = vsel %vm2531, %v1829, %v2787
  %v3044 = vsel %vm2532, %v1834, %v2788
  %v3045 = vsel %vm2533, %v1839, %v2789
  %v3046 = vsel %vm2534, %v1844, %v2790
  %v3047 = vsel %vm2535, %v1849, %v2791
  %v3048 = vsel %vm2536, %v1854, %v2792
  %v3049 = vsel %vm2537, %v1859, %v2793
  %v3050 = vsel %vm2538, %v1864, %v2794
  %v3051 = vsel %vm2539, %v1869, %v2795
  %v3052 = vsel %vm2540, %v1874, %v2796
  %v3053 = vsel %vm2541, %v1879, %v2797
  %v3054 = vsel %vm2542, %v1884, %v2798
  %v3055 = vsel %vm2543, %v1889, %v2799
  %v3056 = vsel %vm2544, %v1894, %v2800
  %v3057 = vsel %vm2545, %v1899, %v2801
  %v3058 = vsel %vm2546, %v1904, %v2802
  %v3059 = vsel %vm2547, %v1909, %v2803
  %v3060 = vsel %vm2548, %v1914, %v2804
  %v3061 = vsel %vm2549, %v1919, %v2805
  %v3062 = vsel %vm2550, %v1924, %v2806
  %v3063 = vsel %vm2551, %v1929, %v2807
  %v3064 = vsel %vm2552, %v1934, %v2808
  %v3065 = vsel %vm2553, %v1939, %v2809
  %v3066 = vsel %vm2554, %v1944, %v2810
  %v3067 = vsel %vm2555, %v1949, %v2811
  %v3068 = vsel %vm2556, %v1954, %v2812
  %v3069 = vsel %vm2557, %v1959, %v2813
  %v3070 = vsel %vm2558, %v1964, %v2814
  %v3071 = vsel %vm2559, %v1969, %v2815
  %v3072 = vsel %vm2560, %v1974, %v2816
  %v3073 = vsel %vm2561, %v1979, %v2817
  %v3074 = vsel %vm2562, %v1984, %v2818
  %v3075 = vsel %vm2563, %v1989, %v2819
  %v3076 = vsel %vm2564, %v1994, %v2820
  %v3077 = vsel %vm2565, %v1999, %v2821
  %v3078 = vsel %vm2566, %v2004, %v2822
  %v3079 = vsel %vm2567, %v2009, %v2823
  %v3080 = vsel %vm2568, %v2014, %v2824
  %v3081 = vsel %vm2569, %v2019, %v2825
  %v3082 = vsel %vm2570, %v2024, %v2826
  %v3083 = vsel %vm2571, %v2029, %v2827
  %v3084 = vsel %vm2572, %v2034, %v2828
  %v3085 = vsel %vm2573, %v2039, %v2829
  %v3086 = vsel %vm2574, %v2044, %v2830
  %v3087 = vsel %vm2575, %v2049, %v2831
  %v3088 = vsel %vm2576, %v2054, %v2832
  %v3089 = vsel %vm2577, %v2059, %v2833
  %v3090 = vsel %vm2578, %v2064, %v2834
  %v3091 = vsel %vm2579, %v2069, %v2835
  %v3092 = vsel %vm2580, %v2074, %v2836
  %v3093 = vsel %vm2581, %v2079, %v2837
  %v3094 = vsel %vm2582, %v2084, %v2838
  %v3095 = vsel %vm2583, %v2089, %v2839
  %v3096 = vsel %vm2584, %v2094, %v2840
  %v3097 = vsel %vm2585, %v2099, %v2841
  %v3098 = vsel %vm2586, %v2104, %v2842
  %v3099 = vsel %vm2587, %v2109, %v2843
  %v3100 = vsel %vm2588, %v2114, %v2844
  %v3101 = vsel %vm2589, %v2119, %v2845
  %v3102 = vsel %vm2590, %v2124, %v2846
  %v3103 = vsel %vm2591, %v2129, %v2847
  %v3104 = vsel %vm2592, %v2134, %v2848
  %v3105 = vsel %vm2593, %v2139, %v2849
  %v3106 = vsel %vm2594, %v2144, %v2850
  %v3107 = vsel %vm2595, %v2149, %v2851
  %v3108 = vsel %vm2596, %v2154, %v2852
  %v3109 = vsel %vm2597, %v2159, %v2853
  %v3110 = vsel %vm2598, %v2164, %v2854
  %v3111 = vsel %vm2599, %v2169, %v2855
  %v3112 = vsel %vm2600, %v2174, %v2856
  %v3113 = vsel %vm2601, %v2179, %v2857
  %v3114 = vsel %vm2602, %v2184, %v2858
  %v3115 = vsel %vm2603, %v2189, %v2859
  %v3116 = vsel %vm2604, %v2194, %v2860
  %v3117 = vsel %vm2605, %v2199, %v2861
  %v3118 = vsel %vm2606, %v2204, %v2862
  %v3119 = vsel %vm2607, %v2209, %v2863
  %v3120 = vsel %vm2608, %v2214, %v2864
  %v3121 = vsel %vm2609, %v2219, %v2865
  %v3122 = vsel %vm2610, %v2224, %v2866
  %v3123 = vsel %vm2611, %v2229, %v2867
  %v3124 = vsel %vm2612, %v2234, %v2868
  %v3125 = vsel %vm2613, %v2239, %v2869
  %v3126 = vsel %vm2614, %v2244, %v2870
  %v3127 = vsel %vm2615, %v2249, %v2871
  %v3128 = vsel %vm2616, %v2254, %v2872
  %v3129 = vsel %vm2617, %v2259, %v2873
  %v3130 = vsel %vm2618, %v2264, %v2874
  %v3131 = vsel %vm2619, %v2269, %v2875
  %v3132 = vsel %vm2620, %v2274, %v2876
  %v3133 = vsel %vm2621, %v2279, %v2877
  %v3134 = vsel %vm2622, %v2284, %v2878
  %v3135 = vsel %vm2623, %v2289, %v2879
  %v3136 = vsel %vm2624, %v2294, %v2880
  %v3137 = vsel %vm2625, %v2299, %v2881
  %v3138 = vsel %vm2626, %v2304, %v2882
  %v3139 = vsel %vm2627, %v2309, %v2883
  %v3140 = vsel %vm2628, %v2314, %v2884
  %v3141 = vsel %vm2629, %v2319, %v2885
  %v3142 = vsel %vm2630, %v2324, %v2886
  %v3143 = vsel %vm2631, %v2329, %v2887
  %v3144 = vsel %vm2632, %v2334, %v2888
  %v3145 = vsel %vm2633, %v2339, %v2889
  %v3146 = vsel %vm2634, %v2344, %v2890
  %v3147 = vsel %vm2635, %v2349, %v2891
  %v3148 = vsel %vm2636, %v2354, %v2892
  %v3149 = vsel %vm2637, %v2359, %v2893
  %v3150 = vsel %vm2638, %v2364, %v2894
  %v3151 = vsel %vm2639, %v2369, %v2895
  %v3152 = vsel %vm2640, %v2374, %v2896
  %v3153 = vsel %vm2641, %v2379, %v2897
  %v3154 = vsel %vm2642, %v2384, %v2898
  %vm3155 = vcmask 64512
  %3156 = vst.msk [vmem:[%s2] sm:$0xff] %vm3155, %v2899
  %3157 = vst.msk [vmem:[%s2 + $0x8] sm:$0xff] %vm3155, %v2900
  %3158 = vst.msk [vmem:[%s2 + $0x10] sm:$0xff] %vm3155, %v2901
  %3159 = vst.msk [vmem:[%s2 + $0x18] sm:$0xff] %vm3155, %v2902
  %3160 = vst.msk [vmem:[%s2 + $0x20] sm:$0xff] %vm3155, %v2903
  %3161 = vst.msk [vmem:[%s2 + $0x28] sm:$0xff] %vm3155, %v2904
  %3162 = vst.msk [vmem:[%s2 + $0x30] sm:$0xff] %vm3155, %v2905
  %3163 = vst.msk [vmem:[%s2 + $0x38] sm:$0xff] %vm3155, %v2906
  %3164 = vst.msk [vmem:[%s2 + $0x40] sm:$0xff] %vm3155, %v2907
  %3165 = vst.msk [vmem:[%s2 + $0x48] sm:$0xff] %vm3155, %v2908
  %3166 = vst.msk [vmem:[%s2 + $0x50] sm:$0xff] %vm3155, %v2909
  %3167 = vst.msk [vmem:[%s2 + $0x58] sm:$0xff] %vm3155, %v2910
  %3168 = vst.msk [vmem:[%s2 + $0x60] sm:$0xff] %vm3155, %v2911
  %3169 = vst.msk [vmem:[%s2 + $0x68] sm:$0xff] %vm3155, %v2912
  %3170 = vst.msk [vmem:[%s2 + $0x70] sm:$0xff] %vm3155, %v2913
  %3171 = vst.msk [vmem:[%s2 + $0x78] sm:$0xff] %vm3155, %v2914
  %3172 = vst.msk [vmem:[%s2 + $0x80] sm:$0xff] %vm3155, %v2915
  %3173 = vst.msk [vmem:[%s2 + $0x88] sm:$0xff] %vm3155, %v2916
  %3174 = vst.msk [vmem:[%s2 + $0x90] sm:$0xff] %vm3155, %v2917
  %3175 = vst.msk [vmem:[%s2 + $0x98] sm:$0xff] %vm3155, %v2918
  %3176 = vst.msk [vmem:[%s2 + $0xa0] sm:$0xff] %vm3155, %v2919
  %3177 = vst.msk [vmem:[%s2 + $0xa8] sm:$0xff] %vm3155, %v2920
  %3178 = vst.msk [vmem:[%s2 + $0xb0] sm:$0xff] %vm3155, %v2921
  %3179 = vst.msk [vmem:[%s2 + $0xb8] sm:$0xff] %vm3155, %v2922
  %3180 = vst.msk [vmem:[%s2 + $0xc0] sm:$0xff] %vm3155, %v2923
  %3181 = vst.msk [vmem:[%s2 + $0xc8] sm:$0xff] %vm3155, %v2924
  %3182 = vst.msk [vmem:[%s2 + $0xd0] sm:$0xff] %vm3155, %v2925
  %3183 = vst.msk [vmem:[%s2 + $0xd8] sm:$0xff] %vm3155, %v2926
  %3184 = vst.msk [vmem:[%s2 + $0xe0] sm:$0xff] %vm3155, %v2927
  %3185 = vst.msk [vmem:[%s2 + $0xe8] sm:$0xff] %vm3155, %v2928
  %3186 = vst.msk [vmem:[%s2 + $0xf0] sm:$0xff] %vm3155, %v2929
  %3187 = vst.msk [vmem:[%s2 + $0xf8] sm:$0xff] %vm3155, %v2930
  %3188 = vst.msk [vmem:[%s2 + $0x100] sm:$0xff] %vm3155, %v2931
  %3189 = vst.msk [vmem:[%s2 + $0x108] sm:$0xff] %vm3155, %v2932
  %3190 = vst.msk [vmem:[%s2 + $0x110] sm:$0xff] %vm3155, %v2933
  %3191 = vst.msk [vmem:[%s2 + $0x118] sm:$0xff] %vm3155, %v2934
  %3192 = vst.msk [vmem:[%s2 + $0x120] sm:$0xff] %vm3155, %v2935
  %3193 = vst.msk [vmem:[%s2 + $0x128] sm:$0xff] %vm3155, %v2936
  %3194 = vst.msk [vmem:[%s2 + $0x130] sm:$0xff] %vm3155, %v2937
  %3195 = vst.msk [vmem:[%s2 + $0x138] sm:$0xff] %vm3155, %v2938
  %3196 = vst.msk [vmem:[%s2 + $0x140] sm:$0xff] %vm3155, %v2939
  %3197 = vst.msk [vmem:[%s2 + $0x148] sm:$0xff] %vm3155, %v2940
  %3198 = vst.msk [vmem:[%s2 + $0x150] sm:$0xff] %vm3155, %v2941
  %3199 = vst.msk [vmem:[%s2 + $0x158] sm:$0xff] %vm3155, %v2942
  %3200 = vst.msk [vmem:[%s2 + $0x160] sm:$0xff] %vm3155, %v2943
  %3201 = vst.msk [vmem:[%s2 + $0x168] sm:$0xff] %vm3155, %v2944
  %3202 = vst.msk [vmem:[%s2 + $0x170] sm:$0xff] %vm3155, %v2945
  %3203 = vst.msk [vmem:[%s2 + $0x178] sm:$0xff] %vm3155, %v2946
  %3204 = vst.msk [vmem:[%s2 + $0x180] sm:$0xff] %vm3155, %v2947
  %3205 = vst.msk [vmem:[%s2 + $0x188] sm:$0xff] %vm3155, %v2948
  %3206 = vst.msk [vmem:[%s2 + $0x190] sm:$0xff] %vm3155, %v2949
  %3207 = vst.msk [vmem:[%s2 + $0x198] sm:$0xff] %vm3155, %v2950
  %3208 = vst.msk [vmem:[%s2 + $0x1a0] sm:$0xff] %vm3155, %v2951
  %3209 = vst.msk [vmem:[%s2 + $0x1a8] sm:$0xff] %vm3155, %v2952
  %3210 = vst.msk [vmem:[%s2 + $0x1b0] sm:$0xff] %vm3155, %v2953
  %3211 = vst.msk [vmem:[%s2 + $0x1b8] sm:$0xff] %vm3155, %v2954
  %3212 = vst.msk [vmem:[%s2 + $0x1c0] sm:$0xff] %vm3155, %v2955
  %3213 = vst.msk [vmem:[%s2 + $0x1c8] sm:$0xff] %vm3155, %v2956
  %3214 = vst.msk [vmem:[%s2 + $0x1d0] sm:$0xff] %vm3155, %v2957
  %3215 = vst.msk [vmem:[%s2 + $0x1d8] sm:$0xff] %vm3155, %v2958
  %3216 = vst.msk [vmem:[%s2 + $0x1e0] sm:$0xff] %vm3155, %v2959
  %3217 = vst.msk [vmem:[%s2 + $0x1e8] sm:$0xff] %vm3155, %v2960
  %3218 = vst.msk [vmem:[%s2 + $0x1f0] sm:$0xff] %vm3155, %v2961
  %3219 = vst.msk [vmem:[%s2 + $0x1f8] sm:$0xff] %vm3155, %v2962
  %3220 = vst.msk [vmem:[%s2 + $0x200] sm:$0xff] %vm3155, %v2963
  %3221 = vst.msk [vmem:[%s2 + $0x208] sm:$0xff] %vm3155, %v2964
  %3222 = vst.msk [vmem:[%s2 + $0x210] sm:$0xff] %vm3155, %v2965
  %3223 = vst.msk [vmem:[%s2 + $0x218] sm:$0xff] %vm3155, %v2966
  %3224 = vst.msk [vmem:[%s2 + $0x220] sm:$0xff] %vm3155, %v2967
  %3225 = vst.msk [vmem:[%s2 + $0x228] sm:$0xff] %vm3155, %v2968
  %3226 = vst.msk [vmem:[%s2 + $0x230] sm:$0xff] %vm3155, %v2969
  %3227 = vst.msk [vmem:[%s2 + $0x238] sm:$0xff] %vm3155, %v2970
  %3228 = vst.msk [vmem:[%s2 + $0x240] sm:$0xff] %vm3155, %v2971
  %3229 = vst.msk [vmem:[%s2 + $0x248] sm:$0xff] %vm3155, %v2972
  %3230 = vst.msk [vmem:[%s2 + $0x250] sm:$0xff] %vm3155, %v2973
  %3231 = vst.msk [vmem:[%s2 + $0x258] sm:$0xff] %vm3155, %v2974
  %3232 = vst.msk [vmem:[%s2 + $0x260] sm:$0xff] %vm3155, %v2975
  %3233 = vst.msk [vmem:[%s2 + $0x268] sm:$0xff] %vm3155, %v2976
  %3234 = vst.msk [vmem:[%s2 + $0x270] sm:$0xff] %vm3155, %v2977
  %3235 = vst.msk [vmem:[%s2 + $0x278] sm:$0xff] %vm3155, %v2978
  %3236 = vst.msk [vmem:[%s2 + $0x280] sm:$0xff] %vm3155, %v2979
  %3237 = vst.msk [vmem:[%s2 + $0x288] sm:$0xff] %vm3155, %v2980
  %3238 = vst.msk [vmem:[%s2 + $0x290] sm:$0xff] %vm3155, %v2981
  %3239 = vst.msk [vmem:[%s2 + $0x298] sm:$0xff] %vm3155, %v2982
  %3240 = vst.msk [vmem:[%s2 + $0x2a0] sm:$0xff] %vm3155, %v2983
  %3241 = vst.msk [vmem:[%s2 + $0x2a8] sm:$0xff] %vm3155, %v2984
  %3242 = vst.msk [vmem:[%s2 + $0x2b0] sm:$0xff] %vm3155, %v2985
  %3243 = vst.msk [vmem:[%s2 + $0x2b8] sm:$0xff] %vm3155, %v2986
  %3244 = vst.msk [vmem:[%s2 + $0x2c0] sm:$0xff] %vm3155, %v2987
  %3245 = vst.msk [vmem:[%s2 + $0x2c8] sm:$0xff] %vm3155, %v2988
  %3246 = vst.msk [vmem:[%s2 + $0x2d0] sm:$0xff] %vm3155, %v2989
  %3247 = vst.msk [vmem:[%s2 + $0x2d8] sm:$0xff] %vm3155, %v2990
  %3248 = vst.msk [vmem:[%s2 + $0x2e0] sm:$0xff] %vm3155, %v2991
  %3249 = vst.msk [vmem:[%s2 + $0x2e8] sm:$0xff] %vm3155, %v2992
  %3250 = vst.msk [vmem:[%s2 + $0x2f0] sm:$0xff] %vm3155, %v2993
  %3251 = vst.msk [vmem:[%s2 + $0x2f8] sm:$0xff] %vm3155, %v2994
  %3252 = vst.msk [vmem:[%s2 + $0x300] sm:$0xff] %vm3155, %v2995
  %3253 = vst.msk [vmem:[%s2 + $0x308] sm:$0xff] %vm3155, %v2996
  %3254 = vst.msk [vmem:[%s2 + $0x310] sm:$0xff] %vm3155, %v2997
  %3255 = vst.msk [vmem:[%s2 + $0x318] sm:$0xff] %vm3155, %v2998
  %3256 = vst.msk [vmem:[%s2 + $0x320] sm:$0xff] %vm3155, %v2999
  %3257 = vst.msk [vmem:[%s2 + $0x328] sm:$0xff] %vm3155, %v3000
  %3258 = vst.msk [vmem:[%s2 + $0x330] sm:$0xff] %vm3155, %v3001
  %3259 = vst.msk [vmem:[%s2 + $0x338] sm:$0xff] %vm3155, %v3002
  %3260 = vst.msk [vmem:[%s2 + $0x340] sm:$0xff] %vm3155, %v3003
  %3261 = vst.msk [vmem:[%s2 + $0x348] sm:$0xff] %vm3155, %v3004
  %3262 = vst.msk [vmem:[%s2 + $0x350] sm:$0xff] %vm3155, %v3005
  %3263 = vst.msk [vmem:[%s2 + $0x358] sm:$0xff] %vm3155, %v3006
  %3264 = vst.msk [vmem:[%s2 + $0x360] sm:$0xff] %vm3155, %v3007
  %3265 = vst.msk [vmem:[%s2 + $0x368] sm:$0xff] %vm3155, %v3008
  %3266 = vst.msk [vmem:[%s2 + $0x370] sm:$0xff] %vm3155, %v3009
  %3267 = vst.msk [vmem:[%s2 + $0x378] sm:$0xff] %vm3155, %v3010
  %3268 = vst.msk [vmem:[%s2 + $0x380] sm:$0xff] %vm3155, %v3011
  %3269 = vst.msk [vmem:[%s2 + $0x388] sm:$0xff] %vm3155, %v3012
  %3270 = vst.msk [vmem:[%s2 + $0x390] sm:$0xff] %vm3155, %v3013
  %3271 = vst.msk [vmem:[%s2 + $0x398] sm:$0xff] %vm3155, %v3014
  %3272 = vst.msk [vmem:[%s2 + $0x3a0] sm:$0xff] %vm3155, %v3015
  %3273 = vst.msk [vmem:[%s2 + $0x3a8] sm:$0xff] %vm3155, %v3016
  %3274 = vst.msk [vmem:[%s2 + $0x3b0] sm:$0xff] %vm3155, %v3017
  %3275 = vst.msk [vmem:[%s2 + $0x3b8] sm:$0xff] %vm3155, %v3018
  %3276 = vst.msk [vmem:[%s2 + $0x3c0] sm:$0xff] %vm3155, %v3019
  %3277 = vst.msk [vmem:[%s2 + $0x3c8] sm:$0xff] %vm3155, %v3020
  %3278 = vst.msk [vmem:[%s2 + $0x3d0] sm:$0xff] %vm3155, %v3021
  %3279 = vst.msk [vmem:[%s2 + $0x3d8] sm:$0xff] %vm3155, %v3022
  %3280 = vst.msk [vmem:[%s2 + $0x3e0] sm:$0xff] %vm3155, %v3023
  %3281 = vst.msk [vmem:[%s2 + $0x3e8] sm:$0xff] %vm3155, %v3024
  %3282 = vst.msk [vmem:[%s2 + $0x3f0] sm:$0xff] %vm3155, %v3025
  %3283 = vst.msk [vmem:[%s2 + $0x3f8] sm:$0xff] %vm3155, %v3026
  %3284 = vst.msk [vmem:[%s2 + $0x400] sm:$0xff] %vm3155, %v3027
  %3285 = vst.msk [vmem:[%s2 + $0x408] sm:$0xff] %vm3155, %v3028
  %3286 = vst.msk [vmem:[%s2 + $0x410] sm:$0xff] %vm3155, %v3029
  %3287 = vst.msk [vmem:[%s2 + $0x418] sm:$0xff] %vm3155, %v3030
  %3288 = vst.msk [vmem:[%s2 + $0x420] sm:$0xff] %vm3155, %v3031
  %3289 = vst.msk [vmem:[%s2 + $0x428] sm:$0xff] %vm3155, %v3032
  %3290 = vst.msk [vmem:[%s2 + $0x430] sm:$0xff] %vm3155, %v3033
  %3291 = vst.msk [vmem:[%s2 + $0x438] sm:$0xff] %vm3155, %v3034
  %3292 = vst.msk [vmem:[%s2 + $0x440] sm:$0xff] %vm3155, %v3035
  %3293 = vst.msk [vmem:[%s2 + $0x448] sm:$0xff] %vm3155, %v3036
  %3294 = vst.msk [vmem:[%s2 + $0x450] sm:$0xff] %vm3155, %v3037
  %3295 = vst.msk [vmem:[%s2 + $0x458] sm:$0xff] %vm3155, %v3038
  %3296 = vst.msk [vmem:[%s2 + $0x460] sm:$0xff] %vm3155, %v3039
  %3297 = vst.msk [vmem:[%s2 + $0x468] sm:$0xff] %vm3155, %v3040
  %3298 = vst.msk [vmem:[%s2 + $0x470] sm:$0xff] %vm3155, %v3041
  %3299 = vst.msk [vmem:[%s2 + $0x478] sm:$0xff] %vm3155, %v3042
  %3300 = vst.msk [vmem:[%s2 + $0x480] sm:$0xff] %vm3155, %v3043
  %3301 = vst.msk [vmem:[%s2 + $0x488] sm:$0xff] %vm3155, %v3044
  %3302 = vst.msk [vmem:[%s2 + $0x490] sm:$0xff] %vm3155, %v3045
  %3303 = vst.msk [vmem:[%s2 + $0x498] sm:$0xff] %vm3155, %v3046
  %3304 = vst.msk [vmem:[%s2 + $0x4a0] sm:$0xff] %vm3155, %v3047
  %3305 = vst.msk [vmem:[%s2 + $0x4a8] sm:$0xff] %vm3155, %v3048
  %3306 = vst.msk [vmem:[%s2 + $0x4b0] sm:$0xff] %vm3155, %v3049
  %3307 = vst.msk [vmem:[%s2 + $0x4b8] sm:$0xff] %vm3155, %v3050
  %3308 = vst.msk [vmem:[%s2 + $0x4c0] sm:$0xff] %vm3155, %v3051
  %3309 = vst.msk [vmem:[%s2 + $0x4c8] sm:$0xff] %vm3155, %v3052
  %3310 = vst.msk [vmem:[%s2 + $0x4d0] sm:$0xff] %vm3155, %v3053
  %3311 = vst.msk [vmem:[%s2 + $0x4d8] sm:$0xff] %vm3155, %v3054
  %3312 = vst.msk [vmem:[%s2 + $0x4e0] sm:$0xff] %vm3155, %v3055
  %3313 = vst.msk [vmem:[%s2 + $0x4e8] sm:$0xff] %vm3155, %v3056
  %3314 = vst.msk [vmem:[%s2 + $0x4f0] sm:$0xff] %vm3155, %v3057
  %3315 = vst.msk [vmem:[%s2 + $0x4f8] sm:$0xff] %vm3155, %v3058
  %3316 = vst.msk [vmem:[%s2 + $0x500] sm:$0xff] %vm3155, %v3059
  %3317 = vst.msk [vmem:[%s2 + $0x508] sm:$0xff] %vm3155, %v3060
  %3318 = vst.msk [vmem:[%s2 + $0x510] sm:$0xff] %vm3155, %v3061
  %3319 = vst.msk [vmem:[%s2 + $0x518] sm:$0xff] %vm3155, %v3062
  %3320 = vst.msk [vmem:[%s2 + $0x520] sm:$0xff] %vm3155, %v3063
  %3321 = vst.msk [vmem:[%s2 + $0x528] sm:$0xff] %vm3155, %v3064
  %3322 = vst.msk [vmem:[%s2 + $0x530] sm:$0xff] %vm3155, %v3065
  %3323 = vst.msk [vmem:[%s2 + $0x538] sm:$0xff] %vm3155, %v3066
  %3324 = vst.msk [vmem:[%s2 + $0x540] sm:$0xff] %vm3155, %v3067
  %3325 = vst.msk [vmem:[%s2 + $0x548] sm:$0xff] %vm3155, %v3068
  %3326 = vst.msk [vmem:[%s2 + $0x550] sm:$0xff] %vm3155, %v3069
  %3327 = vst.msk [vmem:[%s2 + $0x558] sm:$0xff] %vm3155, %v3070
  %3328 = vst.msk [vmem:[%s2 + $0x560] sm:$0xff] %vm3155, %v3071
  %3329 = vst.msk [vmem:[%s2 + $0x568] sm:$0xff] %vm3155, %v3072
  %3330 = vst.msk [vmem:[%s2 + $0x570] sm:$0xff] %vm3155, %v3073
  %3331 = vst.msk [vmem:[%s2 + $0x578] sm:$0xff] %vm3155, %v3074
  %3332 = vst.msk [vmem:[%s2 + $0x580] sm:$0xff] %vm3155, %v3075
  %3333 = vst.msk [vmem:[%s2 + $0x588] sm:$0xff] %vm3155, %v3076
  %3334 = vst.msk [vmem:[%s2 + $0x590] sm:$0xff] %vm3155, %v3077
  %3335 = vst.msk [vmem:[%s2 + $0x598] sm:$0xff] %vm3155, %v3078
  %3336 = vst.msk [vmem:[%s2 + $0x5a0] sm:$0xff] %vm3155, %v3079
  %3337 = vst.msk [vmem:[%s2 + $0x5a8] sm:$0xff] %vm3155, %v3080
  %3338 = vst.msk [vmem:[%s2 + $0x5b0] sm:$0xff] %vm3155, %v3081
  %3339 = vst.msk [vmem:[%s2 + $0x5b8] sm:$0xff] %vm3155, %v3082
  %3340 = vst.msk [vmem:[%s2 + $0x5c0] sm:$0xff] %vm3155, %v3083
  %3341 = vst.msk [vmem:[%s2 + $0x5c8] sm:$0xff] %vm3155, %v3084
  %3342 = vst.msk [vmem:[%s2 + $0x5d0] sm:$0xff] %vm3155, %v3085
  %3343 = vst.msk [vmem:[%s2 + $0x5d8] sm:$0xff] %vm3155, %v3086
  %3344 = vst.msk [vmem:[%s2 + $0x5e0] sm:$0xff] %vm3155, %v3087
  %3345 = vst.msk [vmem:[%s2 + $0x5e8] sm:$0xff] %vm3155, %v3088
  %3346 = vst.msk [vmem:[%s2 + $0x5f0] sm:$0xff] %vm3155, %v3089
  %3347 = vst.msk [vmem:[%s2 + $0x5f8] sm:$0xff] %vm3155, %v3090
  %3348 = vst.msk [vmem:[%s2 + $0x600] sm:$0xff] %vm3155, %v3091
  %3349 = vst.msk [vmem:[%s2 + $0x608] sm:$0xff] %vm3155, %v3092
  %3350 = vst.msk [vmem:[%s2 + $0x610] sm:$0xff] %vm3155, %v3093
  %3351 = vst.msk [vmem:[%s2 + $0x618] sm:$0xff] %vm3155, %v3094
  %3352 = vst.msk [vmem:[%s2 + $0x620] sm:$0xff] %vm3155, %v3095
  %3353 = vst.msk [vmem:[%s2 + $0x628] sm:$0xff] %vm3155, %v3096
  %3354 = vst.msk [vmem:[%s2 + $0x630] sm:$0xff] %vm3155, %v3097
  %3355 = vst.msk [vmem:[%s2 + $0x638] sm:$0xff] %vm3155, %v3098
  %3356 = vst.msk [vmem:[%s2 + $0x640] sm:$0xff] %vm3155, %v3099
  %3357 = vst.msk [vmem:[%s2 + $0x648] sm:$0xff] %vm3155, %v3100
  %3358 = vst.msk [vmem:[%s2 + $0x650] sm:$0xff] %vm3155, %v3101
  %3359 = vst.msk [vmem:[%s2 + $0x658] sm:$0xff] %vm3155, %v3102
  %3360 = vst.msk [vmem:[%s2 + $0x660] sm:$0xff] %vm3155, %v3103
  %3361 = vst.msk [vmem:[%s2 + $0x668] sm:$0xff] %vm3155, %v3104
  %3362 = vst.msk [vmem:[%s2 + $0x670] sm:$0xff] %vm3155, %v3105
  %3363 = vst.msk [vmem:[%s2 + $0x678] sm:$0xff] %vm3155, %v3106
  %3364 = vst.msk [vmem:[%s2 + $0x680] sm:$0xff] %vm3155, %v3107
  %3365 = vst.msk [vmem:[%s2 + $0x688] sm:$0xff] %vm3155, %v3108
  %3366 = vst.msk [vmem:[%s2 + $0x690] sm:$0xff] %vm3155, %v3109
  %3367 = vst.msk [vmem:[%s2 + $0x698] sm:$0xff] %vm3155, %v3110
  %3368 = vst.msk [vmem:[%s2 + $0x6a0] sm:$0xff] %vm3155, %v3111
  %3369 = vst.msk [vmem:[%s2 + $0x6a8] sm:$0xff] %vm3155, %v3112
  %3370 = vst.msk [vmem:[%s2 + $0x6b0] sm:$0xff] %vm3155, %v3113
  %3371 = vst.msk [vmem:[%s2 + $0x6b8] sm:$0xff] %vm3155, %v3114
  %3372 = vst.msk [vmem:[%s2 + $0x6c0] sm:$0xff] %vm3155, %v3115
  %3373 = vst.msk [vmem:[%s2 + $0x6c8] sm:$0xff] %vm3155, %v3116
  %3374 = vst.msk [vmem:[%s2 + $0x6d0] sm:$0xff] %vm3155, %v3117
  %3375 = vst.msk [vmem:[%s2 + $0x6d8] sm:$0xff] %vm3155, %v3118
  %3376 = vst.msk [vmem:[%s2 + $0x6e0] sm:$0xff] %vm3155, %v3119
  %3377 = vst.msk [vmem:[%s2 + $0x6e8] sm:$0xff] %vm3155, %v3120
  %3378 = vst.msk [vmem:[%s2 + $0x6f0] sm:$0xff] %vm3155, %v3121
  %3379 = vst.msk [vmem:[%s2 + $0x6f8] sm:$0xff] %vm3155, %v3122
  %3380 = vst.msk [vmem:[%s2 + $0x700] sm:$0xff] %vm3155, %v3123
  %3381 = vst.msk [vmem:[%s2 + $0x708] sm:$0xff] %vm3155, %v3124
  %3382 = vst.msk [vmem:[%s2 + $0x710] sm:$0xff] %vm3155, %v3125
  %3383 = vst.msk [vmem:[%s2 + $0x718] sm:$0xff] %vm3155, %v3126
  %3384 = vst.msk [vmem:[%s2 + $0x720] sm:$0xff] %vm3155, %v3127
  %3385 = vst.msk [vmem:[%s2 + $0x728] sm:$0xff] %vm3155, %v3128
  %3386 = vst.msk [vmem:[%s2 + $0x730] sm:$0xff] %vm3155, %v3129
  %3387 = vst.msk [vmem:[%s2 + $0x738] sm:$0xff] %vm3155, %v3130
  %3388 = vst.msk [vmem:[%s2 + $0x740] sm:$0xff] %vm3155, %v3131
  %3389 = vst.msk [vmem:[%s2 + $0x748] sm:$0xff] %vm3155, %v3132
  %3390 = vst.msk [vmem:[%s2 + $0x750] sm:$0xff] %vm3155, %v3133
  %3391 = vst.msk [vmem:[%s2 + $0x758] sm:$0xff] %vm3155, %v3134
  %3392 = vst.msk [vmem:[%s2 + $0x760] sm:$0xff] %vm3155, %v3135
  %3393 = vst.msk [vmem:[%s2 + $0x768] sm:$0xff] %vm3155, %v3136
  %3394 = vst.msk [vmem:[%s2 + $0x770] sm:$0xff] %vm3155, %v3137
  %3395 = vst.msk [vmem:[%s2 + $0x778] sm:$0xff] %vm3155, %v3138
  %3396 = vst.msk [vmem:[%s2 + $0x780] sm:$0xff] %vm3155, %v3139
  %3397 = vst.msk [vmem:[%s2 + $0x788] sm:$0xff] %vm3155, %v3140
  %3398 = vst.msk [vmem:[%s2 + $0x790] sm:$0xff] %vm3155, %v3141
  %3399 = vst.msk [vmem:[%s2 + $0x798] sm:$0xff] %vm3155, %v3142
  %3400 = vst.msk [vmem:[%s2 + $0x7a0] sm:$0xff] %vm3155, %v3143
  %3401 = vst.msk [vmem:[%s2 + $0x7a8] sm:$0xff] %vm3155, %v3144
  %3402 = vst.msk [vmem:[%s2 + $0x7b0] sm:$0xff] %vm3155, %v3145
  %3403 = vst.msk [vmem:[%s2 + $0x7b8] sm:$0xff] %vm3155, %v3146
  %3404 = vst.msk [vmem:[%s2 + $0x7c0] sm:$0xff] %vm3155, %v3147
  %3405 = vst.msk [vmem:[%s2 + $0x7c8] sm:$0xff] %vm3155, %v3148
  %3406 = vst.msk [vmem:[%s2 + $0x7d0] sm:$0xff] %vm3155, %v3149
  %3407 = vst.msk [vmem:[%s2 + $0x7d8] sm:$0xff] %vm3155, %v3150
  %3408 = vst.msk [vmem:[%s2 + $0x7e0] sm:$0xff] %vm3155, %v3151
  %3409 = vst.msk [vmem:[%s2 + $0x7e8] sm:$0xff] %vm3155, %v3152
  %3410 = vst.msk [vmem:[%s2 + $0x7f0] sm:$0xff] %vm3155, %v3153
  %3411 = vst.msk [vmem:[%s2 + $0x7f8] sm:$0xff] %vm3155, %v3154
  // Predicated region
  $region10: #{discriminator_forward.4} parent=0 // pred_check
    _
  $region11: #{discriminator_forward.4} parent=0 // pred_check_branch
    %3413 = sbr.rel (0) target = $region13
  $region12: #{discriminator_forward.4} parent=0 // pred_region
    _
  $region13: #{discriminator_forward.4} parent=0 // pred_fallthru
    _
  // Predicated region
  $region14: #{discriminator_forward.4} parent=0 // pred_check
    _
  $region15: #{discriminator_forward.4} parent=0 // pred_check_branch
    %3415 = sbr.rel (0) target = $region17
  $region16: #{discriminator_forward.4} parent=0 // pred_region
    _
  $region17: #{discriminator_forward.4} parent=0 // pred_fallthru
    _

// kernel: discriminator_forward.5
$region0: #{discriminator_forward.5}
  #allocation0 [shape = 'u32[]', space=smem, size = 0x4, offset = 0x4, fixed_abs, tag = 'smem constant byte address 0x4 - core index']
  #allocation1 [shape = 'u32[144,128]{1,0:T(1,128)}', space=vmem, size = 0x12000, scoped, tag = 'internal scratch']
  %s0 = inlined_call_operand.vmem [shape: f32[512,128], index: 0, kind: input, shape index: {}]
  %s1 = inlined_call_operand.vmem [shape: f32[128,16], index: 1, kind: input, shape index: {}]
  %s2 = inlined_call_operand.vmem [shape: f32[1,16], index: 2, kind: input, shape index: {}]
  %s3 = inlined_call_operand.vmem [shape: f32[1,16], index: 3, kind: input, shape index: {}]
  %s4 = inlined_call_operand.vmem [shape: f32[512,16], index: 4, kind: output, shape index: {}]
  %s5 = sld [smem:[#allocation0]]
  $region26: #{discriminator_forward.5} parent=0
    _
  %s7 = ssub.s32 1, %s5
  %s8 = scalar_select 0, %s7, %s5
  // Predicated region
  $region2: #{discriminator_forward.5} parent=0 // pred_check
    _
  $region3: #{discriminator_forward.5} parent=0 // pred_check_branch
    %10 = sbr.rel (0) target = $region5
  $region4: #{discriminator_forward.5} parent=0 // pred_region
    _
  $region5: #{discriminator_forward.5} parent=0 // pred_fallthru
    _
  // Predicated region
  $region6: #{discriminator_forward.5} parent=0 // pred_check
    _
  $region7: #{discriminator_forward.5} parent=0 // pred_check_branch
    %12 = sbr.rel (0) target = $region9
  $region8: #{discriminator_forward.5} parent=0 // pred_region
    _
  $region9: #{discriminator_forward.5} parent=0 // pred_fallthru
    _
  // Predicated region
  $region10: #{discriminator_forward.5} parent=0 // pred_check
    _
  $region11: #{discriminator_forward.5} parent=0 // pred_check_branch
    %14 = sbr.rel (0) target = $region13
  $region12: #{discriminator_forward.5} parent=0 // pred_region
    _
  $region13: #{discriminator_forward.5} parent=0 // pred_fallthru
    _
  // Predicated region
  $region14: #{discriminator_forward.5} parent=0 // pred_check
    _
  $region15: #{discriminator_forward.5} parent=0 // pred_check_branch
    %16 = sbr.rel (0) target = $region17
  $region16: #{discriminator_forward.5} parent=0 // pred_region
    _
  $region17: #{discriminator_forward.5} parent=0 // pred_fallthru
    _
  %v17 = vld [vmem:[%s0] sm:$0xff]
  %v18 = vld [vmem:[%s0 + $0x8] sm:$0xff]
  %v19 = vld [vmem:[%s0 + $0x10] sm:$0xff]
  %v20 = vld [vmem:[%s0 + $0x18] sm:$0xff]
  %v21 = vld [vmem:[%s0 + $0x20] sm:$0xff]
  %v22 = vld [vmem:[%s0 + $0x28] sm:$0xff]
  %v23 = vld [vmem:[%s0 + $0x30] sm:$0xff]
  %v24 = vld [vmem:[%s0 + $0x38] sm:$0xff]
  %v25 = vld [vmem:[%s0 + $0x40] sm:$0xff]
  %v26 = vld [vmem:[%s0 + $0x48] sm:$0xff]
  %v27 = vld [vmem:[%s0 + $0x50] sm:$0xff]
  %v28 = vld [vmem:[%s0 + $0x58] sm:$0xff]
  %v29 = vld [vmem:[%s0 + $0x60] sm:$0xff]
  %v30 = vld [vmem:[%s0 + $0x68] sm:$0xff]
  %v31 = vld [vmem:[%s0 + $0x70] sm:$0xff]
  %v32 = vld [vmem:[%s0 + $0x78] sm:$0xff]
  %v33 = vld [vmem:[%s0 + $0x80] sm:$0xff]
  %v34 = vld [vmem:[%s0 + $0x88] sm:$0xff]
  %v35 = vld [vmem:[%s0 + $0x90] sm:$0xff]
  %v36 = vld [vmem:[%s0 + $0x98] sm:$0xff]
  %v37 = vld [vmem:[%s0 + $0xa0] sm:$0xff]
  %v38 = vld [vmem:[%s0 + $0xa8] sm:$0xff]
  %v39 = vld [vmem:[%s0 + $0xb0] sm:$0xff]
  %v40 = vld [vmem:[%s0 + $0xb8] sm:$0xff]
  %v41 = vld [vmem:[%s0 + $0xc0] sm:$0xff]
  %v42 = vld [vmem:[%s0 + $0xc8] sm:$0xff]
  %v43 = vld [vmem:[%s0 + $0xd0] sm:$0xff]
  %v44 = vld [vmem:[%s0 + $0xd8] sm:$0xff]
  %v45 = vld [vmem:[%s0 + $0xe0] sm:$0xff]
  %v46 = vld [vmem:[%s0 + $0xe8] sm:$0xff]
  %v47 = vld [vmem:[%s0 + $0xf0] sm:$0xff]
  %v48 = vld [vmem:[%s0 + $0xf8] sm:$0xff]
  %v49 = vld [vmem:[%s0 + $0x100] sm:$0xff]
  %v50 = vld [vmem:[%s0 + $0x108] sm:$0xff]
  %v51 = vld [vmem:[%s0 + $0x110] sm:$0xff]
  %v52 = vld [vmem:[%s0 + $0x118] sm:$0xff]
  %v53 = vld [vmem:[%s0 + $0x120] sm:$0xff]
  %v54 = vld [vmem:[%s0 + $0x128] sm:$0xff]
  %v55 = vld [vmem:[%s0 + $0x130] sm:$0xff]
  %v56 = vld [vmem:[%s0 + $0x138] sm:$0xff]
  %v57 = vld [vmem:[%s0 + $0x140] sm:$0xff]
  %v58 = vld [vmem:[%s0 + $0x148] sm:$0xff]
  %v59 = vld [vmem:[%s0 + $0x150] sm:$0xff]
  %v60 = vld [vmem:[%s0 + $0x158] sm:$0xff]
  %v61 = vld [vmem:[%s0 + $0x160] sm:$0xff]
  %v62 = vld [vmem:[%s0 + $0x168] sm:$0xff]
  %v63 = vld [vmem:[%s0 + $0x170] sm:$0xff]
  %v64 = vld [vmem:[%s0 + $0x178] sm:$0xff]
  %v65 = vld [vmem:[%s0 + $0x180] sm:$0xff]
  %v66 = vld [vmem:[%s0 + $0x188] sm:$0xff]
  %v67 = vld [vmem:[%s0 + $0x190] sm:$0xff]
  %v68 = vld [vmem:[%s0 + $0x198] sm:$0xff]
  %v69 = vld [vmem:[%s0 + $0x1a0] sm:$0xff]
  %v70 = vld [vmem:[%s0 + $0x1a8] sm:$0xff]
  %v71 = vld [vmem:[%s0 + $0x1b0] sm:$0xff]
  %v72 = vld [vmem:[%s0 + $0x1b8] sm:$0xff]
  %v73 = vld [vmem:[%s0 + $0x1c0] sm:$0xff]
  %v74 = vld [vmem:[%s0 + $0x1c8] sm:$0xff]
  %v75 = vld [vmem:[%s0 + $0x1d0] sm:$0xff]
  %v76 = vld [vmem:[%s0 + $0x1d8] sm:$0xff]
  %v77 = vld [vmem:[%s0 + $0x1e0] sm:$0xff]
  %v78 = vld [vmem:[%s0 + $0x1e8] sm:$0xff]
  %v79 = vld [vmem:[%s0 + $0x1f0] sm:$0xff]
  %v80 = vld [vmem:[%s0 + $0x1f8] sm:$0xff]
  %v81 = vld [vmem:[%s1] sm:$0xff]
  %v82 = vld [vmem:[%s1 + $0x8] sm:$0xff]
  %v83 = vld [vmem:[%s1 + $0x10] sm:$0xff]
  %v84 = vld [vmem:[%s1 + $0x18] sm:$0xff]
  %v85 = vld [vmem:[%s1 + $0x20] sm:$0xff]
  %v86 = vld [vmem:[%s1 + $0x28] sm:$0xff]
  %v87 = vld [vmem:[%s1 + $0x30] sm:$0xff]
  %v88 = vld [vmem:[%s1 + $0x38] sm:$0xff]
  %v89 = vld [vmem:[%s1 + $0x40] sm:$0xff]
  %v90 = vld [vmem:[%s1 + $0x48] sm:$0xff]
  %v91 = vld [vmem:[%s1 + $0x50] sm:$0xff]
  %v92 = vld [vmem:[%s1 + $0x58] sm:$0xff]
  %v93 = vld [vmem:[%s1 + $0x60] sm:$0xff]
  %v94 = vld [vmem:[%s1 + $0x68] sm:$0xff]
  %v95 = vld [vmem:[%s1 + $0x70] sm:$0xff]
  %v96 = vld [vmem:[%s1 + $0x78] sm:$0xff]
  %97 = vmatprep.subr.mxu0 0.0
  %98 = vmatpush1.msra.mxu0 %v81
  %99 = vmatprep.subr.mxu0 0.0
  %100 = vmatpush1.msra.mxu0 %v82
  %101 = vmatprep.subr.mxu0 0.0
  %102 = vmatpush1.msra.mxu0 %v83
  %103 = vmatprep.subr.mxu0 0.0
  %104 = vmatpush1.msra.mxu0 %v84
  %105 = vmatprep.subr.mxu0 0.0
  %106 = vmatpush1.msra.mxu0 %v85
  %107 = vmatprep.subr.mxu0 0.0
  %108 = vmatpush1.msra.mxu0 %v86
  %109 = vmatprep.subr.mxu0 0.0
  %110 = vmatpush1.msra.mxu0 %v87
  %111 = vmatprep.subr.mxu0 0.0
  %112 = vmatpush1.msra.mxu0 %v88
  %113 = vmatprep.subr.mxu0 0.0
  %114 = vmatpush1.msra.mxu0 %v89
  %115 = vmatprep.subr.mxu0 0.0
  %116 = vmatpush1.msra.mxu0 %v90
  %117 = vmatprep.subr.mxu0 0.0
  %118 = vmatpush1.msra.mxu0 %v91
  %119 = vmatprep.subr.mxu0 0.0
  %120 = vmatpush1.msra.mxu0 %v92
  %121 = vmatprep.subr.mxu0 0.0
  %122 = vmatpush1.msra.mxu0 %v93
  %123 = vmatprep.subr.mxu0 0.0
  %124 = vmatpush1.msra.mxu0 %v94
  %125 = vmatprep.subr.mxu0 0.0
  %126 = vmatpush1.msra.mxu0 %v95
  %127 = vmatprep.subr.mxu0 0.0
  %128 = vmatpush1.msra.mxu0 %v96
  %129 = vmatprep.subr.mxu0 0.0
  %130 = vmatpush1.msra.mxu0 0.0
  %131 = vmatprep.subr.mxu0 0.0
  %132 = vmatpush1.msra.mxu0 0.0
  %133 = vmatprep.subr.mxu0 0.0
  %134 = vmatpush1.msra.mxu0 0.0
  %135 = vmatprep.subr.mxu0 0.0
  %136 = vmatpush1.msra.mxu0 0.0
  %137 = vmatprep.subr.mxu0 0.0
  %138 = vmatpush1.msra.mxu0 0.0
  %139 = vmatprep.subr.mxu0 0.0
  %140 = vmatpush1.msra.mxu0 0.0
  %141 = vmatprep.subr.mxu0 0.0
  %142 = vmatpush1.msra.mxu0 0.0
  %143 = vmatprep.subr.mxu0 0.0
  %144 = vmatpush1.msra.mxu0 0.0
  %145 = vmatprep.subr.mxu0 0.0
  %146 = vmatpush1.msra.mxu0 0.0
  %147 = vmatprep.subr.mxu0 0.0
  %148 = vmatpush1.msra.mxu0 0.0
  %149 = vmatprep.subr.mxu0 0.0
  %150 = vmatpush1.msra.mxu0 0.0
  %151 = vmatprep.subr.mxu0 0.0
  %152 = vmatpush1.msra.mxu0 0.0
  %153 = vmatprep.subr.mxu0 0.0
  %154 = vmatpush1.msra.mxu0 0.0
  %155 = vmatprep.subr.mxu0 0.0
  %156 = vmatpush1.msra.mxu0 0.0
  %157 = vmatprep.subr.mxu0 0.0
  %158 = vmatpush1.msra.mxu0 0.0
  %159 = vmatprep.subr.mxu0 0.0
  %160 = vmatpush1.msra.mxu0 0.0
  %161 = vmatprep.mubr.f32.mxu0 0.0
  %162 = vmatmul.mubr.f32.gmra.mrb[0].mxu0 %v17
  %v163 = vpop.f32.mrb[0].mxu0
  %v164 = vadd.f32 0.0, %v163
  %v165 = vpop.f32.mrb[0].mxu0
  %166 = vmatprep.mubr.f32.mxu0 0.0
  %167 = vmatmul.mubr.f32.gmra.mrb[0].mxu0 %v18
  %v168 = vpop.f32.mrb[0].mxu0
  %v169 = vadd.f32 0.0, %v168
  %v170 = vpop.f32.mrb[0].mxu0
  %171 = vmatprep.mubr.f32.mxu0 0.0
  %172 = vmatmul.mubr.f32.gmra.mrb[0].mxu0 %v19
  %v173 = vpop.f32.mrb[0].mxu0
  %v174 = vadd.f32 0.0, %v173
  %v175 = vpop.f32.mrb[0].mxu0
  %176 = vmatprep.mubr.f32.mxu0 0.0
  %177 = vmatmul.mubr.f32.gmra.mrb[0].mxu0 %v20
  %v178 = vpop.f32.mrb[0].mxu0
  %v179 = vadd.f32 0.0, %v178
  %v180 = vpop.f32.mrb[0].mxu0
  %181 = vmatprep.mubr.f32.mxu0 0.0
  %182 = vmatmul.mubr.f32.gmra.mrb[0].mxu0 %v21
  %v183 = vpop.f32.mrb[0].mxu0
  %v184 = vadd.f32 0.0, %v183
  %v185 = vpop.f32.mrb[0].mxu0
  %186 = vmatprep.mubr.f32.mxu0 0.0
  %187 = vmatmul.mubr.f32.gmra.mrb[0].mxu0 %v22
  %v188 = vpop.f32.mrb[0].mxu0
  %v189 = vadd.f32 0.0, %v188
  %v190 = vpop.f32.mrb[0].mxu0
  %191 = vmatprep.mubr.f32.mxu0 0.0
  %192 = vmatmul.mubr.f32.gmra.mrb[0].mxu0 %v23
  %v193 = vpop.f32.mrb[0].mxu0
  %v194 = vadd.f32 0.0, %v193
  %v195 = vpop.f32.mrb[0].mxu0
  %196 = vmatprep.mubr.f32.mxu0 0.0
  %197 = vmatmul.mubr.f32.gmra.mrb[0].mxu0 %v24
  %v198 = vpop.f32.mrb[0].mxu0
  %v199 = vadd.f32 0.0, %v198
  %v200 = vpop.f32.mrb[0].mxu0
  %201 = vmatprep.mubr.f32.mxu0 0.0
  %202 = vmatmul.mubr.f32.gmra.mrb[0].mxu0 %v25
  %v203 = vpop.f32.mrb[0].mxu0
  %v204 = vadd.f32 0.0, %v203
  %v205 = vpop.f32.mrb[0].mxu0
  %206 = vmatprep.mubr.f32.mxu0 0.0
  %207 = vmatmul.mubr.f32.gmra.mrb[0].mxu0 %v26
  %v208 = vpop.f32.mrb[0].mxu0
  %v209 = vadd.f32 0.0, %v208
  %v210 = vpop.f32.mrb[0].mxu0
  %211 = vmatprep.mubr.f32.mxu0 0.0
  %212 = vmatmul.mubr.f32.gmra.mrb[0].mxu0 %v27
  %v213 = vpop.f32.mrb[0].mxu0
  %v214 = vadd.f32 0.0, %v213
  %v215 = vpop.f32.mrb[0].mxu0
  %216 = vmatprep.mubr.f32.mxu0 0.0
  %217 = vmatmul.mubr.f32.gmra.mrb[0].mxu0 %v28
  %v218 = vpop.f32.mrb[0].mxu0
  %v219 = vadd.f32 0.0, %v218
  %v220 = vpop.f32.mrb[0].mxu0
  %221 = vmatprep.mubr.f32.mxu0 0.0
  %222 = vmatmul.mubr.f32.gmra.mrb[0].mxu0 %v29
  %v223 = vpop.f32.mrb[0].mxu0
  %v224 = vadd.f32 0.0, %v223
  %v225 = vpop.f32.mrb[0].mxu0
  %226 = vmatprep.mubr.f32.mxu0 0.0
  %227 = vmatmul.mubr.f32.gmra.mrb[0].mxu0 %v30
  %v228 = vpop.f32.mrb[0].mxu0
  %v229 = vadd.f32 0.0, %v228
  %v230 = vpop.f32.mrb[0].mxu0
  %231 = vmatprep.mubr.f32.mxu0 0.0
  %232 = vmatmul.mubr.f32.gmra.mrb[0].mxu0 %v31
  %v233 = vpop.f32.mrb[0].mxu0
  %v234 = vadd.f32 0.0, %v233
  %v235 = vpop.f32.mrb[0].mxu0
  %236 = vmatprep.mubr.f32.mxu0 0.0
  %237 = vmatmul.mubr.f32.gmra.mrb[0].mxu0 %v32
  %v238 = vpop.f32.mrb[0].mxu0
  %v239 = vadd.f32 0.0, %v238
  %v240 = vpop.f32.mrb[0].mxu0
  %241 = vmatprep.mubr.f32.mxu0 0.0
  %242 = vmatmul.mubr.f32.gmra.mrb[0].mxu0 %v33
  %v243 = vpop.f32.mrb[0].mxu0
  %v244 = vadd.f32 0.0, %v243
  %v245 = vpop.f32.mrb[0].mxu0
  %246 = vmatprep.mubr.f32.mxu0 0.0
  %247 = vmatmul.mubr.f32.gmra.mrb[0].mxu0 %v34
  %v248 = vpop.f32.mrb[0].mxu0
  %v249 = vadd.f32 0.0, %v248
  %v250 = vpop.f32.mrb[0].mxu0
  %251 = vmatprep.mubr.f32.mxu0 0.0
  %252 = vmatmul.mubr.f32.gmra.mrb[0].mxu0 %v35
  %v253 = vpop.f32.mrb[0].mxu0
  %v254 = vadd.f32 0.0, %v253
  %v255 = vpop.f32.mrb[0].mxu0
  %256 = vmatprep.mubr.f32.mxu0 0.0
  %257 = vmatmul.mubr.f32.gmra.mrb[0].mxu0 %v36
  %v258 = vpop.f32.mrb[0].mxu0
  %v259 = vadd.f32 0.0, %v258
  %v260 = vpop.f32.mrb[0].mxu0
  %261 = vmatprep.mubr.f32.mxu0 0.0
  %262 = vmatmul.mubr.f32.gmra.mrb[0].mxu0 %v37
  %v263 = vpop.f32.mrb[0].mxu0
  %v264 = vadd.f32 0.0, %v263
  %v265 = vpop.f32.mrb[0].mxu0
  %266 = vmatprep.mubr.f32.mxu0 0.0
  %267 = vmatmul.mubr.f32.gmra.mrb[0].mxu0 %v38
  %v268 = vpop.f32.mrb[0].mxu0
  %v269 = vadd.f32 0.0, %v268
  %v270 = vpop.f32.mrb[0].mxu0
  %271 = vmatprep.mubr.f32.mxu0 0.0
  %272 = vmatmul.mubr.f32.gmra.mrb[0].mxu0 %v39
  %v273 = vpop.f32.mrb[0].mxu0
  %v274 = vadd.f32 0.0, %v273
  %v275 = vpop.f32.mrb[0].mxu0
  %276 = vmatprep.mubr.f32.mxu0 0.0
  %277 = vmatmul.mubr.f32.gmra.mrb[0].mxu0 %v40
  %v278 = vpop.f32.mrb[0].mxu0
  %v279 = vadd.f32 0.0, %v278
  %v280 = vpop.f32.mrb[0].mxu0
  %281 = vmatprep.mubr.f32.mxu0 0.0
  %282 = vmatmul.mubr.f32.gmra.mrb[0].mxu0 %v41
  %v283 = vpop.f32.mrb[0].mxu0
  %v284 = vadd.f32 0.0, %v283
  %v285 = vpop.f32.mrb[0].mxu0
  %286 = vmatprep.mubr.f32.mxu0 0.0
  %287 = vmatmul.mubr.f32.gmra.mrb[0].mxu0 %v42
  %v288 = vpop.f32.mrb[0].mxu0
  %v289 = vadd.f32 0.0, %v288
  %v290 = vpop.f32.mrb[0].mxu0
  %291 = vmatprep.mubr.f32.mxu0 0.0
  %292 = vmatmul.mubr.f32.gmra.mrb[0].mxu0 %v43
  %v293 = vpop.f32.mrb[0].mxu0
  %v294 = vadd.f32 0.0, %v293
  %v295 = vpop.f32.mrb[0].mxu0
  %296 = vmatprep.mubr.f32.mxu0 0.0
  %297 = vmatmul.mubr.f32.gmra.mrb[0].mxu0 %v44
  %v298 = vpop.f32.mrb[0].mxu0
  %v299 = vadd.f32 0.0, %v298
  %v300 = vpop.f32.mrb[0].mxu0
  %301 = vmatprep.mubr.f32.mxu0 0.0
  %302 = vmatmul.mubr.f32.gmra.mrb[0].mxu0 %v45
  %v303 = vpop.f32.mrb[0].mxu0
  %v304 = vadd.f32 0.0, %v303
  %v305 = vpop.f32.mrb[0].mxu0
  %306 = vmatprep.mubr.f32.mxu0 0.0
  %307 = vmatmul.mubr.f32.gmra.mrb[0].mxu0 %v46
  %v308 = vpop.f32.mrb[0].mxu0
  %v309 = vadd.f32 0.0, %v308
  %v310 = vpop.f32.mrb[0].mxu0
  %311 = vmatprep.mubr.f32.mxu0 0.0
  %312 = vmatmul.mubr.f32.gmra.mrb[0].mxu0 %v47
  %v313 = vpop.f32.mrb[0].mxu0
  %v314 = vadd.f32 0.0, %v313
  %v315 = vpop.f32.mrb[0].mxu0
  %316 = vmatprep.mubr.f32.mxu0 0.0
  %317 = vmatmul.mubr.f32.gmra.mrb[0].mxu0 %v48
  %v318 = vpop.f32.mrb[0].mxu0
  %v319 = vadd.f32 0.0, %v318
  %v320 = vpop.f32.mrb[0].mxu0
  %321 = vmatprep.mubr.f32.mxu0 0.0
  %322 = vmatmul.mubr.f32.gmra.mrb[0].mxu0 %v49
  %v323 = vpop.f32.mrb[0].mxu0
  %v324 = vadd.f32 0.0, %v323
  %v325 = vpop.f32.mrb[0].mxu0
  %326 = vmatprep.mubr.f32.mxu0 0.0
  %327 = vmatmul.mubr.f32.gmra.mrb[0].mxu0 %v50
  %v328 = vpop.f32.mrb[0].mxu0
  %v329 = vadd.f32 0.0, %v328
  %v330 = vpop.f32.mrb[0].mxu0
  %331 = vmatprep.mubr.f32.mxu0 0.0
  %332 = vmatmul.mubr.f32.gmra.mrb[0].mxu0 %v51
  %v333 = vpop.f32.mrb[0].mxu0
  %v334 = vadd.f32 0.0, %v333
  %v335 = vpop.f32.mrb[0].mxu0
  %336 = vmatprep.mubr.f32.mxu0 0.0
  %337 = vmatmul.mubr.f32.gmra.mrb[0].mxu0 %v52
  %v338 = vpop.f32.mrb[0].mxu0
  %v339 = vadd.f32 0.0, %v338
  %v340 = vpop.f32.mrb[0].mxu0
  %341 = vmatprep.mubr.f32.mxu0 0.0
  %342 = vmatmul.mubr.f32.gmra.mrb[0].mxu0 %v53
  %v343 = vpop.f32.mrb[0].mxu0
  %v344 = vadd.f32 0.0, %v343
  %v345 = vpop.f32.mrb[0].mxu0
  %346 = vmatprep.mubr.f32.mxu0 0.0
  %347 = vmatmul.mubr.f32.gmra.mrb[0].mxu0 %v54
  %v348 = vpop.f32.mrb[0].mxu0
  %v349 = vadd.f32 0.0, %v348
  %v350 = vpop.f32.mrb[0].mxu0
  %351 = vmatprep.mubr.f32.mxu0 0.0
  %352 = vmatmul.mubr.f32.gmra.mrb[0].mxu0 %v55
  %v353 = vpop.f32.mrb[0].mxu0
  %v354 = vadd.f32 0.0, %v353
  %v355 = vpop.f32.mrb[0].mxu0
  %356 = vmatprep.mubr.f32.mxu0 0.0
  %357 = vmatmul.mubr.f32.gmra.mrb[0].mxu0 %v56
  %v358 = vpop.f32.mrb[0].mxu0
  %v359 = vadd.f32 0.0, %v358
  %v360 = vpop.f32.mrb[0].mxu0
  %361 = vmatprep.mubr.f32.mxu0 0.0
  %362 = vmatmul.mubr.f32.gmra.mrb[0].mxu0 %v57
  %v363 = vpop.f32.mrb[0].mxu0
  %v364 = vadd.f32 0.0, %v363
  %v365 = vpop.f32.mrb[0].mxu0
  %366 = vmatprep.mubr.f32.mxu0 0.0
  %367 = vmatmul.mubr.f32.gmra.mrb[0].mxu0 %v58
  %v368 = vpop.f32.mrb[0].mxu0
  %v369 = vadd.f32 0.0, %v368
  %v370 = vpop.f32.mrb[0].mxu0
  %371 = vmatprep.mubr.f32.mxu0 0.0
  %372 = vmatmul.mubr.f32.gmra.mrb[0].mxu0 %v59
  %v373 = vpop.f32.mrb[0].mxu0
  %v374 = vadd.f32 0.0, %v373
  %v375 = vpop.f32.mrb[0].mxu0
  %376 = vmatprep.mubr.f32.mxu0 0.0
  %377 = vmatmul.mubr.f32.gmra.mrb[0].mxu0 %v60
  %v378 = vpop.f32.mrb[0].mxu0
  %v379 = vadd.f32 0.0, %v378
  %v380 = vpop.f32.mrb[0].mxu0
  %381 = vmatprep.mubr.f32.mxu0 0.0
  %382 = vmatmul.mubr.f32.gmra.mrb[0].mxu0 %v61
  %v383 = vpop.f32.mrb[0].mxu0
  %v384 = vadd.f32 0.0, %v383
  %v385 = vpop.f32.mrb[0].mxu0
  %386 = vmatprep.mubr.f32.mxu0 0.0
  %387 = vmatmul.mubr.f32.gmra.mrb[0].mxu0 %v62
  %v388 = vpop.f32.mrb[0].mxu0
  %v389 = vadd.f32 0.0, %v388
  %v390 = vpop.f32.mrb[0].mxu0
  %391 = vmatprep.mubr.f32.mxu0 0.0
  %392 = vmatmul.mubr.f32.gmra.mrb[0].mxu0 %v63
  %v393 = vpop.f32.mrb[0].mxu0
  %v394 = vadd.f32 0.0, %v393
  %v395 = vpop.f32.mrb[0].mxu0
  %396 = vmatprep.mubr.f32.mxu0 0.0
  %397 = vmatmul.mubr.f32.gmra.mrb[0].mxu0 %v64
  %v398 = vpop.f32.mrb[0].mxu0
  %v399 = vadd.f32 0.0, %v398
  %v400 = vpop.f32.mrb[0].mxu0
  %401 = vmatprep.mubr.f32.mxu0 0.0
  %402 = vmatmul.mubr.f32.gmra.mrb[0].mxu0 %v65
  %v403 = vpop.f32.mrb[0].mxu0
  %v404 = vadd.f32 0.0, %v403
  %v405 = vpop.f32.mrb[0].mxu0
  %406 = vmatprep.mubr.f32.mxu0 0.0
  %407 = vmatmul.mubr.f32.gmra.mrb[0].mxu0 %v66
  %v408 = vpop.f32.mrb[0].mxu0
  %v409 = vadd.f32 0.0, %v408
  %v410 = vpop.f32.mrb[0].mxu0
  %411 = vmatprep.mubr.f32.mxu0 0.0
  %412 = vmatmul.mubr.f32.gmra.mrb[0].mxu0 %v67
  %v413 = vpop.f32.mrb[0].mxu0
  %v414 = vadd.f32 0.0, %v413
  %v415 = vpop.f32.mrb[0].mxu0
  %416 = vmatprep.mubr.f32.mxu0 0.0
  %417 = vmatmul.mubr.f32.gmra.mrb[0].mxu0 %v68
  %v418 = vpop.f32.mrb[0].mxu0
  %v419 = vadd.f32 0.0, %v418
  %v420 = vpop.f32.mrb[0].mxu0
  %421 = vmatprep.mubr.f32.mxu0 0.0
  %422 = vmatmul.mubr.f32.gmra.mrb[0].mxu0 %v69
  %v423 = vpop.f32.mrb[0].mxu0
  %v424 = vadd.f32 0.0, %v423
  %v425 = vpop.f32.mrb[0].mxu0
  %426 = vmatprep.mubr.f32.mxu0 0.0
  %427 = vmatmul.mubr.f32.gmra.mrb[0].mxu0 %v70
  %v428 = vpop.f32.mrb[0].mxu0
  %v429 = vadd.f32 0.0, %v428
  %v430 = vpop.f32.mrb[0].mxu0
  %431 = vmatprep.mubr.f32.mxu0 0.0
  %432 = vmatmul.mubr.f32.gmra.mrb[0].mxu0 %v71
  %v433 = vpop.f32.mrb[0].mxu0
  %v434 = vadd.f32 0.0, %v433
  %v435 = vpop.f32.mrb[0].mxu0
  %436 = vmatprep.mubr.f32.mxu0 0.0
  %437 = vmatmul.mubr.f32.gmra.mrb[0].mxu0 %v72
  %v438 = vpop.f32.mrb[0].mxu0
  %v439 = vadd.f32 0.0, %v438
  %v440 = vpop.f32.mrb[0].mxu0
  %441 = vmatprep.mubr.f32.mxu0 0.0
  %442 = vmatmul.mubr.f32.gmra.mrb[0].mxu0 %v73
  %v443 = vpop.f32.mrb[0].mxu0
  %v444 = vadd.f32 0.0, %v443
  %v445 = vpop.f32.mrb[0].mxu0
  %446 = vmatprep.mubr.f32.mxu0 0.0
  %447 = vmatmul.mubr.f32.gmra.mrb[0].mxu0 %v74
  %v448 = vpop.f32.mrb[0].mxu0
  %v449 = vadd.f32 0.0, %v448
  %v450 = vpop.f32.mrb[0].mxu0
  %451 = vmatprep.mubr.f32.mxu0 0.0
  %452 = vmatmul.mubr.f32.gmra.mrb[0].mxu0 %v75
  %v453 = vpop.f32.mrb[0].mxu0
  %v454 = vadd.f32 0.0, %v453
  %v455 = vpop.f32.mrb[0].mxu0
  %456 = vmatprep.mubr.f32.mxu0 0.0
  %457 = vmatmul.mubr.f32.gmra.mrb[0].mxu0 %v76
  %v458 = vpop.f32.mrb[0].mxu0
  %v459 = vadd.f32 0.0, %v458
  %v460 = vpop.f32.mrb[0].mxu0
  %461 = vmatprep.mubr.f32.mxu0 0.0
  %462 = vmatmul.mubr.f32.gmra.mrb[0].mxu0 %v77
  %v463 = vpop.f32.mrb[0].mxu0
  %v464 = vadd.f32 0.0, %v463
  %v465 = vpop.f32.mrb[0].mxu0
  %466 = vmatprep.mubr.f32.mxu0 0.0
  %467 = vmatmul.mubr.f32.gmra.mrb[0].mxu0 %v78
  %v468 = vpop.f32.mrb[0].mxu0
  %v469 = vadd.f32 0.0, %v468
  %v470 = vpop.f32.mrb[0].mxu0
  %471 = vmatprep.mubr.f32.mxu0 0.0
  %472 = vmatmul.mubr.f32.gmra.mrb[0].mxu0 %v79
  %v473 = vpop.f32.mrb[0].mxu0
  %v474 = vadd.f32 0.0, %v473
  %v475 = vpop.f32.mrb[0].mxu0
  %476 = vmatprep.mubr.f32.mxu0 0.0
  %477 = vmatmul.mubr.f32.gmra.mrb[0].mxu0 %v80
  %v478 = vpop.f32.mrb[0].mxu0
  %v479 = vadd.f32 0.0, %v478
  %v480 = vpop.f32.mrb[0].mxu0
  %481 = vdwg.mxu0
  %vm482 = vcmask 130048
  %v483 = vsel %vm482, %v164, 0.0
  %v484 = vsel %vm482, %v169, 0.0
  %v485 = vadd.f32 %v483, %v484
  %v486 = vsel %vm482, %v174, 0.0
  %v487 = vadd.f32 %v485, %v486
  %v488 = vsel %vm482, %v179, 0.0
  %v489 = vadd.f32 %v487, %v488
  %v490 = vsel %vm482, %v184, 0.0
  %v491 = vadd.f32 %v489, %v490
  %v492 = vsel %vm482, %v189, 0.0
  %v493 = vadd.f32 %v491, %v492
  %v494 = vsel %vm482, %v194, 0.0
  %v495 = vadd.f32 %v493, %v494
  %v496 = vsel %vm482, %v199, 0.0
  %v497 = vadd.f32 %v495, %v496
  %v498 = vsel %vm482, %v204, 0.0
  %v499 = vadd.f32 %v497, %v498
  %v500 = vsel %vm482, %v209, 0.0
  %v501 = vadd.f32 %v499, %v500
  %v502 = vsel %vm482, %v214, 0.0
  %v503 = vadd.f32 %v501, %v502
  %v504 = vsel %vm482, %v219, 0.0
  %v505 = vadd.f32 %v503, %v504
  %v506 = vsel %vm482, %v224, 0.0
  %v507 = vadd.f32 %v505, %v506
  %v508 = vsel %vm482, %v229, 0.0
  %v509 = vadd.f32 %v507, %v508
  %v510 = vsel %vm482, %v234, 0.0
  %v511 = vadd.f32 %v509, %v510
  %v512 = vsel %vm482, %v239, 0.0
  %v513 = vadd.f32 %v511, %v512
  %v514 = vsel %vm482, %v244, 0.0
  %v515 = vadd.f32 %v513, %v514
  %v516 = vsel %vm482, %v249, 0.0
  %v517 = vadd.f32 %v515, %v516
  %v518 = vsel %vm482, %v254, 0.0
  %v519 = vadd.f32 %v517, %v518
  %v520 = vsel %vm482, %v259, 0.0
  %v521 = vadd.f32 %v519, %v520
  %v522 = vsel %vm482, %v264, 0.0
  %v523 = vadd.f32 %v521, %v522
  %v524 = vsel %vm482, %v269, 0.0
  %v525 = vadd.f32 %v523, %v524
  %v526 = vsel %vm482, %v274, 0.0
  %v527 = vadd.f32 %v525, %v526
  %v528 = vsel %vm482, %v279, 0.0
  %v529 = vadd.f32 %v527, %v528
  %v530 = vsel %vm482, %v284, 0.0
  %v531 = vadd.f32 %v529, %v530
  %v532 = vsel %vm482, %v289, 0.0
  %v533 = vadd.f32 %v531, %v532
  %v534 = vsel %vm482, %v294, 0.0
  %v535 = vadd.f32 %v533, %v534
  %v536 = vsel %vm482, %v299, 0.0
  %v537 = vadd.f32 %v535, %v536
  %v538 = vsel %vm482, %v304, 0.0
  %v539 = vadd.f32 %v537, %v538
  %v540 = vsel %vm482, %v309, 0.0
  %v541 = vadd.f32 %v539, %v540
  %v542 = vsel %vm482, %v314, 0.0
  %v543 = vadd.f32 %v541, %v542
  %v544 = vsel %vm482, %v319, 0.0
  %v545 = vadd.f32 %v543, %v544
  %v546 = vsel %vm482, %v324, 0.0
  %v547 = vadd.f32 %v545, %v546
  %v548 = vsel %vm482, %v329, 0.0
  %v549 = vadd.f32 %v547, %v548
  %v550 = vsel %vm482, %v334, 0.0
  %v551 = vadd.f32 %v549, %v550
  %v552 = vsel %vm482, %v339, 0.0
  %v553 = vadd.f32 %v551, %v552
  %v554 = vsel %vm482, %v344, 0.0
  %v555 = vadd.f32 %v553, %v554
  %v556 = vsel %vm482, %v349, 0.0
  %v557 = vadd.f32 %v555, %v556
  %v558 = vsel %vm482, %v354, 0.0
  %v559 = vadd.f32 %v557, %v558
  %v560 = vsel %vm482, %v359, 0.0
  %v561 = vadd.f32 %v559, %v560
  %v562 = vsel %vm482, %v364, 0.0
  %v563 = vadd.f32 %v561, %v562
  %v564 = vsel %vm482, %v369, 0.0
  %v565 = vadd.f32 %v563, %v564
  %v566 = vsel %vm482, %v374, 0.0
  %v567 = vadd.f32 %v565, %v566
  %v568 = vsel %vm482, %v379, 0.0
  %v569 = vadd.f32 %v567, %v568
  %v570 = vsel %vm482, %v384, 0.0
  %v571 = vadd.f32 %v569, %v570
  %v572 = vsel %vm482, %v389, 0.0
  %v573 = vadd.f32 %v571, %v572
  %v574 = vsel %vm482, %v394, 0.0
  %v575 = vadd.f32 %v573, %v574
  %v576 = vsel %vm482, %v399, 0.0
  %v577 = vadd.f32 %v575, %v576
  %v578 = vsel %vm482, %v404, 0.0
  %v579 = vadd.f32 %v577, %v578
  %v580 = vsel %vm482, %v409, 0.0
  %v581 = vadd.f32 %v579, %v580
  %v582 = vsel %vm482, %v414, 0.0
  %v583 = vadd.f32 %v581, %v582
  %v584 = vsel %vm482, %v419, 0.0
  %v585 = vadd.f32 %v583, %v584
  %v586 = vsel %vm482, %v424, 0.0
  %v587 = vadd.f32 %v585, %v586
  %v588 = vsel %vm482, %v429, 0.0
  %v589 = vadd.f32 %v587, %v588
  %v590 = vsel %vm482, %v434, 0.0
  %v591 = vadd.f32 %v589, %v590
  %v592 = vsel %vm482, %v439, 0.0
  %v593 = vadd.f32 %v591, %v592
  %v594 = vsel %vm482, %v444, 0.0
  %v595 = vadd.f32 %v593, %v594
  %v596 = vsel %vm482, %v449, 0.0
  %v597 = vadd.f32 %v595, %v596
  %v598 = vsel %vm482, %v454, 0.0
  %v599 = vadd.f32 %v597, %v598
  %v600 = vsel %vm482, %v459, 0.0
  %v601 = vadd.f32 %v599, %v600
  %v602 = vsel %vm482, %v464, 0.0
  %v603 = vadd.f32 %v601, %v602
  %v604 = vsel %vm482, %v469, 0.0
  %v605 = vadd.f32 %v603, %v604
  %v606 = vsel %vm482, %v474, 0.0
  %v607 = vadd.f32 %v605, %v606
  %v608 = vsel %vm482, %v479, 0.0
  %v609 = vadd.f32 %v607, %v608
  %v610 = vrot.slane %v609, 4
  %v611 = vadd.f32 %v609, %v610
  %v612 = vrot.slane %v611, 2
  %v613 = vadd.f32 %v611, %v612
  %v614 = vrot.slane %v613, 1
  %v615 = vadd.f32 %v613, %v614
  %v616 = vmul.f32 %v615, 0.001953125
  %v617 = vsub.f32 %v164, %v616
  %v618 = vsub.f32 %v169, %v616
  %v619 = vsub.f32 %v174, %v616
  %v620 = vsub.f32 %v179, %v616
  %v621 = vsub.f32 %v184, %v616
  %v622 = vsub.f32 %v189, %v616
  %v623 = vsub.f32 %v194, %v616
  %v624 = vsub.f32 %v199, %v616
  %v625 = vsub.f32 %v204, %v616
  %v626 = vsub.f32 %v209, %v616
  %v627 = vsub.f32 %v214, %v616
  %v628 = vsub.f32 %v219, %v616
  %v629 = vsub.f32 %v224, %v616
  %v630 = vsub.f32 %v229, %v616
  %v631 = vsub.f32 %v234, %v616
  %v632 = vsub.f32 %v239, %v616
  %v633 = vsub.f32 %v244, %v616
  %v634 = vsub.f32 %v249, %v616
  %v635 = vsub.f32 %v254, %v616
  %v636 = vsub.f32 %v259, %v616
  %v637 = vsub.f32 %v264, %v616
  %v638 = vsub.f32 %v269, %v616
  %v639 = vsub.f32 %v274, %v616
  %v640 = vsub.f32 %v279, %v616
  %v641 = vsub.f32 %v284, %v616
  %v642 = vsub.f32 %v289, %v616
  %v643 = vsub.f32 %v294, %v616
  %v644 = vsub.f32 %v299, %v616
  %v645 = vsub.f32 %v304, %v616
  %v646 = vsub.f32 %v309, %v616
  %v647 = vsub.f32 %v314, %v616
  %v648 = vsub.f32 %v319, %v616
  %v649 = vsub.f32 %v324, %v616
  %v650 = vsub.f32 %v329, %v616
  %v651 = vsub.f32 %v334, %v616
  %v652 = vsub.f32 %v339, %v616
  %v653 = vsub.f32 %v344, %v616
  %v654 = vsub.f32 %v349, %v616
  %v655 = vsub.f32 %v354, %v616
  %v656 = vsub.f32 %v359, %v616
  %v657 = vsub.f32 %v364, %v616
  %v658 = vsub.f32 %v369, %v616
  %v659 = vsub.f32 %v374, %v616
  %v660 = vsub.f32 %v379, %v616
  %v661 = vsub.f32 %v384, %v616
  %v662 = vsub.f32 %v389, %v616
  %v663 = vsub.f32 %v394, %v616
  %v664 = vsub.f32 %v399, %v616
  %v665 = vsub.f32 %v404, %v616
  %v666 = vsub.f32 %v409, %v616
  %v667 = vsub.f32 %v414, %v616
  %v668 = vsub.f32 %v419, %v616
  %v669 = vsub.f32 %v424, %v616
  %v670 = vsub.f32 %v429, %v616
  %v671 = vsub.f32 %v434, %v616
  %v672 = vsub.f32 %v439, %v616
  %v673 = vsub.f32 %v444, %v616
  %v674 = vsub.f32 %v449, %v616
  %v675 = vsub.f32 %v454, %v616
  %v676 = vsub.f32 %v459, %v616
  %v677 = vsub.f32 %v464, %v616
  %v678 = vsub.f32 %v469, %v616
  %v679 = vsub.f32 %v474, %v616
  %v680 = vsub.f32 %v479, %v616
  %v681 = vmul.f32 %v617, %v617
  %v682 = vmul.f32 %v618, %v618
  %v683 = vmul.f32 %v619, %v619
  %v684 = vmul.f32 %v620, %v620
  %v685 = vmul.f32 %v621, %v621
  %v686 = vmul.f32 %v622, %v622
  %v687 = vmul.f32 %v623, %v623
  %v688 = vmul.f32 %v624, %v624
  %v689 = vmul.f32 %v625, %v625
  %v690 = vmul.f32 %v626, %v626
  %v691 = vmul.f32 %v627, %v627
  %v692 = vmul.f32 %v628, %v628
  %v693 = vmul.f32 %v629, %v629
  %v694 = vmul.f32 %v630, %v630
  %v695 = vmul.f32 %v631, %v631
  %v696 = vmul.f32 %v632, %v632
  %v697 = vmul.f32 %v633, %v633
  %v698 = vmul.f32 %v634, %v634
  %v699 = vmul.f32 %v635, %v635
  %v700 = vmul.f32 %v636, %v636
  %v701 = vmul.f32 %v637, %v637
  %v702 = vmul.f32 %v638, %v638
  %v703 = vmul.f32 %v639, %v639
  %v704 = vmul.f32 %v640, %v640
  %v705 = vmul.f32 %v641, %v641
  %v706 = vmul.f32 %v642, %v642
  %v707 = vmul.f32 %v643, %v643
  %v708 = vmul.f32 %v644, %v644
  %v709 = vmul.f32 %v645, %v645
  %v710 = vmul.f32 %v646, %v646
  %v711 = vmul.f32 %v647, %v647
  %v712 = vmul.f32 %v648, %v648
  %v713 = vmul.f32 %v649, %v649
  %v714 = vmul.f32 %v650, %v650
  %v715 = vmul.f32 %v651, %v651
  %v716 = vmul.f32 %v652, %v652
  %v717 = vmul.f32 %v653, %v653
  %v718 = vmul.f32 %v654, %v654
  %v719 = vmul.f32 %v655, %v655
  %v720 = vmul.f32 %v656, %v656
  %v721 = vmul.f32 %v657, %v657
  %v722 = vmul.f32 %v658, %v658
  %v723 = vmul.f32 %v659, %v659
  %v724 = vmul.f32 %v660, %v660
  %v725 = vmul.f32 %v661, %v661
  %v726 = vmul.f32 %v662, %v662
  %v727 = vmul.f32 %v663, %v663
  %v728 = vmul.f32 %v664, %v664
  %v729 = vmul.f32 %v665, %v665
  %v730 = vmul.f32 %v666, %v666
  %v731 = vmul.f32 %v667, %v667
  %v732 = vmul.f32 %v668, %v668
  %v733 = vmul.f32 %v669, %v669
  %v734 = vmul.f32 %v670, %v670
  %v735 = vmul.f32 %v671, %v671
  %v736 = vmul.f32 %v672, %v672
  %v737 = vmul.f32 %v673, %v673
  %v738 = vmul.f32 %v674, %v674
  %v739 = vmul.f32 %v675, %v675
  %v740 = vmul.f32 %v676, %v676
  %v741 = vmul.f32 %v677, %v677
  %v742 = vmul.f32 %v678, %v678
  %v743 = vmul.f32 %v679, %v679
  %v744 = vmul.f32 %v680, %v680
  %v745 = vsel %vm482, %v681, 0.0
  %v746 = vsel %vm482, %v682, 0.0
  %v747 = vadd.f32 %v745, %v746
  %v748 = vsel %vm482, %v683, 0.0
  %v749 = vadd.f32 %v747, %v748
  %v750 = vsel %vm482, %v684, 0.0
  %v751 = vadd.f32 %v749, %v750
  %v752 = vsel %vm482, %v685, 0.0
  %v753 = vadd.f32 %v751, %v752
  %v754 = vsel %vm482, %v686, 0.0
  %v755 = vadd.f32 %v753, %v754
  %v756 = vsel %vm482, %v687, 0.0
  %v757 = vadd.f32 %v755, %v756
  %v758 = vsel %vm482, %v688, 0.0
  %v759 = vadd.f32 %v757, %v758
  %v760 = vsel %vm482, %v689, 0.0
  %v761 = vadd.f32 %v759, %v760
  %v762 = vsel %vm482, %v690, 0.0
  %v763 = vadd.f32 %v761, %v762
  %v764 = vsel %vm482, %v691, 0.0
  %v765 = vadd.f32 %v763, %v764
  %v766 = vsel %vm482, %v692, 0.0
  %v767 = vadd.f32 %v765, %v766
  %v768 = vsel %vm482, %v693, 0.0
  %v769 = vadd.f32 %v767, %v768
  %v770 = vsel %vm482, %v694, 0.0
  %v771 = vadd.f32 %v769, %v770
  %v772 = vsel %vm482, %v695, 0.0
  %v773 = vadd.f32 %v771, %v772
  %v774 = vsel %vm482, %v696, 0.0
  %v775 = vadd.f32 %v773, %v774
  %v776 = vsel %vm482, %v697, 0.0
  %v777 = vadd.f32 %v775, %v776
  %v778 = vsel %vm482, %v698, 0.0
  %v779 = vadd.f32 %v777, %v778
  %v780 = vsel %vm482, %v699, 0.0
  %v781 = vadd.f32 %v779, %v780
  %v782 = vsel %vm482, %v700, 0.0
  %v783 = vadd.f32 %v781, %v782
  %v784 = vsel %vm482, %v701, 0.0
  %v785 = vadd.f32 %v783, %v784
  %v786 = vsel %vm482, %v702, 0.0
  %v787 = vadd.f32 %v785, %v786
  %v788 = vsel %vm482, %v703, 0.0
  %v789 = vadd.f32 %v787, %v788
  %v790 = vsel %vm482, %v704, 0.0
  %v791 = vadd.f32 %v789, %v790
  %v792 = vsel %vm482, %v705, 0.0
  %v793 = vadd.f32 %v791, %v792
  %v794 = vsel %vm482, %v706, 0.0
  %v795 = vadd.f32 %v793, %v794
  %v796 = vsel %vm482, %v707, 0.0
  %v797 = vadd.f32 %v795, %v796
  %v798 = vsel %vm482, %v708, 0.0
  %v799 = vadd.f32 %v797, %v798
  %v800 = vsel %vm482, %v709, 0.0
  %v801 = vadd.f32 %v799, %v800
  %v802 = vsel %vm482, %v710, 0.0
  %v803 = vadd.f32 %v801, %v802
  %v804 = vsel %vm482, %v711, 0.0
  %v805 = vadd.f32 %v803, %v804
  %v806 = vsel %vm482, %v712, 0.0
  %v807 = vadd.f32 %v805, %v806
  %v808 = vsel %vm482, %v713, 0.0
  %v809 = vadd.f32 %v807, %v808
  %v810 = vsel %vm482, %v714, 0.0
  %v811 = vadd.f32 %v809, %v810
  %v812 = vsel %vm482, %v715, 0.0
  %v813 = vadd.f32 %v811, %v812
  %v814 = vsel %vm482, %v716, 0.0
  %v815 = vadd.f32 %v813, %v814
  %v816 = vsel %vm482, %v717, 0.0
  %v817 = vadd.f32 %v815, %v816
  %v818 = vsel %vm482, %v718, 0.0
  %v819 = vadd.f32 %v817, %v818
  %v820 = vsel %vm482, %v719, 0.0
  %v821 = vadd.f32 %v819, %v820
  %v822 = vsel %vm482, %v720, 0.0
  %v823 = vadd.f32 %v821, %v822
  %v824 = vsel %vm482, %v721, 0.0
  %v825 = vadd.f32 %v823, %v824
  %v826 = vsel %vm482, %v722, 0.0
  %v827 = vadd.f32 %v825, %v826
  %v828 = vsel %vm482, %v723, 0.0
  %v829 = vadd.f32 %v827, %v828
  %v830 = vsel %vm482, %v724, 0.0
  %v831 = vadd.f32 %v829, %v830
  %v832 = vsel %vm482, %v725, 0.0
  %v833 = vadd.f32 %v831, %v832
  %v834 = vsel %vm482, %v726, 0.0
  %v835 = vadd.f32 %v833, %v834
  %v836 = vsel %vm482, %v727, 0.0
  %v837 = vadd.f32 %v835, %v836
  %v838 = vsel %vm482, %v728, 0.0
  %v839 = vadd.f32 %v837, %v838
  %v840 = vsel %vm482, %v729, 0.0
  %v841 = vadd.f32 %v839, %v840
  %v842 = vsel %vm482, %v730, 0.0
  %v843 = vadd.f32 %v841, %v842
  %v844 = vsel %vm482, %v731, 0.0
  %v845 = vadd.f32 %v843, %v844
  %v846 = vsel %vm482, %v732, 0.0
  %v847 = vadd.f32 %v845, %v846
  %v848 = vsel %vm482, %v733, 0.0
  %v849 = vadd.f32 %v847, %v848
  %v850 = vsel %vm482, %v734, 0.0
  %v851 = vadd.f32 %v849, %v850
  %v852 = vsel %vm482, %v735, 0.0
  %v853 = vadd.f32 %v851, %v852
  %v854 = vsel %vm482, %v736, 0.0
  %v855 = vadd.f32 %v853, %v854
  %v856 = vsel %vm482, %v737, 0.0
  %v857 = vadd.f32 %v855, %v856
  %v858 = vsel %vm482, %v738, 0.0
  %v859 = vadd.f32 %v857, %v858
  %v860 = vsel %vm482, %v739, 0.0
  %v861 = vadd.f32 %v859, %v860
  %v862 = vsel %vm482, %v740, 0.0
  %v863 = vadd.f32 %v861, %v862
  %v864 = vsel %vm482, %v741, 0.0
  %v865 = vadd.f32 %v863, %v864
  %v866 = vsel %vm482, %v742, 0.0
  %v867 = vadd.f32 %v865, %v866
  %v868 = vsel %vm482, %v743, 0.0
  %v869 = vadd.f32 %v867, %v868
  %v870 = vsel %vm482, %v744, 0.0
  %v871 = vadd.f32 %v869, %v870
  %v872 = vrot.slane %v871, 4
  %v873 = vadd.f32 %v871, %v872
  %v874 = vrot.slane %v873, 2
  %v875 = vadd.f32 %v873, %v874
  %v876 = vrot.slane %v875, 1
  %v877 = vadd.f32 %v875, %v876
  %v878 = vmul.f32 %v877, 0.001953125
  %v879 = vld [vmem:[%s2] sm:$0x1]
  %v880 = vadd.f32 %v878, 1e-05
  %v881 = vrsqrt.pop %v880
  %v882 = vmul.f32 %v879, %v881
  %v884 = vlaneseq
  %v885 = vshrl.u32 %v884, 7
  %v886 = vsub.s32 0, %v885
  %v887 = vrot.slane %v882, %v886
  %v889 = vmul.f32 %v617, %v887
  %v890 = vmul.f32 %v618, %v887
  %v891 = vmul.f32 %v619, %v887
  %v892 = vmul.f32 %v620, %v887
  %v893 = vmul.f32 %v621, %v887
  %v894 = vmul.f32 %v622, %v887
  %v895 = vmul.f32 %v623, %v887
  %v896 = vmul.f32 %v624, %v887
  %v897 = vmul.f32 %v625, %v887
  %v898 = vmul.f32 %v626, %v887
  %v899 = vmul.f32 %v627, %v887
  %v900 = vmul.f32 %v628, %v887
  %v901 = vmul.f32 %v629, %v887
  %v902 = vmul.f32 %v630, %v887
  %v903 = vmul.f32 %v631, %v887
  %v904 = vmul.f32 %v632, %v887
  %v905 = vmul.f32 %v633, %v887
  %v906 = vmul.f32 %v634, %v887
  %v907 = vmul.f32 %v635, %v887
  %v908 = vmul.f32 %v636, %v887
  %v909 = vmul.f32 %v637, %v887
  %v910 = vmul.f32 %v638, %v887
  %v911 = vmul.f32 %v639, %v887
  %v912 = vmul.f32 %v640, %v887
  %v913 = vmul.f32 %v641, %v887
  %v914 = vmul.f32 %v642, %v887
  %v915 = vmul.f32 %v643, %v887
  %v916 = vmul.f32 %v644, %v887
  %v917 = vmul.f32 %v645, %v887
  %v918 = vmul.f32 %v646, %v887
  %v919 = vmul.f32 %v647, %v887
  %v920 = vmul.f32 %v648, %v887
  %v921 = vmul.f32 %v649, %v887
  %v922 = vmul.f32 %v650, %v887
  %v923 = vmul.f32 %v651, %v887
  %v924 = vmul.f32 %v652, %v887
  %v925 = vmul.f32 %v653, %v887
  %v926 = vmul.f32 %v654, %v887
  %v927 = vmul.f32 %v655, %v887
  %v928 = vmul.f32 %v656, %v887
  %v929 = vmul.f32 %v657, %v887
  %v930 = vmul.f32 %v658, %v887
  %v931 = vmul.f32 %v659, %v887
  %v932 = vmul.f32 %v660, %v887
  %v933 = vmul.f32 %v661, %v887
  %v934 = vmul.f32 %v662, %v887
  %v935 = vmul.f32 %v663, %v887
  %v936 = vmul.f32 %v664, %v887
  %v937 = vmul.f32 %v665, %v887
  %v938 = vmul.f32 %v666, %v887
  %v939 = vmul.f32 %v667, %v887
  %v940 = vmul.f32 %v668, %v887
  %v941 = vmul.f32 %v669, %v887
  %v942 = vmul.f32 %v670, %v887
  %v943 = vmul.f32 %v671, %v887
  %v944 = vmul.f32 %v672, %v887
  %v945 = vmul.f32 %v673, %v887
  %v946 = vmul.f32 %v674, %v887
  %v947 = vmul.f32 %v675, %v887
  %v948 = vmul.f32 %v676, %v887
  %v949 = vmul.f32 %v677, %v887
  %v950 = vmul.f32 %v678, %v887
  %v951 = vmul.f32 %v679, %v887
  %v952 = vmul.f32 %v680, %v887
  %v953 = vld [vmem:[%s3] sm:$0x1]
  %v955 = vlaneseq
  %v956 = vshrl.u32 %v955, 7
  %v957 = vsub.s32 0, %v956
  %v958 = vrot.slane %v953, %v957
  %v960 = vadd.f32 %v889, %v958
  %v961 = vadd.f32 %v890, %v958
  %v962 = vadd.f32 %v891, %v958
  %v963 = vadd.f32 %v892, %v958
  %v964 = vadd.f32 %v893, %v958
  %v965 = vadd.f32 %v894, %v958
  %v966 = vadd.f32 %v895, %v958
  %v967 = vadd.f32 %v896, %v958
  %v968 = vadd.f32 %v897, %v958
  %v969 = vadd.f32 %v898, %v958
  %v970 = vadd.f32 %v899, %v958
  %v971 = vadd.f32 %v900, %v958
  %v972 = vadd.f32 %v901, %v958
  %v973 = vadd.f32 %v902, %v958
  %v974 = vadd.f32 %v903, %v958
  %v975 = vadd.f32 %v904, %v958
  %v976 = vadd.f32 %v905, %v958
  %v977 = vadd.f32 %v906, %v958
  %v978 = vadd.f32 %v907, %v958
  %v979 = vadd.f32 %v908, %v958
  %v980 = vadd.f32 %v909, %v958
  %v981 = vadd.f32 %v910, %v958
  %v982 = vadd.f32 %v911, %v958
  %v983 = vadd.f32 %v912, %v958
  %v984 = vadd.f32 %v913, %v958
  %v985 = vadd.f32 %v914, %v958
  %v986 = vadd.f32 %v915, %v958
  %v987 = vadd.f32 %v916, %v958
  %v988 = vadd.f32 %v917, %v958
  %v989 = vadd.f32 %v918, %v958
  %v990 = vadd.f32 %v919, %v958
  %v991 = vadd.f32 %v920, %v958
  %v992 = vadd.f32 %v921, %v958
  %v993 = vadd.f32 %v922, %v958
  %v994 = vadd.f32 %v923, %v958
  %v995 = vadd.f32 %v924, %v958
  %v996 = vadd.f32 %v925, %v958
  %v997 = vadd.f32 %v926, %v958
  %v998 = vadd.f32 %v927, %v958
  %v999 = vadd.f32 %v928, %v958
  %v1000 = vadd.f32 %v929, %v958
  %v1001 = vadd.f32 %v930, %v958
  %v1002 = vadd.f32 %v931, %v958
  %v1003 = vadd.f32 %v932, %v958
  %v1004 = vadd.f32 %v933, %v958
  %v1005 = vadd.f32 %v934, %v958
  %v1006 = vadd.f32 %v935, %v958
  %v1007 = vadd.f32 %v936, %v958
  %v1008 = vadd.f32 %v937, %v958
  %v1009 = vadd.f32 %v938, %v958
  %v1010 = vadd.f32 %v939, %v958
  %v1011 = vadd.f32 %v940, %v958
  %v1012 = vadd.f32 %v941, %v958
  %v1013 = vadd.f32 %v942, %v958
  %v1014 = vadd.f32 %v943, %v958
  %v1015 = vadd.f32 %v944, %v958
  %v1016 = vadd.f32 %v945, %v958
  %v1017 = vadd.f32 %v946, %v958
  %v1018 = vadd.f32 %v947, %v958
  %v1019 = vadd.f32 %v948, %v958
  %v1020 = vadd.f32 %v949, %v958
  %v1021 = vadd.f32 %v950, %v958
  %v1022 = vadd.f32 %v951, %v958
  %v1023 = vadd.f32 %v952, %v958
  %vm1024 = vcmp.gt.f32.partialorder %v960, 0.0
  %vm1025 = vcmp.gt.f32.partialorder %v961, 0.0
  %vm1026 = vcmp.gt.f32.partialorder %v962, 0.0
  %vm1027 = vcmp.gt.f32.partialorder %v963, 0.0
  %vm1028 = vcmp.gt.f32.partialorder %v964, 0.0
  %vm1029 = vcmp.gt.f32.partialorder %v965, 0.0
  %vm1030 = vcmp.gt.f32.partialorder %v966, 0.0
  %vm1031 = vcmp.gt.f32.partialorder %v967, 0.0
  %vm1032 = vcmp.gt.f32.partialorder %v968, 0.0
  %vm1033 = vcmp.gt.f32.partialorder %v969, 0.0
  %vm1034 = vcmp.gt.f32.partialorder %v970, 0.0
  %vm1035 = vcmp.gt.f32.partialorder %v971, 0.0
  %vm1036 = vcmp.gt.f32.partialorder %v972, 0.0
  %vm1037 = vcmp.gt.f32.partialorder %v973, 0.0
  %vm1038 = vcmp.gt.f32.partialorder %v974, 0.0
  %vm1039 = vcmp.gt.f32.partialorder %v975, 0.0
  %vm1040 = vcmp.gt.f32.partialorder %v976, 0.0
  %vm1041 = vcmp.gt.f32.partialorder %v977, 0.0
  %vm1042 = vcmp.gt.f32.partialorder %v978, 0.0
  %vm1043 = vcmp.gt.f32.partialorder %v979, 0.0
  %vm1044 = vcmp.gt.f32.partialorder %v980, 0.0
  %vm1045 = vcmp.gt.f32.partialorder %v981, 0.0
  %vm1046 = vcmp.gt.f32.partialorder %v982, 0.0
  %vm1047 = vcmp.gt.f32.partialorder %v983, 0.0
  %vm1048 = vcmp.gt.f32.partialorder %v984, 0.0
  %vm1049 = vcmp.gt.f32.partialorder %v985, 0.0
  %vm1050 = vcmp.gt.f32.partialorder %v986, 0.0
  %vm1051 = vcmp.gt.f32.partialorder %v987, 0.0
  %vm1052 = vcmp.gt.f32.partialorder %v988, 0.0
  %vm1053 = vcmp.gt.f32.partialorder %v989, 0.0
  %vm1054 = vcmp.gt.f32.partialorder %v990, 0.0
  %vm1055 = vcmp.gt.f32.partialorder %v991, 0.0
  %vm1056 = vcmp.gt.f32.partialorder %v992, 0.0
  %vm1057 = vcmp.gt.f32.partialorder %v993, 0.0
  %vm1058 = vcmp.gt.f32.partialorder %v994, 0.0
  %vm1059 = vcmp.gt.f32.partialorder %v995, 0.0
  %vm1060 = vcmp.gt.f32.partialorder %v996, 0.0
  %vm1061 = vcmp.gt.f32.partialorder %v997, 0.0
  %vm1062 = vcmp.gt.f32.partialorder %v998, 0.0
  %vm1063 = vcmp.gt.f32.partialorder %v999, 0.0
  %vm1064 = vcmp.gt.f32.partialorder %v1000, 0.0
  %vm1065 = vcmp.gt.f32.partialorder %v1001, 0.0
  %vm1066 = vcmp.gt.f32.partialorder %v1002, 0.0
  %vm1067 = vcmp.gt.f32.partialorder %v1003, 0.0
  %vm1068 = vcmp.gt.f32.partialorder %v1004, 0.0
  %vm1069 = vcmp.gt.f32.partialorder %v1005, 0.0
  %vm1070 = vcmp.gt.f32.partialorder %v1006, 0.0
  %vm1071 = vcmp.gt.f32.partialorder %v1007, 0.0
  %vm1072 = vcmp.gt.f32.partialorder %v1008, 0.0
  %vm1073 = vcmp.gt.f32.partialorder %v1009, 0.0
  %vm1074 = vcmp.gt.f32.partialorder %v1010, 0.0
  %vm1075 = vcmp.gt.f32.partialorder %v1011, 0.0
  %vm1076 = vcmp.gt.f32.partialorder %v1012, 0.0
  %vm1077 = vcmp.gt.f32.partialorder %v1013, 0.0
  %vm1078 = vcmp.gt.f32.partialorder %v1014, 0.0
  %vm1079 = vcmp.gt.f32.partialorder %v1015, 0.0
  %vm1080 = vcmp.gt.f32.partialorder %v1016, 0.0
  %vm1081 = vcmp.gt.f32.partialorder %v1017, 0.0
  %vm1082 = vcmp.gt.f32.partialorder %v1018, 0.0
  %vm1083 = vcmp.gt.f32.partialorder %v1019, 0.0
  %vm1084 = vcmp.gt.f32.partialorder %v1020, 0.0
  %vm1085 = vcmp.gt.f32.partialorder %v1021, 0.0
  %vm1086 = vcmp.gt.f32.partialorder %v1022, 0.0
  %vm1087 = vcmp.gt.f32.partialorder %v1023, 0.0
  %v1088 = vmul.f32 %v960, 0.2
  %v1089 = vmul.f32 %v961, 0.2
  %v1090 = vmul.f32 %v962, 0.2
  %v1091 = vmul.f32 %v963, 0.2
  %v1092 = vmul.f32 %v964, 0.2
  %v1093 = vmul.f32 %v965, 0.2
  %v1094 = vmul.f32 %v966, 0.2
  %v1095 = vmul.f32 %v967, 0.2
  %v1096 = vmul.f32 %v968, 0.2
  %v1097 = vmul.f32 %v969, 0.2
  %v1098 = vmul.f32 %v970, 0.2
  %v1099 = vmul.f32 %v971, 0.2
  %v1100 = vmul.f32 %v972, 0.2
  %v1101 = vmul.f32 %v973, 0.2
  %v1102 = vmul.f32 %v974, 0.2
  %v1103 = vmul.f32 %v975, 0.2
  %v1104 = vmul.f32 %v976, 0.2
  %v1105 = vmul.f32 %v977, 0.2
  %v1106 = vmul.f32 %v978, 0.2
  %v1107 = vmul.f32 %v979, 0.2
  %v1108 = vmul.f32 %v980, 0.2
  %v1109 = vmul.f32 %v981, 0.2
  %v1110 = vmul.f32 %v982, 0.2
  %v1111 = vmul.f32 %v983, 0.2
  %v1112 = vmul.f32 %v984, 0.2
  %v1113 = vmul.f32 %v985, 0.2
  %v1114 = vmul.f32 %v986, 0.2
  %v1115 = vmul.f32 %v987, 0.2
  %v1116 = vmul.f32 %v988, 0.2
  %v1117 = vmul.f32 %v989, 0.2
  %v1118 = vmul.f32 %v990, 0.2
  %v1119 = vmul.f32 %v991, 0.2
  %v1120 = vmul.f32 %v992, 0.2
  %v1121 = vmul.f32 %v993, 0.2
  %v1122 = vmul.f32 %v994, 0.2
  %v1123 = vmul.f32 %v995, 0.2
  %v1124 = vmul.f32 %v996, 0.2
  %v1125 = vmul.f32 %v997, 0.2
  %v1126 = vmul.f32 %v998, 0.2
  %v1127 = vmul.f32 %v999, 0.2
  %v1128 = vmul.f32 %v1000, 0.2
  %v1129 = vmul.f32 %v1001, 0.2
  %v1130 = vmul.f32 %v1002, 0.2
  %v1131 = vmul.f32 %v1003, 0.2
  %v1132 = vmul.f32 %v1004, 0.2
  %v1133 = vmul.f32 %v1005, 0.2
  %v1134 = vmul.f32 %v1006, 0.2
  %v1135 = vmul.f32 %v1007, 0.2
  %v1136 = vmul.f32 %v1008, 0.2
  %v1137 = vmul.f32 %v1009, 0.2
  %v1138 = vmul.f32 %v1010, 0.2
  %v1139 = vmul.f32 %v1011, 0.2
  %v1140 = vmul.f32 %v1012, 0.2
  %v1141 = vmul.f32 %v1013, 0.2
  %v1142 = vmul.f32 %v1014, 0.2
  %v1143 = vmul.f32 %v1015, 0.2
  %v1144 = vmul.f32 %v1016, 0.2
  %v1145 = vmul.f32 %v1017, 0.2
  %v1146 = vmul.f32 %v1018, 0.2
  %v1147 = vmul.f32 %v1019, 0.2
  %v1148 = vmul.f32 %v1020, 0.2
  %v1149 = vmul.f32 %v1021, 0.2
  %v1150 = vmul.f32 %v1022, 0.2
  %v1151 = vmul.f32 %v1023, 0.2
  %v1152 = vsel %vm1024, %v960, %v1088
  %v1153 = vsel %vm1025, %v961, %v1089
  %v1154 = vsel %vm1026, %v962, %v1090
  %v1155 = vsel %vm1027, %v963, %v1091
  %v1156 = vsel %vm1028, %v964, %v1092
  %v1157 = vsel %vm1029, %v965, %v1093
  %v1158 = vsel %vm1030, %v966, %v1094
  %v1159 = vsel %vm1031, %v967, %v1095
  %v1160 = vsel %vm1032, %v968, %v1096
  %v1161 = vsel %vm1033, %v969, %v1097
  %v1162 = vsel %vm1034, %v970, %v1098
  %v1163 = vsel %vm1035, %v971, %v1099
  %v1164 = vsel %vm1036, %v972, %v1100
  %v1165 = vsel %vm1037, %v973, %v1101
  %v1166 = vsel %vm1038, %v974, %v1102
  %v1167 = vsel %vm1039, %v975, %v1103
  %v1168 = vsel %vm1040, %v976, %v1104
  %v1169 = vsel %vm1041, %v977, %v1105
  %v1170 = vsel %vm1042, %v978, %v1106
  %v1171 = vsel %vm1043, %v979, %v1107
  %v1172 = vsel %vm1044, %v980, %v1108
  %v1173 = vsel %vm1045, %v981, %v1109
  %v1174 = vsel %vm1046, %v982, %v1110
  %v1175 = vsel %vm1047, %v983, %v1111
  %v1176 = vsel %vm1048, %v984, %v1112
  %v1177 = vsel %vm1049, %v985, %v1113
  %v1178 = vsel %vm1050, %v986, %v1114
  %v1179 = vsel %vm1051, %v987, %v1115
  %v1180 = vsel %vm1052, %v988, %v1116
  %v1181 = vsel %vm1053, %v989, %v1117
  %v1182 = vsel %vm1054, %v990, %v1118
  %v1183 = vsel %vm1055, %v991, %v1119
  %v1184 = vsel %vm1056, %v992, %v1120
  %v1185 = vsel %vm1057, %v993, %v1121
  %v1186 = vsel %vm1058, %v994, %v1122
  %v1187 = vsel %vm1059, %v995, %v1123
  %v1188 = vsel %vm1060, %v996, %v1124
  %v1189 = vsel %vm1061, %v997, %v1125
  %v1190 = vsel %vm1062, %v998, %v1126
  %v1191 = vsel %vm1063, %v999, %v1127
  %v1192 = vsel %vm1064, %v1000, %v1128
  %v1193 = vsel %vm1065, %v1001, %v1129
  %v1194 = vsel %vm1066, %v1002, %v1130
  %v1195 = vsel %vm1067, %v1003, %v1131
  %v1196 = vsel %vm1068, %v1004, %v1132
  %v1197 = vsel %vm1069, %v1005, %v1133
  %v1198 = vsel %vm1070, %v1006, %v1134
  %v1199 = vsel %vm1071, %v1007, %v1135
  %v1200 = vsel %vm1072, %v1008, %v1136
  %v1201 = vsel %vm1073, %v1009, %v1137
  %v1202 = vsel %vm1074, %v1010, %v1138
  %v1203 = vsel %vm1075, %v1011, %v1139
  %v1204 = vsel %vm1076, %v1012, %v1140
  %v1205 = vsel %vm1077, %v1013, %v1141
  %v1206 = vsel %vm1078, %v1014, %v1142
  %v1207 = vsel %vm1079, %v1015, %v1143
  %v1208 = vsel %vm1080, %v1016, %v1144
  %v1209 = vsel %vm1081, %v1017, %v1145
  %v1210 = vsel %vm1082, %v1018, %v1146
  %v1211 = vsel %vm1083, %v1019, %v1147
  %v1212 = vsel %vm1084, %v1020, %v1148
  %v1213 = vsel %vm1085, %v1021, %v1149
  %v1214 = vsel %vm1086, %v1022, %v1150
  %v1215 = vsel %vm1087, %v1023, %v1151
  %1216 = vst.msk [vmem:[%s4] sm:$0xff] %vm482, %v1152
  %1217 = vst.msk [vmem:[%s4 + $0x8] sm:$0xff] %vm482, %v1153
  %1218 = vst.msk [vmem:[%s4 + $0x10] sm:$0xff] %vm482, %v1154
  %1219 = vst.msk [vmem:[%s4 + $0x18] sm:$0xff] %vm482, %v1155
  %1220 = vst.msk [vmem:[%s4 + $0x20] sm:$0xff] %vm482, %v1156
  %1221 = vst.msk [vmem:[%s4 + $0x28] sm:$0xff] %vm482, %v1157
  %1222 = vst.msk [vmem:[%s4 + $0x30] sm:$0xff] %vm482, %v1158
  %1223 = vst.msk [vmem:[%s4 + $0x38] sm:$0xff] %vm482, %v1159
  %1224 = vst.msk [vmem:[%s4 + $0x40] sm:$0xff] %vm482, %v1160
  %1225 = vst.msk [vmem:[%s4 + $0x48] sm:$0xff] %vm482, %v1161
  %1226 = vst.msk [vmem:[%s4 + $0x50] sm:$0xff] %vm482, %v1162
  %1227 = vst.msk [vmem:[%s4 + $0x58] sm:$0xff] %vm482, %v1163
  %1228 = vst.msk [vmem:[%s4 + $0x60] sm:$0xff] %vm482, %v1164
  %1229 = vst.msk [vmem:[%s4 + $0x68] sm:$0xff] %vm482, %v1165
  %1230 = vst.msk [vmem:[%s4 + $0x70] sm:$0xff] %vm482, %v1166
  %1231 = vst.msk [vmem:[%s4 + $0x78] sm:$0xff] %vm482, %v1167
  %1232 = vst.msk [vmem:[%s4 + $0x80] sm:$0xff] %vm482, %v1168
  %1233 = vst.msk [vmem:[%s4 + $0x88] sm:$0xff] %vm482, %v1169
  %1234 = vst.msk [vmem:[%s4 + $0x90] sm:$0xff] %vm482, %v1170
  %1235 = vst.msk [vmem:[%s4 + $0x98] sm:$0xff] %vm482, %v1171
  %1236 = vst.msk [vmem:[%s4 + $0xa0] sm:$0xff] %vm482, %v1172
  %1237 = vst.msk [vmem:[%s4 + $0xa8] sm:$0xff] %vm482, %v1173
  %1238 = vst.msk [vmem:[%s4 + $0xb0] sm:$0xff] %vm482, %v1174
  %1239 = vst.msk [vmem:[%s4 + $0xb8] sm:$0xff] %vm482, %v1175
  %1240 = vst.msk [vmem:[%s4 + $0xc0] sm:$0xff] %vm482, %v1176
  %1241 = vst.msk [vmem:[%s4 + $0xc8] sm:$0xff] %vm482, %v1177
  %1242 = vst.msk [vmem:[%s4 + $0xd0] sm:$0xff] %vm482, %v1178
  %1243 = vst.msk [vmem:[%s4 + $0xd8] sm:$0xff] %vm482, %v1179
  %1244 = vst.msk [vmem:[%s4 + $0xe0] sm:$0xff] %vm482, %v1180
  %1245 = vst.msk [vmem:[%s4 + $0xe8] sm:$0xff] %vm482, %v1181
  %1246 = vst.msk [vmem:[%s4 + $0xf0] sm:$0xff] %vm482, %v1182
  %1247 = vst.msk [vmem:[%s4 + $0xf8] sm:$0xff] %vm482, %v1183
  %1248 = vst.msk [vmem:[%s4 + $0x100] sm:$0xff] %vm482, %v1184
  %1249 = vst.msk [vmem:[%s4 + $0x108] sm:$0xff] %vm482, %v1185
  %1250 = vst.msk [vmem:[%s4 + $0x110] sm:$0xff] %vm482, %v1186
  %1251 = vst.msk [vmem:[%s4 + $0x118] sm:$0xff] %vm482, %v1187
  %1252 = vst.msk [vmem:[%s4 + $0x120] sm:$0xff] %vm482, %v1188
  %1253 = vst.msk [vmem:[%s4 + $0x128] sm:$0xff] %vm482, %v1189
  %1254 = vst.msk [vmem:[%s4 + $0x130] sm:$0xff] %vm482, %v1190
  %1255 = vst.msk [vmem:[%s4 + $0x138] sm:$0xff] %vm482, %v1191
  %1256 = vst.msk [vmem:[%s4 + $0x140] sm:$0xff] %vm482, %v1192
  %1257 = vst.msk [vmem:[%s4 + $0x148] sm:$0xff] %vm482, %v1193
  %1258 = vst.msk [vmem:[%s4 + $0x150] sm:$0xff] %vm482, %v1194
  %1259 = vst.msk [vmem:[%s4 + $0x158] sm:$0xff] %vm482, %v1195
  %1260 = vst.msk [vmem:[%s4 + $0x160] sm:$0xff] %vm482, %v1196
  %1261 = vst.msk [vmem:[%s4 + $0x168] sm:$0xff] %vm482, %v1197
  %1262 = vst.msk [vmem:[%s4 + $0x170] sm:$0xff] %vm482, %v1198
  %1263 = vst.msk [vmem:[%s4 + $0x178] sm:$0xff] %vm482, %v1199
  %1264 = vst.msk [vmem:[%s4 + $0x180] sm:$0xff] %vm482, %v1200
  %1265 = vst.msk [vmem:[%s4 + $0x188] sm:$0xff] %vm482, %v1201
  %1266 = vst.msk [vmem:[%s4 + $0x190] sm:$0xff] %vm482, %v1202
  %1267 = vst.msk [vmem:[%s4 + $0x198] sm:$0xff] %vm482, %v1203
  %1268 = vst.msk [vmem:[%s4 + $0x1a0] sm:$0xff] %vm482, %v1204
  %1269 = vst.msk [vmem:[%s4 + $0x1a8] sm:$0xff] %vm482, %v1205
  %1270 = vst.msk [vmem:[%s4 + $0x1b0] sm:$0xff] %vm482, %v1206
  %1271 = vst.msk [vmem:[%s4 + $0x1b8] sm:$0xff] %vm482, %v1207
  %1272 = vst.msk [vmem:[%s4 + $0x1c0] sm:$0xff] %vm482, %v1208
  %1273 = vst.msk [vmem:[%s4 + $0x1c8] sm:$0xff] %vm482, %v1209
  %1274 = vst.msk [vmem:[%s4 + $0x1d0] sm:$0xff] %vm482, %v1210
  %1275 = vst.msk [vmem:[%s4 + $0x1d8] sm:$0xff] %vm482, %v1211
  %1276 = vst.msk [vmem:[%s4 + $0x1e0] sm:$0xff] %vm482, %v1212
  %1277 = vst.msk [vmem:[%s4 + $0x1e8] sm:$0xff] %vm482, %v1213
  %1278 = vst.msk [vmem:[%s4 + $0x1f0] sm:$0xff] %vm482, %v1214
  %1279 = vst.msk [vmem:[%s4 + $0x1f8] sm:$0xff] %vm482, %v1215
  // Predicated region
  $region18: #{discriminator_forward.5} parent=0 // pred_check
    _
  $region19: #{discriminator_forward.5} parent=0 // pred_check_branch
    %1281 = sbr.rel (0) target = $region21
  $region20: #{discriminator_forward.5} parent=0 // pred_region
    _
  $region21: #{discriminator_forward.5} parent=0 // pred_fallthru
    _
  // Predicated region
  $region22: #{discriminator_forward.5} parent=0 // pred_check
    _
  $region23: #{discriminator_forward.5} parent=0 // pred_check_branch
    %1283 = sbr.rel (0) target = $region25
  $region24: #{discriminator_forward.5} parent=0 // pred_region
    _
  $region25: #{discriminator_forward.5} parent=0 // pred_fallthru
    _

// kernel: discriminator_forward.6
$region0: #{discriminator_forward.6}
  #allocation0 [shape = 'u32[]', space=smem, size = 0x4, offset = 0x4, fixed_abs, tag = 'smem constant byte address 0x4 - core index']
  #allocation1 [shape = 'u32[144,128]{1,0:T(1,128)}', space=vmem, size = 0x12000, scoped, tag = 'internal scratch']
  %s0 = inlined_call_operand.vmem [shape: f32[128,256], index: 0, kind: input, shape index: {}]
  %s1 = inlined_call_operand.vmem [shape: f32[256,32], index: 1, kind: input, shape index: {}]
  %s2 = inlined_call_operand.vmem [shape: f32[1,32], index: 2, kind: input, shape index: {}]
  %s3 = inlined_call_operand.vmem [shape: f32[1,32], index: 3, kind: input, shape index: {}]
  %s4 = inlined_call_operand.vmem [shape: f32[128,32], index: 4, kind: output, shape index: {}]
  %s5 = sld [smem:[#allocation0]]
  $region26: #{discriminator_forward.6} parent=0
    _
  %s7 = ssub.s32 1, %s5
  %s8 = scalar_select 0, %s7, %s5
  // Predicated region
  $region2: #{discriminator_forward.6} parent=0 // pred_check
    _
  $region3: #{discriminator_forward.6} parent=0 // pred_check_branch
    %10 = sbr.rel (0) target = $region5
  $region4: #{discriminator_forward.6} parent=0 // pred_region
    _
  $region5: #{discriminator_forward.6} parent=0 // pred_fallthru
    _
  // Predicated region
  $region6: #{discriminator_forward.6} parent=0 // pred_check
    _
  $region7: #{discriminator_forward.6} parent=0 // pred_check_branch
    %12 = sbr.rel (0) target = $region9
  $region8: #{discriminator_forward.6} parent=0 // pred_region
    _
  $region9: #{discriminator_forward.6} parent=0 // pred_fallthru
    _
  // Predicated region
  $region10: #{discriminator_forward.6} parent=0 // pred_check
    _
  $region11: #{discriminator_forward.6} parent=0 // pred_check_branch
    %14 = sbr.rel (0) target = $region13
  $region12: #{discriminator_forward.6} parent=0 // pred_region
    _
  $region13: #{discriminator_forward.6} parent=0 // pred_fallthru
    _
  // Predicated region
  $region14: #{discriminator_forward.6} parent=0 // pred_check
    _
  $region15: #{discriminator_forward.6} parent=0 // pred_check_branch
    %16 = sbr.rel (0) target = $region17
  $region16: #{discriminator_forward.6} parent=0 // pred_region
    _
  $region17: #{discriminator_forward.6} parent=0 // pred_fallthru
    _
  %v17 = vld [vmem:[%s0] sm:$0xff]
  %v18 = vld [vmem:[%s0 + $0x8] sm:$0xff]
  %v19 = vld [vmem:[%s0 + $0x10] sm:$0xff]
  %v20 = vld [vmem:[%s0 + $0x18] sm:$0xff]
  %v21 = vld [vmem:[%s0 + $0x20] sm:$0xff]
  %v22 = vld [vmem:[%s0 + $0x28] sm:$0xff]
  %v23 = vld [vmem:[%s0 + $0x30] sm:$0xff]
  %v24 = vld [vmem:[%s0 + $0x38] sm:$0xff]
  %v25 = vld [vmem:[%s0 + $0x40] sm:$0xff]
  %v26 = vld [vmem:[%s0 + $0x48] sm:$0xff]
  %v27 = vld [vmem:[%s0 + $0x50] sm:$0xff]
  %v28 = vld [vmem:[%s0 + $0x58] sm:$0xff]
  %v29 = vld [vmem:[%s0 + $0x60] sm:$0xff]
  %v30 = vld [vmem:[%s0 + $0x68] sm:$0xff]
  %v31 = vld [vmem:[%s0 + $0x70] sm:$0xff]
  %v32 = vld [vmem:[%s0 + $0x78] sm:$0xff]
  %v33 = vld [vmem:[%s0 + $0x80] sm:$0xff]
  %v34 = vld [vmem:[%s0 + $0x88] sm:$0xff]
  %v35 = vld [vmem:[%s0 + $0x90] sm:$0xff]
  %v36 = vld [vmem:[%s0 + $0x98] sm:$0xff]
  %v37 = vld [vmem:[%s0 + $0xa0] sm:$0xff]
  %v38 = vld [vmem:[%s0 + $0xa8] sm:$0xff]
  %v39 = vld [vmem:[%s0 + $0xb0] sm:$0xff]
  %v40 = vld [vmem:[%s0 + $0xb8] sm:$0xff]
  %v41 = vld [vmem:[%s0 + $0xc0] sm:$0xff]
  %v42 = vld [vmem:[%s0 + $0xc8] sm:$0xff]
  %v43 = vld [vmem:[%s0 + $0xd0] sm:$0xff]
  %v44 = vld [vmem:[%s0 + $0xd8] sm:$0xff]
  %v45 = vld [vmem:[%s0 + $0xe0] sm:$0xff]
  %v46 = vld [vmem:[%s0 + $0xe8] sm:$0xff]
  %v47 = vld [vmem:[%s0 + $0xf0] sm:$0xff]
  %v48 = vld [vmem:[%s0 + $0xf8] sm:$0xff]
  %v49 = vld [vmem:[%s1] sm:$0xff]
  %v50 = vld [vmem:[%s1 + $0x8] sm:$0xff]
  %v51 = vld [vmem:[%s1 + $0x10] sm:$0xff]
  %v52 = vld [vmem:[%s1 + $0x18] sm:$0xff]
  %v53 = vld [vmem:[%s1 + $0x20] sm:$0xff]
  %v54 = vld [vmem:[%s1 + $0x28] sm:$0xff]
  %v55 = vld [vmem:[%s1 + $0x30] sm:$0xff]
  %v56 = vld [vmem:[%s1 + $0x38] sm:$0xff]
  %v57 = vld [vmem:[%s1 + $0x40] sm:$0xff]
  %v58 = vld [vmem:[%s1 + $0x48] sm:$0xff]
  %v59 = vld [vmem:[%s1 + $0x50] sm:$0xff]
  %v60 = vld [vmem:[%s1 + $0x58] sm:$0xff]
  %v61 = vld [vmem:[%s1 + $0x60] sm:$0xff]
  %v62 = vld [vmem:[%s1 + $0x68] sm:$0xff]
  %v63 = vld [vmem:[%s1 + $0x70] sm:$0xff]
  %v64 = vld [vmem:[%s1 + $0x78] sm:$0xff]
  %v65 = vld [vmem:[%s1 + $0x80] sm:$0xff]
  %v66 = vld [vmem:[%s1 + $0x88] sm:$0xff]
  %v67 = vld [vmem:[%s1 + $0x90] sm:$0xff]
  %v68 = vld [vmem:[%s1 + $0x98] sm:$0xff]
  %v69 = vld [vmem:[%s1 + $0xa0] sm:$0xff]
  %v70 = vld [vmem:[%s1 + $0xa8] sm:$0xff]
  %v71 = vld [vmem:[%s1 + $0xb0] sm:$0xff]
  %v72 = vld [vmem:[%s1 + $0xb8] sm:$0xff]
  %v73 = vld [vmem:[%s1 + $0xc0] sm:$0xff]
  %v74 = vld [vmem:[%s1 + $0xc8] sm:$0xff]
  %v75 = vld [vmem:[%s1 + $0xd0] sm:$0xff]
  %v76 = vld [vmem:[%s1 + $0xd8] sm:$0xff]
  %v77 = vld [vmem:[%s1 + $0xe0] sm:$0xff]
  %v78 = vld [vmem:[%s1 + $0xe8] sm:$0xff]
  %v79 = vld [vmem:[%s1 + $0xf0] sm:$0xff]
  %v80 = vld [vmem:[%s1 + $0xf8] sm:$0xff]
  %81 = vmatprep.subr.mxu0 0.0
  %82 = vmatpush1.msra.mxu0 %v49
  %83 = vmatprep.subr.mxu0 0.0
  %84 = vmatpush1.msra.mxu0 %v50
  %85 = vmatprep.subr.mxu0 0.0
  %86 = vmatpush1.msra.mxu0 %v51
  %87 = vmatprep.subr.mxu0 0.0
  %88 = vmatpush1.msra.mxu0 %v52
  %89 = vmatprep.subr.mxu0 0.0
  %90 = vmatpush1.msra.mxu0 %v53
  %91 = vmatprep.subr.mxu0 0.0
  %92 = vmatpush1.msra.mxu0 %v54
  %93 = vmatprep.subr.mxu0 0.0
  %94 = vmatpush1.msra.mxu0 %v55
  %95 = vmatprep.subr.mxu0 0.0
  %96 = vmatpush1.msra.mxu0 %v56
  %97 = vmatprep.subr.mxu0 0.0
  %98 = vmatpush1.msra.mxu0 %v57
  %99 = vmatprep.subr.mxu0 0.0
  %100 = vmatpush1.msra.mxu0 %v58
  %101 = vmatprep.subr.mxu0 0.0
  %102 = vmatpush1.msra.mxu0 %v59
  %103 = vmatprep.subr.mxu0 0.0
  %104 = vmatpush1.msra.mxu0 %v60
  %105 = vmatprep.subr.mxu0 0.0
  %106 = vmatpush1.msra.mxu0 %v61
  %107 = vmatprep.subr.mxu0 0.0
  %108 = vmatpush1.msra.mxu0 %v62
  %109 = vmatprep.subr.mxu0 0.0
  %110 = vmatpush1.msra.mxu0 %v63
  %111 = vmatprep.subr.mxu0 0.0
  %112 = vmatpush1.msra.mxu0 %v64
  %113 = vmatprep.subr.mxu0 0.0
  %114 = vmatpush1.msra.mxu0 %v65
  %115 = vmatprep.subr.mxu0 0.0
  %116 = vmatpush1.msra.mxu0 %v66
  %117 = vmatprep.subr.mxu0 0.0
  %118 = vmatpush1.msra.mxu0 %v67
  %119 = vmatprep.subr.mxu0 0.0
  %120 = vmatpush1.msra.mxu0 %v68
  %121 = vmatprep.subr.mxu0 0.0
  %122 = vmatpush1.msra.mxu0 %v69
  %123 = vmatprep.subr.mxu0 0.0
  %124 = vmatpush1.msra.mxu0 %v70
  %125 = vmatprep.subr.mxu0 0.0
  %126 = vmatpush1.msra.mxu0 %v71
  %127 = vmatprep.subr.mxu0 0.0
  %128 = vmatpush1.msra.mxu0 %v72
  %129 = vmatprep.subr.mxu0 0.0
  %130 = vmatpush1.msra.mxu0 %v73
  %131 = vmatprep.subr.mxu0 0.0
  %132 = vmatpush1.msra.mxu0 %v74
  %133 = vmatprep.subr.mxu0 0.0
  %134 = vmatpush1.msra.mxu0 %v75
  %135 = vmatprep.subr.mxu0 0.0
  %136 = vmatpush1.msra.mxu0 %v76
  %137 = vmatprep.subr.mxu0 0.0
  %138 = vmatpush1.msra.mxu0 %v77
  %139 = vmatprep.subr.mxu0 0.0
  %140 = vmatpush1.msra.mxu0 %v78
  %141 = vmatprep.subr.mxu0 0.0
  %142 = vmatpush1.msra.mxu0 %v79
  %143 = vmatprep.subr.mxu0 0.0
  %144 = vmatpush1.msra.mxu0 %v80
  %145 = vmatprep.mubr.f32.mxu0 %v18
  %146 = vmatmul.mubr.f32.gmra.mrb[0].mxu0 %v17
  %v147 = vpop.f32.mrb[0].mxu0
  %v148 = vadd.f32 0.0, %v147
  %v149 = vpop.f32.mrb[0].mxu0
  %150 = vmatprep.mubr.f32.mxu0 %v20
  %151 = vmatmul.mubr.f32.gmra.mrb[0].mxu0 %v19
  %v152 = vpop.f32.mrb[0].mxu0
  %v153 = vadd.f32 0.0, %v152
  %v154 = vpop.f32.mrb[0].mxu0
  %155 = vmatprep.mubr.f32.mxu0 %v22
  %156 = vmatmul.mubr.f32.gmra.mrb[0].mxu0 %v21
  %v157 = vpop.f32.mrb[0].mxu0
  %v158 = vadd.f32 0.0, %v157
  %v159 = vpop.f32.mrb[0].mxu0
  %160 = vmatprep.mubr.f32.mxu0 %v24
  %161 = vmatmul.mubr.f32.gmra.mrb[0].mxu0 %v23
  %v162 = vpop.f32.mrb[0].mxu0
  %v163 = vadd.f32 0.0, %v162
  %v164 = vpop.f32.mrb[0].mxu0
  %165 = vmatprep.mubr.f32.mxu0 %v26
  %166 = vmatmul.mubr.f32.gmra.mrb[0].mxu0 %v25
  %v167 = vpop.f32.mrb[0].mxu0
  %v168 = vadd.f32 0.0, %v167
  %v169 = vpop.f32.mrb[0].mxu0
  %170 = vmatprep.mubr.f32.mxu0 %v28
  %171 = vmatmul.mubr.f32.gmra.mrb[0].mxu0 %v27
  %v172 = vpop.f32.mrb[0].mxu0
  %v173 = vadd.f32 0.0, %v172
  %v174 = vpop.f32.mrb[0].mxu0
  %175 = vmatprep.mubr.f32.mxu0 %v30
  %176 = vmatmul.mubr.f32.gmra.mrb[0].mxu0 %v29
  %v177 = vpop.f32.mrb[0].mxu0
  %v178 = vadd.f32 0.0, %v177
  %v179 = vpop.f32.mrb[0].mxu0
  %180 = vmatprep.mubr.f32.mxu0 %v32
  %181 = vmatmul.mubr.f32.gmra.mrb[0].mxu0 %v31
  %v182 = vpop.f32.mrb[0].mxu0
  %v183 = vadd.f32 0.0, %v182
  %v184 = vpop.f32.mrb[0].mxu0
  %185 = vmatprep.mubr.f32.mxu0 %v34
  %186 = vmatmul.mubr.f32.gmra.mrb[0].mxu0 %v33
  %v187 = vpop.f32.mrb[0].mxu0
  %v188 = vadd.f32 0.0, %v187
  %v189 = vpop.f32.mrb[0].mxu0
  %190 = vmatprep.mubr.f32.mxu0 %v36
  %191 = vmatmul.mubr.f32.gmra.mrb[0].mxu0 %v35
  %v192 = vpop.f32.mrb[0].mxu0
  %v193 = vadd.f32 0.0, %v192
  %v194 = vpop.f32.mrb[0].mxu0
  %195 = vmatprep.mubr.f32.mxu0 %v38
  %196 = vmatmul.mubr.f32.gmra.mrb[0].mxu0 %v37
  %v197 = vpop.f32.mrb[0].mxu0
  %v198 = vadd.f32 0.0, %v197
  %v199 = vpop.f32.mrb[0].mxu0
  %200 = vmatprep.mubr.f32.mxu0 %v40
  %201 = vmatmul.mubr.f32.gmra.mrb[0].mxu0 %v39
  %v202 = vpop.f32.mrb[0].mxu0
  %v203 = vadd.f32 0.0, %v202
  %v204 = vpop.f32.mrb[0].mxu0
  %205 = vmatprep.mubr.f32.mxu0 %v42
  %206 = vmatmul.mubr.f32.gmra.mrb[0].mxu0 %v41
  %v207 = vpop.f32.mrb[0].mxu0
  %v208 = vadd.f32 0.0, %v207
  %v209 = vpop.f32.mrb[0].mxu0
  %210 = vmatprep.mubr.f32.mxu0 %v44
  %211 = vmatmul.mubr.f32.gmra.mrb[0].mxu0 %v43
  %v212 = vpop.f32.mrb[0].mxu0
  %v213 = vadd.f32 0.0, %v212
  %v214 = vpop.f32.mrb[0].mxu0
  %215 = vmatprep.mubr.f32.mxu0 %v46
  %216 = vmatmul.mubr.f32.gmra.mrb[0].mxu0 %v45
  %v217 = vpop.f32.mrb[0].mxu0
  %v218 = vadd.f32 0.0, %v217
  %v219 = vpop.f32.mrb[0].mxu0
  %220 = vmatprep.mubr.f32.mxu0 %v48
  %221 = vmatmul.mubr.f32.gmra.mrb[0].mxu0 %v47
  %v222 = vpop.f32.mrb[0].mxu0
  %v223 = vadd.f32 0.0, %v222
  %v224 = vpop.f32.mrb[0].mxu0
  %225 = vdwg.mxu0
  %vm226 = vcmask 261120
  %v227 = vsel %vm226, %v148, 0.0
  %v228 = vsel %vm226, %v153, 0.0
  %v229 = vadd.f32 %v227, %v228
  %v230 = vsel %vm226, %v158, 0.0
  %v231 = vadd.f32 %v229, %v230
  %v232 = vsel %vm226, %v163, 0.0
  %v233 = vadd.f32 %v231, %v232
  %v234 = vsel %vm226, %v168, 0.0
  %v235 = vadd.f32 %v233, %v234
  %v236 = vsel %vm226, %v173, 0.0
  %v237 = vadd.f32 %v235, %v236
  %v238 = vsel %vm226, %v178, 0.0
  %v239 = vadd.f32 %v237, %v238
  %v240 = vsel %vm226, %v183, 0.0
  %v241 = vadd.f32 %v239, %v240
  %v242 = vsel %vm226, %v188, 0.0
  %v243 = vadd.f32 %v241, %v242
  %v244 = vsel %vm226, %v193, 0.0
  %v245 = vadd.f32 %v243, %v244
  %v246 = vsel %vm226, %v198, 0.0
  %v247 = vadd.f32 %v245, %v246
  %v248 = vsel %vm226, %v203, 0.0
  %v249 = vadd.f32 %v247, %v248
  %v250 = vsel %vm226, %v208, 0.0
  %v251 = vadd.f32 %v249, %v250
  %v252 = vsel %vm226, %v213, 0.0
  %v253 = vadd.f32 %v251, %v252
  %v254 = vsel %vm226, %v218, 0.0
  %v255 = vadd.f32 %v253, %v254
  %v256 = vsel %vm226, %v223, 0.0
  %v257 = vadd.f32 %v255, %v256
  %v258 = vrot.slane %v257, 4
  %v259 = vadd.f32 %v257, %v258
  %v260 = vrot.slane %v259, 2
  %v261 = vadd.f32 %v259, %v260
  %v262 = vrot.slane %v261, 1
  %v263 = vadd.f32 %v261, %v262
  %v264 = vmul.f32 %v263, 0.0078125
  %v265 = vsub.f32 %v148, %v264
  %v266 = vsub.f32 %v153, %v264
  %v267 = vsub.f32 %v158, %v264
  %v268 = vsub.f32 %v163, %v264
  %v269 = vsub.f32 %v168, %v264
  %v270 = vsub.f32 %v173, %v264
  %v271 = vsub.f32 %v178, %v264
  %v272 = vsub.f32 %v183, %v264
  %v273 = vsub.f32 %v188, %v264
  %v274 = vsub.f32 %v193, %v264
  %v275 = vsub.f32 %v198, %v264
  %v276 = vsub.f32 %v203, %v264
  %v277 = vsub.f32 %v208, %v264
  %v278 = vsub.f32 %v213, %v264
  %v279 = vsub.f32 %v218, %v264
  %v280 = vsub.f32 %v223, %v264
  %v281 = vmul.f32 %v265, %v265
  %v282 = vmul.f32 %v266, %v266
  %v283 = vmul.f32 %v267, %v267
  %v284 = vmul.f32 %v268, %v268
  %v285 = vmul.f32 %v269, %v269
  %v286 = vmul.f32 %v270, %v270
  %v287 = vmul.f32 %v271, %v271
  %v288 = vmul.f32 %v272, %v272
  %v289 = vmul.f32 %v273, %v273
  %v290 = vmul.f32 %v274, %v274
  %v291 = vmul.f32 %v275, %v275
  %v292 = vmul.f32 %v276, %v276
  %v293 = vmul.f32 %v277, %v277
  %v294 = vmul.f32 %v278, %v278
  %v295 = vmul.f32 %v279, %v279
  %v296 = vmul.f32 %v280, %v280
  %v297 = vsel %vm226, %v281, 0.0
  %v298 = vsel %vm226, %v282, 0.0
  %v299 = vadd.f32 %v297, %v298
  %v300 = vsel %vm226, %v283, 0.0
  %v301 = vadd.f32 %v299, %v300
  %v302 = vsel %vm226, %v284, 0.0
  %v303 = vadd.f32 %v301, %v302
  %v304 = vsel %vm226, %v285, 0.0
  %v305 = vadd.f32 %v303, %v304
  %v306 = vsel %vm226, %v286, 0.0
  %v307 = vadd.f32 %v305, %v306
  %v308 = vsel %vm226, %v287, 0.0
  %v309 = vadd.f32 %v307, %v308
  %v310 = vsel %vm226, %v288, 0.0
  %v311 = vadd.f32 %v309, %v310
  %v312 = vsel %vm226, %v289, 0.0
  %v313 = vadd.f32 %v311, %v312
  %v314 = vsel %vm226, %v290, 0.0
  %v315 = vadd.f32 %v313, %v314
  %v316 = vsel %vm226, %v291, 0.0
  %v317 = vadd.f32 %v315, %v316
  %v318 = vsel %vm226, %v292, 0.0
  %v319 = vadd.f32 %v317, %v318
  %v320 = vsel %vm226, %v293, 0.0
  %v321 = vadd.f32 %v319, %v320
  %v322 = vsel %vm226, %v294, 0.0
  %v323 = vadd.f32 %v321, %v322
  %v324 = vsel %vm226, %v295, 0.0
  %v325 = vadd.f32 %v323, %v324
  %v326 = vsel %vm226, %v296, 0.0
  %v327 = vadd.f32 %v325, %v326
  %v328 = vrot.slane %v327, 4
  %v329 = vadd.f32 %v327, %v328
  %v330 = vrot.slane %v329, 2
  %v331 = vadd.f32 %v329, %v330
  %v332 = vrot.slane %v331, 1
  %v333 = vadd.f32 %v331, %v332
  %v334 = vmul.f32 %v333, 0.0078125
  %v335 = vld [vmem:[%s2] sm:$0x1]
  %v336 = vadd.f32 %v334, 1e-05
  %v337 = vrsqrt.pop %v336
  %v338 = vmul.f32 %v335, %v337
  %v340 = vlaneseq
  %v341 = vshrl.u32 %v340, 7
  %v342 = vsub.s32 0, %v341
  %v343 = vrot.slane %v338, %v342
  %v345 = vmul.f32 %v265, %v343
  %v346 = vmul.f32 %v266, %v343
  %v347 = vmul.f32 %v267, %v343
  %v348 = vmul.f32 %v268, %v343
  %v349 = vmul.f32 %v269, %v343
  %v350 = vmul.f32 %v270, %v343
  %v351 = vmul.f32 %v271, %v343
  %v352 = vmul.f32 %v272, %v343
  %v353 = vmul.f32 %v273, %v343
  %v354 = vmul.f32 %v274, %v343
  %v355 = vmul.f32 %v275, %v343
  %v356 = vmul.f32 %v276, %v343
  %v357 = vmul.f32 %v277, %v343
  %v358 = vmul.f32 %v278, %v343
  %v359 = vmul.f32 %v279, %v343
  %v360 = vmul.f32 %v280, %v343
  %v361 = vld [vmem:[%s3] sm:$0x1]
  %v363 = vlaneseq
  %v364 = vshrl.u32 %v363, 7
  %v365 = vsub.s32 0, %v364
  %v366 = vrot.slane %v361, %v365
  %v368 = vadd.f32 %v345, %v366
  %v369 = vadd.f32 %v346, %v366
  %v370 = vadd.f32 %v347, %v366
  %v371 = vadd.f32 %v348, %v366
  %v372 = vadd.f32 %v349, %v366
  %v373 = vadd.f32 %v350, %v366
  %v374 = vadd.f32 %v351, %v366
  %v375 = vadd.f32 %v352, %v366
  %v376 = vadd.f32 %v353, %v366
  %v377 = vadd.f32 %v354, %v366
  %v378 = vadd.f32 %v355, %v366
  %v379 = vadd.f32 %v356, %v366
  %v380 = vadd.f32 %v357, %v366
  %v381 = vadd.f32 %v358, %v366
  %v382 = vadd.f32 %v359, %v366
  %v383 = vadd.f32 %v360, %v366
  %vm384 = vcmp.gt.f32.partialorder %v368, 0.0
  %vm385 = vcmp.gt.f32.partialorder %v369, 0.0
  %vm386 = vcmp.gt.f32.partialorder %v370, 0.0
  %vm387 = vcmp.gt.f32.partialorder %v371, 0.0
  %vm388 = vcmp.gt.f32.partialorder %v372, 0.0
  %vm389 = vcmp.gt.f32.partialorder %v373, 0.0
  %vm390 = vcmp.gt.f32.partialorder %v374, 0.0
  %vm391 = vcmp.gt.f32.partialorder %v375, 0.0
  %vm392 = vcmp.gt.f32.partialorder %v376, 0.0
  %vm393 = vcmp.gt.f32.partialorder %v377, 0.0
  %vm394 = vcmp.gt.f32.partialorder %v378, 0.0
  %vm395 = vcmp.gt.f32.partialorder %v379, 0.0
  %vm396 = vcmp.gt.f32.partialorder %v380, 0.0
  %vm397 = vcmp.gt.f32.partialorder %v381, 0.0
  %vm398 = vcmp.gt.f32.partialorder %v382, 0.0
  %vm399 = vcmp.gt.f32.partialorder %v383, 0.0
  %v400 = vmul.f32 %v368, 0.2
  %v401 = vmul.f32 %v369, 0.2
  %v402 = vmul.f32 %v370, 0.2
  %v403 = vmul.f32 %v371, 0.2
  %v404 = vmul.f32 %v372, 0.2
  %v405 = vmul.f32 %v373, 0.2
  %v406 = vmul.f32 %v374, 0.2
  %v407 = vmul.f32 %v375, 0.2
  %v408 = vmul.f32 %v376, 0.2
  %v409 = vmul.f32 %v377, 0.2
  %v410 = vmul.f32 %v378, 0.2
  %v411 = vmul.f32 %v379, 0.2
  %v412 = vmul.f32 %v380, 0.2
  %v413 = vmul.f32 %v381, 0.2
  %v414 = vmul.f32 %v382, 0.2
  %v415 = vmul.f32 %v383, 0.2
  %v416 = vsel %vm384, %v368, %v400
  %v417 = vsel %vm385, %v369, %v401
  %v418 = vsel %vm386, %v370, %v402
  %v419 = vsel %vm387, %v371, %v403
  %v420 = vsel %vm388, %v372, %v404
  %v421 = vsel %vm389, %v373, %v405
  %v422 = vsel %vm390, %v374, %v406
  %v423 = vsel %vm391, %v375, %v407
  %v424 = vsel %vm392, %v376, %v408
  %v425 = vsel %vm393, %v377, %v409
  %v426 = vsel %vm394, %v378, %v410
  %v427 = vsel %vm395, %v379, %v411
  %v428 = vsel %vm396, %v380, %v412
  %v429 = vsel %vm397, %v381, %v413
  %v430 = vsel %vm398, %v382, %v414
  %v431 = vsel %vm399, %v383, %v415
  %432 = vst.msk [vmem:[%s4] sm:$0xff] %vm226, %v416
  %433 = vst.msk [vmem:[%s4 + $0x8] sm:$0xff] %vm226, %v417
  %434 = vst.msk [vmem:[%s4 + $0x10] sm:$0xff] %vm226, %v418
  %435 = vst.msk [vmem:[%s4 + $0x18] sm:$0xff] %vm226, %v419
  %436 = vst.msk [vmem:[%s4 + $0x20] sm:$0xff] %vm226, %v420
  %437 = vst.msk [vmem:[%s4 + $0x28] sm:$0xff] %vm226, %v421
  %438 = vst.msk [vmem:[%s4 + $0x30] sm:$0xff] %vm226, %v422
  %439 = vst.msk [vmem:[%s4 + $0x38] sm:$0xff] %vm226, %v423
  %440 = vst.msk [vmem:[%s4 + $0x40] sm:$0xff] %vm226, %v424
  %441 = vst.msk [vmem:[%s4 + $0x48] sm:$0xff] %vm226, %v425
  %442 = vst.msk [vmem:[%s4 + $0x50] sm:$0xff] %vm226, %v426
  %443 = vst.msk [vmem:[%s4 + $0x58] sm:$0xff] %vm226, %v427
  %444 = vst.msk [vmem:[%s4 + $0x60] sm:$0xff] %vm226, %v428
  %445 = vst.msk [vmem:[%s4 + $0x68] sm:$0xff] %vm226, %v429
  %446 = vst.msk [vmem:[%s4 + $0x70] sm:$0xff] %vm226, %v430
  %447 = vst.msk [vmem:[%s4 + $0x78] sm:$0xff] %vm226, %v431
  // Predicated region
  $region18: #{discriminator_forward.6} parent=0 // pred_check
    _
  $region19: #{discriminator_forward.6} parent=0 // pred_check_branch
    %449 = sbr.rel (0) target = $region21
  $region20: #{discriminator_forward.6} parent=0 // pred_region
    _
  $region21: #{discriminator_forward.6} parent=0 // pred_fallthru
    _
  // Predicated region
  $region22: #{discriminator_forward.6} parent=0 // pred_check
    _
  $region23: #{discriminator_forward.6} parent=0 // pred_check_branch
    %451 = sbr.rel (0) target = $region25
  $region24: #{discriminator_forward.6} parent=0 // pred_region
    _
  $region25: #{discriminator_forward.6} parent=0 // pred_fallthru
    _

// kernel: discriminator_forward.7
$region0: #{discriminator_forward.7}
  #allocation0 [shape = 'u32[]', space=smem, size = 0x4, offset = 0x4, fixed_abs, tag = 'smem constant byte address 0x4 - core index']
  #allocation1 [shape = 'u32[144,128]{1,0:T(1,128)}', space=vmem, size = 0x12000, scoped, tag = 'internal scratch']
  %s0 = inlined_call_operand.vmem [shape: f32[32,512], index: 0, kind: input, shape index: {}]
  %s1 = inlined_call_operand.vmem [shape: f32[512,64], index: 1, kind: input, shape index: {}]
  %s2 = inlined_call_operand.vmem [shape: f32[1,64], index: 2, kind: input, shape index: {}]
  %s3 = inlined_call_operand.vmem [shape: f32[1,64], index: 3, kind: input, shape index: {}]
  %s4 = inlined_call_operand.vmem [shape: f32[32,64], index: 4, kind: input, shape index: {}]
  %s5 = inlined_call_operand.vmem [shape: f32[2,32], index: 5, kind: input, shape index: {}]
  %s6 = inlined_call_operand.vmem [shape: f32[2,1], index: 6, kind: output, shape index: {}]
  %s7 = sld [smem:[#allocation0]]
  $region34: #{discriminator_forward.7} parent=0
    _
  %s9 = ssub.s32 1, %s7
  %s10 = scalar_select 0, %s9, %s7
  // Predicated region
  $region2: #{discriminator_forward.7} parent=0 // pred_check
    _
  $region3: #{discriminator_forward.7} parent=0 // pred_check_branch
    %12 = sbr.rel (0) target = $region5
  $region4: #{discriminator_forward.7} parent=0 // pred_region
    _
  $region5: #{discriminator_forward.7} parent=0 // pred_fallthru
    _
  // Predicated region
  $region6: #{discriminator_forward.7} parent=0 // pred_check
    _
  $region7: #{discriminator_forward.7} parent=0 // pred_check_branch
    %14 = sbr.rel (0) target = $region9
  $region8: #{discriminator_forward.7} parent=0 // pred_region
    _
  $region9: #{discriminator_forward.7} parent=0 // pred_fallthru
    _
  // Predicated region
  $region10: #{discriminator_forward.7} parent=0 // pred_check
    _
  $region11: #{discriminator_forward.7} parent=0 // pred_check_branch
    %16 = sbr.rel (0) target = $region13
  $region12: #{discriminator_forward.7} parent=0 // pred_region
    _
  $region13: #{discriminator_forward.7} parent=0 // pred_fallthru
    _
  // Predicated region
  $region14: #{discriminator_forward.7} parent=0 // pred_check
    _
  $region15: #{discriminator_forward.7} parent=0 // pred_check_branch
    %18 = sbr.rel (0) target = $region17
  $region16: #{discriminator_forward.7} parent=0 // pred_region
    _
  $region17: #{discriminator_forward.7} parent=0 // pred_fallthru
    _
  // Predicated region
  $region18: #{discriminator_forward.7} parent=0 // pred_check
    _
  $region19: #{discriminator_forward.7} parent=0 // pred_check_branch
    %20 = sbr.rel (0) target = $region21
  $region20: #{discriminator_forward.7} parent=0 // pred_region
    _
  $region21: #{discriminator_forward.7} parent=0 // pred_fallthru
    _
  // Predicated region
  $region22: #{discriminator_forward.7} parent=0 // pred_check
    _
  $region23: #{discriminator_forward.7} parent=0 // pred_check_branch
    %22 = sbr.rel (0) target = $region25
  $region24: #{discriminator_forward.7} parent=0 // pred_region
    _
  $region25: #{discriminator_forward.7} parent=0 // pred_fallthru
    _
  %v23 = vld [vmem:[%s0] sm:$0xff]
  %v24 = vld [vmem:[%s0 + $0x8] sm:$0xff]
  %v25 = vld [vmem:[%s0 + $0x10] sm:$0xff]
  %v26 = vld [vmem:[%s0 + $0x18] sm:$0xff]
  %v27 = vld [vmem:[%s0 + $0x20] sm:$0xff]
  %v28 = vld [vmem:[%s0 + $0x28] sm:$0xff]
  %v29 = vld [vmem:[%s0 + $0x30] sm:$0xff]
  %v30 = vld [vmem:[%s0 + $0x38] sm:$0xff]
  %v31 = vld [vmem:[%s0 + $0x40] sm:$0xff]
  %v32 = vld [vmem:[%s0 + $0x48] sm:$0xff]
  %v33 = vld [vmem:[%s0 + $0x50] sm:$0xff]
  %v34 = vld [vmem:[%s0 + $0x58] sm:$0xff]
  %v35 = vld [vmem:[%s0 + $0x60] sm:$0xff]
  %v36 = vld [vmem:[%s0 + $0x68] sm:$0xff]
  %v37 = vld [vmem:[%s0 + $0x70] sm:$0xff]
  %v38 = vld [vmem:[%s0 + $0x78] sm:$0xff]
  %v39 = vld [vmem:[%s1] sm:$0xff]
  %v40 = vld [vmem:[%s1 + $0x8] sm:$0xff]
  %v41 = vld [vmem:[%s1 + $0x10] sm:$0xff]
  %v42 = vld [vmem:[%s1 + $0x18] sm:$0xff]
  %v43 = vld [vmem:[%s1 + $0x20] sm:$0xff]
  %v44 = vld [vmem:[%s1 + $0x28] sm:$0xff]
  %v45 = vld [vmem:[%s1 + $0x30] sm:$0xff]
  %v46 = vld [vmem:[%s1 + $0x38] sm:$0xff]
  %v47 = vld [vmem:[%s1 + $0x40] sm:$0xff]
  %v48 = vld [vmem:[%s1 + $0x48] sm:$0xff]
  %v49 = vld [vmem:[%s1 + $0x50] sm:$0xff]
  %v50 = vld [vmem:[%s1 + $0x58] sm:$0xff]
  %v51 = vld [vmem:[%s1 + $0x60] sm:$0xff]
  %v52 = vld [vmem:[%s1 + $0x68] sm:$0xff]
  %v53 = vld [vmem:[%s1 + $0x70] sm:$0xff]
  %v54 = vld [vmem:[%s1 + $0x78] sm:$0xff]
  %v55 = vld [vmem:[%s1 + $0x80] sm:$0xff]
  %v56 = vld [vmem:[%s1 + $0x88] sm:$0xff]
  %v57 = vld [vmem:[%s1 + $0x90] sm:$0xff]
  %v58 = vld [vmem:[%s1 + $0x98] sm:$0xff]
  %v59 = vld [vmem:[%s1 + $0xa0] sm:$0xff]
  %v60 = vld [vmem:[%s1 + $0xa8] sm:$0xff]
  %v61 = vld [vmem:[%s1 + $0xb0] sm:$0xff]
  %v62 = vld [vmem:[%s1 + $0xb8] sm:$0xff]
  %v63 = vld [vmem:[%s1 + $0xc0] sm:$0xff]
  %v64 = vld [vmem:[%s1 + $0xc8] sm:$0xff]
  %v65 = vld [vmem:[%s1 + $0xd0] sm:$0xff]
  %v66 = vld [vmem:[%s1 + $0xd8] sm:$0xff]
  %v67 = vld [vmem:[%s1 + $0xe0] sm:$0xff]
  %v68 = vld [vmem:[%s1 + $0xe8] sm:$0xff]
  %v69 = vld [vmem:[%s1 + $0xf0] sm:$0xff]
  %v70 = vld [vmem:[%s1 + $0xf8] sm:$0xff]
  %v71 = vld [vmem:[%s1 + $0x100] sm:$0xff]
  %v72 = vld [vmem:[%s1 + $0x108] sm:$0xff]
  %v73 = vld [vmem:[%s1 + $0x110] sm:$0xff]
  %v74 = vld [vmem:[%s1 + $0x118] sm:$0xff]
  %v75 = vld [vmem:[%s1 + $0x120] sm:$0xff]
  %v76 = vld [vmem:[%s1 + $0x128] sm:$0xff]
  %v77 = vld [vmem:[%s1 + $0x130] sm:$0xff]
  %v78 = vld [vmem:[%s1 + $0x138] sm:$0xff]
  %v79 = vld [vmem:[%s1 + $0x140] sm:$0xff]
  %v80 = vld [vmem:[%s1 + $0x148] sm:$0xff]
  %v81 = vld [vmem:[%s1 + $0x150] sm:$0xff]
  %v82 = vld [vmem:[%s1 + $0x158] sm:$0xff]
  %v83 = vld [vmem:[%s1 + $0x160] sm:$0xff]
  %v84 = vld [vmem:[%s1 + $0x168] sm:$0xff]
  %v85 = vld [vmem:[%s1 + $0x170] sm:$0xff]
  %v86 = vld [vmem:[%s1 + $0x178] sm:$0xff]
  %v87 = vld [vmem:[%s1 + $0x180] sm:$0xff]
  %v88 = vld [vmem:[%s1 + $0x188] sm:$0xff]
  %v89 = vld [vmem:[%s1 + $0x190] sm:$0xff]
  %v90 = vld [vmem:[%s1 + $0x198] sm:$0xff]
  %v91 = vld [vmem:[%s1 + $0x1a0] sm:$0xff]
  %v92 = vld [vmem:[%s1 + $0x1a8] sm:$0xff]
  %v93 = vld [vmem:[%s1 + $0x1b0] sm:$0xff]
  %v94 = vld [vmem:[%s1 + $0x1b8] sm:$0xff]
  %v95 = vld [vmem:[%s1 + $0x1c0] sm:$0xff]
  %v96 = vld [vmem:[%s1 + $0x1c8] sm:$0xff]
  %v97 = vld [vmem:[%s1 + $0x1d0] sm:$0xff]
  %v98 = vld [vmem:[%s1 + $0x1d8] sm:$0xff]
  %v99 = vld [vmem:[%s1 + $0x1e0] sm:$0xff]
  %v100 = vld [vmem:[%s1 + $0x1e8] sm:$0xff]
  %v101 = vld [vmem:[%s1 + $0x1f0] sm:$0xff]
  %v102 = vld [vmem:[%s1 + $0x1f8] sm:$0xff]
  %103 = vmatprep.subr.mxu0 0.0
  %104 = vmatpush1.msra.mxu0 %v39
  %105 = vmatprep.subr.mxu0 0.0
  %106 = vmatpush1.msra.mxu0 %v40
  %107 = vmatprep.subr.mxu0 0.0
  %108 = vmatpush1.msra.mxu0 %v41
  %109 = vmatprep.subr.mxu0 0.0
  %110 = vmatpush1.msra.mxu0 %v42
  %111 = vmatprep.subr.mxu0 0.0
  %112 = vmatpush1.msra.mxu0 %v43
  %113 = vmatprep.subr.mxu0 0.0
  %114 = vmatpush1.msra.mxu0 %v44
  %115 = vmatprep.subr.mxu0 0.0
  %116 = vmatpush1.msra.mxu0 %v45
  %117 = vmatprep.subr.mxu0 0.0
  %118 = vmatpush1.msra.mxu0 %v46
  %119 = vmatprep.subr.mxu0 0.0
  %120 = vmatpush1.msra.mxu0 %v47
  %121 = vmatprep.subr.mxu0 0.0
  %122 = vmatpush1.msra.mxu0 %v48
  %123 = vmatprep.subr.mxu0 0.0
  %124 = vmatpush1.msra.mxu0 %v49
  %125 = vmatprep.subr.mxu0 0.0
  %126 = vmatpush1.msra.mxu0 %v50
  %127 = vmatprep.subr.mxu0 0.0
  %128 = vmatpush1.msra.mxu0 %v51
  %129 = vmatprep.subr.mxu0 0.0
  %130 = vmatpush1.msra.mxu0 %v52
  %131 = vmatprep.subr.mxu0 0.0
  %132 = vmatpush1.msra.mxu0 %v53
  %133 = vmatprep.subr.mxu0 0.0
  %134 = vmatpush1.msra.mxu0 %v54
  %135 = vmatprep.subr.mxu0 0.0
  %136 = vmatpush1.msra.mxu0 %v55
  %137 = vmatprep.subr.mxu0 0.0
  %138 = vmatpush1.msra.mxu0 %v56
  %139 = vmatprep.subr.mxu0 0.0
  %140 = vmatpush1.msra.mxu0 %v57
  %141 = vmatprep.subr.mxu0 0.0
  %142 = vmatpush1.msra.mxu0 %v58
  %143 = vmatprep.subr.mxu0 0.0
  %144 = vmatpush1.msra.mxu0 %v59
  %145 = vmatprep.subr.mxu0 0.0
  %146 = vmatpush1.msra.mxu0 %v60
  %147 = vmatprep.subr.mxu0 0.0
  %148 = vmatpush1.msra.mxu0 %v61
  %149 = vmatprep.subr.mxu0 0.0
  %150 = vmatpush1.msra.mxu0 %v62
  %151 = vmatprep.subr.mxu0 0.0
  %152 = vmatpush1.msra.mxu0 %v63
  %153 = vmatprep.subr.mxu0 0.0
  %154 = vmatpush1.msra.mxu0 %v64
  %155 = vmatprep.subr.mxu0 0.0
  %156 = vmatpush1.msra.mxu0 %v65
  %157 = vmatprep.subr.mxu0 0.0
  %158 = vmatpush1.msra.mxu0 %v66
  %159 = vmatprep.subr.mxu0 0.0
  %160 = vmatpush1.msra.mxu0 %v67
  %161 = vmatprep.subr.mxu0 0.0
  %162 = vmatpush1.msra.mxu0 %v68
  %163 = vmatprep.subr.mxu0 0.0
  %164 = vmatpush1.msra.mxu0 %v69
  %165 = vmatprep.subr.mxu0 0.0
  %166 = vmatpush1.msra.mxu0 %v70
  %167 = vmatprep.mubr.f32.mxu0 %v24
  %168 = vmatmul.mubr.f32.gmra.mrb[0].mxu0 %v23
  %v169 = vpop.f32.mrb[0].mxu0
  %v170 = vadd.f32 0.0, %v169
  %v171 = vpop.f32.mrb[0].mxu0
  %172 = vmatprep.mubr.f32.mxu0 %v28
  %173 = vmatmul.mubr.f32.gmra.mrb[0].mxu0 %v27
  %v174 = vpop.f32.mrb[0].mxu0
  %v175 = vadd.f32 0.0, %v174
  %v176 = vpop.f32.mrb[0].mxu0
  %177 = vmatprep.mubr.f32.mxu0 %v32
  %178 = vmatmul.mubr.f32.gmra.mrb[0].mxu0 %v31
  %v179 = vpop.f32.mrb[0].mxu0
  %v180 = vadd.f32 0.0, %v179
  %v181 = vpop.f32.mrb[0].mxu0
  %182 = vmatprep.mubr.f32.mxu0 %v36
  %183 = vmatmul.mubr.f32.gmra.mrb[0].mxu0 %v35
  %v184 = vpop.f32.mrb[0].mxu0
  %v185 = vadd.f32 0.0, %v184
  %v186 = vpop.f32.mrb[0].mxu0
  %187 = vdwg.mxu0
  %188 = vmatprep.subr.mxu0 0.0
  %189 = vmatpush1.msra.mxu0 %v71
  %190 = vmatprep.subr.mxu0 0.0
  %191 = vmatpush1.msra.mxu0 %v72
  %192 = vmatprep.subr.mxu0 0.0
  %193 = vmatpush1.msra.mxu0 %v73
  %194 = vmatprep.subr.mxu0 0.0
  %195 = vmatpush1.msra.mxu0 %v74
  %196 = vmatprep.subr.mxu0 0.0
  %197 = vmatpush1.msra.mxu0 %v75
  %198 = vmatprep.subr.mxu0 0.0
  %199 = vmatpush1.msra.mxu0 %v76
  %200 = vmatprep.subr.mxu0 0.0
  %201 = vmatpush1.msra.mxu0 %v77
  %202 = vmatprep.subr.mxu0 0.0
  %203 = vmatpush1.msra.mxu0 %v78
  %204 = vmatprep.subr.mxu0 0.0
  %205 = vmatpush1.msra.mxu0 %v79
  %206 = vmatprep.subr.mxu0 0.0
  %207 = vmatpush1.msra.mxu0 %v80
  %208 = vmatprep.subr.mxu0 0.0
  %209 = vmatpush1.msra.mxu0 %v81
  %210 = vmatprep.subr.mxu0 0.0
  %211 = vmatpush1.msra.mxu0 %v82
  %212 = vmatprep.subr.mxu0 0.0
  %213 = vmatpush1.msra.mxu0 %v83
  %214 = vmatprep.subr.mxu0 0.0
  %215 = vmatpush1.msra.mxu0 %v84
  %216 = vmatprep.subr.mxu0 0.0
  %217 = vmatpush1.msra.mxu0 %v85
  %218 = vmatprep.subr.mxu0 0.0
  %219 = vmatpush1.msra.mxu0 %v86
  %220 = vmatprep.subr.mxu0 0.0
  %221 = vmatpush1.msra.mxu0 %v87
  %222 = vmatprep.subr.mxu0 0.0
  %223 = vmatpush1.msra.mxu0 %v88
  %224 = vmatprep.subr.mxu0 0.0
  %225 = vmatpush1.msra.mxu0 %v89
  %226 = vmatprep.subr.mxu0 0.0
  %227 = vmatpush1.msra.mxu0 %v90
  %228 = vmatprep.subr.mxu0 0.0
  %229 = vmatpush1.msra.mxu0 %v91
  %230 = vmatprep.subr.mxu0 0.0
  %231 = vmatpush1.msra.mxu0 %v92
  %232 = vmatprep.subr.mxu0 0.0
  %233 = vmatpush1.msra.mxu0 %v93
  %234 = vmatprep.subr.mxu0 0.0
  %235 = vmatpush1.msra.mxu0 %v94
  %236 = vmatprep.subr.mxu0 0.0
  %237 = vmatpush1.msra.mxu0 %v95
  %238 = vmatprep.subr.mxu0 0.0
  %239 = vmatpush1.msra.mxu0 %v96
  %240 = vmatprep.subr.mxu0 0.0
  %241 = vmatpush1.msra.mxu0 %v97
  %242 = vmatprep.subr.mxu0 0.0
  %243 = vmatpush1.msra.mxu0 %v98
  %244 = vmatprep.subr.mxu0 0.0
  %245 = vmatpush1.msra.mxu0 %v99
  %246 = vmatprep.subr.mxu0 0.0
  %247 = vmatpush1.msra.mxu0 %v100
  %248 = vmatprep.subr.mxu0 0.0
  %249 = vmatpush1.msra.mxu0 %v101
  %250 = vmatprep.subr.mxu0 0.0
  %251 = vmatpush1.msra.mxu0 %v102
  %252 = vmatprep.mubr.f32.mxu0 %v26
  %253 = vmatmul.mubr.f32.gmra.mrb[0].mxu0 %v25
  %v254 = vpop.f32.mrb[0].mxu0
  %v255 = vadd.f32 %v170, %v254
  %v256 = vpop.f32.mrb[0].mxu0
  %257 = vmatprep.mubr.f32.mxu0 %v30
  %258 = vmatmul.mubr.f32.gmra.mrb[0].mxu0 %v29
  %v259 = vpop.f32.mrb[0].mxu0
  %v260 = vadd.f32 %v175, %v259
  %v261 = vpop.f32.mrb[0].mxu0
  %262 = vmatprep.mubr.f32.mxu0 %v34
  %263 = vmatmul.mubr.f32.gmra.mrb[0].mxu0 %v33
  %v264 = vpop.f32.mrb[0].mxu0
  %v265 = vadd.f32 %v180, %v264
  %v266 = vpop.f32.mrb[0].mxu0
  %267 = vmatprep.mubr.f32.mxu0 %v38
  %268 = vmatmul.mubr.f32.gmra.mrb[0].mxu0 %v37
  %v269 = vpop.f32.mrb[0].mxu0
  %v270 = vadd.f32 %v185, %v269
  %v271 = vpop.f32.mrb[0].mxu0
  %272 = vdwg.mxu0
  %vm273 = vcmask 523264
  %v274 = vsel %vm273, %v255, 0.0
  %v275 = vsel %vm273, %v260, 0.0
  %v276 = vadd.f32 %v274, %v275
  %v277 = vsel %vm273, %v265, 0.0
  %v278 = vadd.f32 %v276, %v277
  %v279 = vsel %vm273, %v270, 0.0
  %v280 = vadd.f32 %v278, %v279
  %v281 = vrot.slane %v280, 4
  %v282 = vadd.f32 %v280, %v281
  %v283 = vrot.slane %v282, 2
  %v284 = vadd.f32 %v282, %v283
  %v285 = vrot.slane %v284, 1
  %v286 = vadd.f32 %v284, %v285
  %v287 = vmul.f32 %v286, 0.03125
  %v288 = vsub.f32 %v255, %v287
  %v289 = vsub.f32 %v260, %v287
  %v290 = vsub.f32 %v265, %v287
  %v291 = vsub.f32 %v270, %v287
  %v292 = vmul.f32 %v288, %v288
  %v293 = vmul.f32 %v289, %v289
  %v294 = vmul.f32 %v290, %v290
  %v295 = vmul.f32 %v291, %v291
  %v296 = vsel %vm273, %v292, 0.0
  %v297 = vsel %vm273, %v293, 0.0
  %v298 = vadd.f32 %v296, %v297
  %v299 = vsel %vm273, %v294, 0.0
  %v300 = vadd.f32 %v298, %v299
  %v301 = vsel %vm273, %v295, 0.0
  %v302 = vadd.f32 %v300, %v301
  %v303 = vrot.slane %v302, 4
  %v304 = vadd.f32 %v302, %v303
  %v305 = vrot.slane %v304, 2
  %v306 = vadd.f32 %v304, %v305
  %v307 = vrot.slane %v306, 1
  %v308 = vadd.f32 %v306, %v307
  %v309 = vmul.f32 %v308, 0.03125
  %v310 = vld [vmem:[%s2] sm:$0x1]
  %v311 = vadd.f32 %v309, 1e-05
  %v312 = vrsqrt.pop %v311
  %v313 = vmul.f32 %v310, %v312
  %v315 = vlaneseq
  %v316 = vshrl.u32 %v315, 7
  %v317 = vsub.s32 0, %v316
  %v318 = vrot.slane %v313, %v317
  %v320 = vmul.f32 %v288, %v318
  %v321 = vmul.f32 %v289, %v318
  %v322 = vmul.f32 %v290, %v318
  %v323 = vmul.f32 %v291, %v318
  %v324 = vld [vmem:[%s3] sm:$0x1]
  %v326 = vlaneseq
  %v327 = vshrl.u32 %v326, 7
  %v328 = vsub.s32 0, %v327
  %v329 = vrot.slane %v324, %v328
  %v331 = vadd.f32 %v320, %v329
  %v332 = vadd.f32 %v321, %v329
  %v333 = vadd.f32 %v322, %v329
  %v334 = vadd.f32 %v323, %v329
  %vm335 = vcmp.gt.f32.partialorder %v331, 0.0
  %vm336 = vcmp.gt.f32.partialorder %v332, 0.0
  %vm337 = vcmp.gt.f32.partialorder %v333, 0.0
  %vm338 = vcmp.gt.f32.partialorder %v334, 0.0
  %v339 = vmul.f32 %v331, 0.2
  %v340 = vmul.f32 %v332, 0.2
  %v341 = vmul.f32 %v333, 0.2
  %v342 = vmul.f32 %v334, 0.2
  %v343 = vsel %vm335, %v331, %v339
  %v344 = vsel %vm336, %v332, %v340
  %v345 = vsel %vm337, %v333, %v341
  %v346 = vsel %vm338, %v334, %v342
  %v347 = vld [vmem:[%s4] sm:$0xff]
  %v348 = vld [vmem:[%s4 + $0x8] sm:$0xff]
  %v349 = vld [vmem:[%s4 + $0x10] sm:$0xff]
  %v350 = vld [vmem:[%s4 + $0x18] sm:$0xff]
  %v351 = vmul.f32 %v343, %v347
  %v352 = vmul.f32 %v344, %v348
  %v353 = vmul.f32 %v345, %v349
  %v354 = vmul.f32 %v346, %v350
  %v355 = vld [vmem:[%s5] sm:$0x3]
  %vm356 = vcmask 261120
  %v358 = vsel %vm356, %v355, 0
  %360 = vmatprep.subr.mxu0 0.0
  %361 = vmatpush1.msra.mxu0 %v351
  %362 = vmatprep.subr.mxu0 0.0
  %363 = vmatpush1.msra.mxu0 %v352
  %364 = vmatprep.subr.mxu0 0.0
  %365 = vmatpush1.msra.mxu0 %v353
  %366 = vmatprep.subr.mxu0 0.0
  %367 = vmatpush1.msra.mxu0 %v354
  %368 = vmatprep.subr.mxu0 0.0
  %369 = vmatpush1.msra.mxu0 0.0
  %370 = vmatprep.subr.mxu0 0.0
  %371 = vmatpush1.msra.mxu0 0.0
  %372 = vmatprep.subr.mxu0 0.0
  %373 = vmatpush1.msra.mxu0 0.0
  %374 = vmatprep.subr.mxu0 0.0
  %375 = vmatpush1.msra.mxu0 0.0
  %376 = vmatprep.subr.mxu0 0.0
  %377 = vmatpush1.msra.mxu0 0.0
  %378 = vmatprep.subr.mxu0 0.0
  %379 = vmatpush1.msra.mxu0 0.0
  %380 = vmatprep.subr.mxu0 0.0
  %381 = vmatpush1.msra.mxu0 0.0
  %382 = vmatprep.subr.mxu0 0.0
  %383 = vmatpush1.msra.mxu0 0.0
  %384 = vmatprep.subr.mxu0 0.0
  %385 = vmatpush1.msra.mxu0 0.0
  %386 = vmatprep.subr.mxu0 0.0
  %387 = vmatpush1.msra.mxu0 0.0
  %388 = vmatprep.subr.mxu0 0.0
  %389 = vmatpush1.msra.mxu0 0.0
  %390 = vmatprep.subr.mxu0 0.0
  %391 = vmatpush1.msra.mxu0 0.0
  %392 = vmatprep.subr.mxu0 0.0
  %393 = vmatpush1.msra.mxu0 0.0
  %394 = vmatprep.subr.mxu0 0.0
  %395 = vmatpush1.msra.mxu0 0.0
  %396 = vmatprep.subr.mxu0 0.0
  %397 = vmatpush1.msra.mxu0 0.0
  %398 = vmatprep.subr.mxu0 0.0
  %399 = vmatpush1.msra.mxu0 0.0
  %400 = vmatprep.subr.mxu0 0.0
  %401 = vmatpush1.msra.mxu0 0.0
  %402 = vmatprep.subr.mxu0 0.0
  %403 = vmatpush1.msra.mxu0 0.0
  %404 = vmatprep.subr.mxu0 0.0
  %405 = vmatpush1.msra.mxu0 0.0
  %406 = vmatprep.subr.mxu0 0.0
  %407 = vmatpush1.msra.mxu0 0.0
  %408 = vmatprep.subr.mxu0 0.0
  %409 = vmatpush1.msra.mxu0 0.0
  %410 = vmatprep.subr.mxu0 0.0
  %411 = vmatpush1.msra.mxu0 0.0
  %412 = vmatprep.subr.mxu0 0.0
  %413 = vmatpush1.msra.mxu0 0.0
  %414 = vmatprep.subr.mxu0 0.0
  %415 = vmatpush1.msra.mxu0 0.0
  %416 = vmatprep.subr.mxu0 0.0
  %417 = vmatpush1.msra.mxu0 0.0
  %418 = vmatprep.subr.mxu0 0.0
  %419 = vmatpush1.msra.mxu0 0.0
  %420 = vmatprep.subr.mxu0 0.0
  %421 = vmatpush1.msra.mxu0 0.0
  %422 = vmatprep.subr.mxu0 0.0
  %423 = vmatpush1.msra.mxu0 0.0
  %424 = vmatprep.mubr.f32.mxu0 0.0
  %425 = vmatmul.mubr.f32.gmra.mrb[0].mxu0 %v358
  %v426 = vpop.f32.mrb[0].mxu0
  %v427 = vadd.f32 0.0, %v426
  %v428 = vpop.f32.mrb[0].mxu0
  %429 = vdwg.mxu0
  %vm430 = vcmask 517120
  %v431 = vsel %vm430, %v427, 0.0
  %432 = vadd.xlane.f32.xlu0 %v431
  %v433 = vpop.xlane.xlu0 %432
  %v434 = vand.u32 2147483647, %v433
  %v435 = vsub.f32 0.0, %v434
  %v436 = vmul.f32 %v435, 1.442695
  %v437 = vpow.pop %v436
  %vm438 = vcmp.ge.f32.partialorder %v433, 0.0
  %v439 = vadd.f32 %v437, 1.0
  %v440 = vrcp.pop %v439
  %v441 = vmul.f32 1.0, %v440
  %v442 = vmul.f32 %v437, %v440
  %v443 = vsel %vm438, %v441, %v442
  %vm444 = vcmask 1024
  %445 = vst.msk [vmem:[%s6] sm:$0x3] %vm444, %v443
  // Predicated region
  $region26: #{discriminator_forward.7} parent=0 // pred_check
    _
  $region27: #{discriminator_forward.7} parent=0 // pred_check_branch
    %447 = sbr.rel (0) target = $region29
  $region28: #{discriminator_forward.7} parent=0 // pred_region
    _
  $region29: #{discriminator_forward.7} parent=0 // pred_fallthru
    _
  // Predicated region
  $region30: #{discriminator_forward.7} parent=0 // pred_check
    _
  $region31: #{discriminator_forward.7} parent=0 // pred_check_branch
    %449 = sbr.rel (0) target = $region33
  $region32: #{discriminator_forward.7} parent=0 // pred_region
    _
  $region33: #{discriminator_forward.7} parent=0 // pred_fallthru
    _

</llo_original>
